<compile_context>
chip_gen: v7x
topology: tpu7x:2x2x1
jax: 0.10.0
libtpu: 0.0.40
codegen_flags: <defaults>
</compile_context>

<pallas_src>
import jax
import jax.numpy as jnp
import numpy as np
from jax import lax
from jax.experimental import pallas as pl
from jax.experimental.pallas import tpu as pltpu  # noqa: F401  (kept for TPU backend)

# ----------------------- small ChatGLM-like config -----------------------
T = 16                    # tokens per invocation (>=16 so bf16 tiles are sublane-full)
HIDDEN = 32               # config.hidden_size
NUM_HEADS = 4             # config.num_attention_heads
NUM_KV_HEADS = 2          # config.multi_query_group_num (multi_query_attention)
HEAD_DIM = HIDDEN // NUM_HEADS
GROUP = NUM_HEADS // NUM_KV_HEADS
Q_SIZE = NUM_HEADS * HEAD_DIM
KV_SIZE = NUM_KV_HEADS * HEAD_DIM
QKV_SIZE = Q_SIZE + 2 * KV_SIZE
FFN = 64                  # config.ffn_hidden_size
NUM_LAYERS = 2            # config.num_layers
EPS = 1e-5                # config.layernorm_epsilon
ROPE_BASE = 10000.0       # base * rope_ratio (rope_ratio = 1.0)
ROTARY_DIM = HEAD_DIM // 2
SCALING = HEAD_DIM ** -0.5
OUT_PAD = 128             # lane-dense output slab width

# layout of the packed small-f32-param slab: one vector per 128-lane row
VEC_FLN = 0
VEC_PER_LAYER = 7         # ln1, ln2, bq, bq_rot, bk, bk_rot, bv
VEC_ROWS = 1 + VEC_PER_LAYER * NUM_LAYERS
VEC_SLAB_ROWS = ((VEC_ROWS + 7) // 8) * 8


def _vec_base(layer):
    return 1 + layer * VEC_PER_LAYER


def _rmsnorm(v, w):
    var = jnp.mean(v * v, axis=-1, keepdims=True)
    return v * lax.rsqrt(var + EPS) * w


# ------------------------------ Pallas kernel -----------------------------
def glm_transformer_kernel(
    x_ref,        # [T, HIDDEN]                      f32
    rope_ref,     # [T, 2*Q_SIZE]  cos_q | sin_q     f32 (runtime positions)
    vecs_ref,     # [VEC_SLAB_ROWS, 128]             f32 packed small params
    wq_ref,       # [L, HIDDEN, Q_SIZE]              bf16 (pre-scaled)
    wqr_ref,      # [L, HIDDEN, Q_SIZE]              bf16 (pre-scaled, rope-rotated)
    wk_ref,       # [L, HIDDEN, KV_SIZE]             bf16
    wkr_ref,      # [L, HIDDEN, KV_SIZE]             bf16 (rope-rotated)
    wv_ref,       # [L, HIDDEN, KV_SIZE]             bf16
    wdense_ref,   # [L*NUM_HEADS, HEAD_DIM, HIDDEN]  bf16 per-head output projection
    wgate_ref,    # [L, HIDDEN, FFN]                 bf16
    wup_ref,      # [L, HIDDEN, FFN]                 bf16
    w4h_ref,      # [L, FFN, HIDDEN]                 bf16
    out_ref,      # [T, OUT_PAD]                     f32 (lane-dense slab)
):
    f32 = jnp.float32
    bf16 = jnp.bfloat16

    h = x_ref[...]                                   # f32 residual stream

    # --- loop-invariant values hoisted out of the layer loop ---
    cos_q = rope_ref[:, 0:Q_SIZE]
    sin_q = rope_ref[:, Q_SIZE:2 * Q_SIZE]
    # K heads tile the same per-head cos/sin pattern -> static sub-slice of the Q table
    cos_k = cos_q[:, :KV_SIZE]
    sin_k = sin_q[:, :KV_SIZE]
    row = lax.broadcasted_iota(jnp.int32, (T, T), 0)
    col = lax.broadcasted_iota(jnp.int32, (T, T), 1)
    causal = col <= row

    # --- fused layer loop (statically unrolled; NUM_LAYERS is small) ---
    for l in range(NUM_LAYERS):
        b = _vec_base(l)
        ln1 = vecs_ref[b + 0:b + 1, 0:HIDDEN]
        ln2 = vecs_ref[b + 1:b + 2, 0:HIDDEN]
        bq = vecs_ref[b + 2:b + 3, 0:Q_SIZE]
        bqr = vecs_ref[b + 3:b + 4, 0:Q_SIZE]
        bk = vecs_ref[b + 4:b + 5, 0:KV_SIZE]
        bkr = vecs_ref[b + 5:b + 6, 0:KV_SIZE]
        bv = vecs_ref[b + 6:b + 7, 0:KV_SIZE]

        # input RMSNorm + Q/K/V projections (bf16 weights, f32 accumulation)
        x1 = _rmsnorm(h, ln1).astype(bf16)
        q = jnp.dot(x1, wq_ref[l], preferred_element_type=f32) + bq
        qr = jnp.dot(x1, wqr_ref[l], preferred_element_type=f32) + bqr
        q = q * cos_q + qr * sin_q                    # interleaved rope, rotation folded
        k = jnp.dot(x1, wk_ref[l], preferred_element_type=f32) + bk
        kr = jnp.dot(x1, wkr_ref[l], preferred_element_type=f32) + bkr
        k = k * cos_k + kr * sin_k
        v = jnp.dot(x1, wv_ref[l], preferred_element_type=f32) + bv

        # causal multi-query attention: plain per-head loop, each head's context is
        # matmul-accumulated straight into the residual via its own dense slab
        # (no sublane stacking, no masked context scatter, no scratch buffer).
        for head in range(NUM_HEADS):
            kvh = head // GROUP
            q_h = q[:, head * HEAD_DIM:(head + 1) * HEAD_DIM].astype(bf16)   # [T, hd]
            k_h = k[:, kvh * HEAD_DIM:(kvh + 1) * HEAD_DIM].astype(bf16)     # [T, hd]
            v_h = v[:, kvh * HEAD_DIM:(kvh + 1) * HEAD_DIM].astype(bf16)     # [T, hd]

            s = lax.dot_general(q_h, k_h, (((1,), (1,)), ((), ())),
                                preferred_element_type=f32)                  # [T, T]
            s = jnp.where(causal, s, -1e30)
            s = s - jnp.max(s, axis=-1, keepdims=True)
            p = jnp.exp(s)                                                   # f32 softmax
            p = p * pl.reciprocal(jnp.sum(p, axis=-1, keepdims=True), approx=True)
            ctx_h = jnp.dot(p.astype(bf16), v_h, preferred_element_type=f32)  # [T, hd]
            h = h + jnp.dot(ctx_h.astype(bf16), wdense_ref[l * NUM_HEADS + head],
                            preferred_element_type=f32)                      # [T, HIDDEN]

        # post-attention RMSNorm + SwiGLU MLP (gate/up split host-side) + residual
        x2 = _rmsnorm(h, ln2).astype(bf16)
        gate = jnp.dot(x2, wgate_ref[l], preferred_element_type=f32)
        up = jnp.dot(x2, wup_ref[l], preferred_element_type=f32)
        act = (gate * jax.nn.sigmoid(gate) * up).astype(bf16)
        h = h + jnp.dot(act, w4h_ref[l], preferred_element_type=f32)

    # final_layernorm (post_layer_norm=True), stored lane-dense into a [T, 128] slab
    # (unmasked vst); the wrapper slices back to [T, HIDDEN].
    fln = vecs_ref[VEC_FLN:VEC_FLN + 1, 0:HIDDEN]
    y = _rmsnorm(h, fln)
    pad = jnp.zeros((T, OUT_PAD - HIDDEN), f32)
    out_ref[...] = jnp.concatenate([y, pad], axis=-1)


# ----------------------------- host-side prep -----------------------------
def _head_rotation():
    """Interleaved-pair rotation within one head: (x0,x1,...) -> (-x1, x0, ...)."""
    r = np.zeros((HEAD_DIM, HEAD_DIM), np.float32)
    for j in range(ROTARY_DIM // 2):
        r[2 * j + 1, 2 * j] = -1.0
        r[2 * j, 2 * j + 1] = 1.0
    return r


def prepare_weights(params):
    """One-time prep (outside the per-call path): split merged QKV / gate-up, fold the
    attention scaling and the rope pair-rotation into the weights, reshape the dense
    projection per head, cast weights to bf16 and pack the small f32 params into one
    lane-padded slab."""
    wqkv = np.asarray(params["wqkv"], np.float32)     # [L, H, QKV]
    bqkv = np.asarray(params["bqkv"], np.float32)     # [L, 1, QKV]
    wh4 = np.asarray(params["wh4"], np.float32)       # [L, H, 2*FFN]
    wdense = np.asarray(params["wdense"], np.float32)  # [L, Q_SIZE, H]
    w4h = np.asarray(params["w4h"], np.float32)        # [L, FFN, H]
    ln1 = np.asarray(params["ln1"], np.float32)
    ln2 = np.asarray(params["ln2"], np.float32)
    fln = np.asarray(params["final_ln"], np.float32)

    wq = wqkv[..., :Q_SIZE] * SCALING
    bq = bqkv[..., :Q_SIZE] * SCALING
    wk = wqkv[..., Q_SIZE:Q_SIZE + KV_SIZE]
    bk = bqkv[..., Q_SIZE:Q_SIZE + KV_SIZE]
    wv = wqkv[..., Q_SIZE + KV_SIZE:]
    bv = bqkv[..., Q_SIZE + KV_SIZE:]

    # fold the signed pair-permutation R into the weights: (x@W + b) @ R == x@(W@R) + b@R
    r = _head_rotation()
    rq = np.kron(np.eye(NUM_HEADS, dtype=np.float32), r)
    rk = np.kron(np.eye(NUM_KV_HEADS, dtype=np.float32), r)
    wqr, bqr = wq @ rq, bq @ rq
    wkr, bkr = wk @ rk, bk @ rk

    # pack all small f32 params into one lane-padded slab (one DMA instead of ~9)
    vecs = np.zeros((VEC_SLAB_ROWS, 128), np.float32)
    vecs[VEC_FLN, :HIDDEN] = fln[0]
    for l in range(NUM_LAYERS):
        b = _vec_base(l)
        vecs[b + 0, :HIDDEN] = ln1[l, 0]
        vecs[b + 1, :HIDDEN] = ln2[l, 0]
        vecs[b + 2, :Q_SIZE] = bq[l, 0]
        vecs[b + 3, :Q_SIZE] = bqr[l, 0]
        vecs[b + 4, :KV_SIZE] = bk[l, 0]
        vecs[b + 5, :KV_SIZE] = bkr[l, 0]
        vecs[b + 6, :KV_SIZE] = bv[l, 0]

    bf16 = jnp.bfloat16
    wdense_h = wdense.reshape(NUM_LAYERS, NUM_HEADS, HEAD_DIM, HIDDEN)
    wdense_h = wdense_h.reshape(NUM_LAYERS * NUM_HEADS, HEAD_DIM, HIDDEN)
    return {
        # kernel operands
        "vecs": jnp.asarray(vecs),
        "wq": jnp.asarray(wq, dtype=bf16), "wqr": jnp.asarray(wqr, dtype=bf16),
        "wk": jnp.asarray(wk, dtype=bf16), "wkr": jnp.asarray(wkr, dtype=bf16),
        "wv": jnp.asarray(wv, dtype=bf16),
        "wdense_h": jnp.asarray(wdense_h, dtype=bf16),
        "wgate": jnp.asarray(wh4[..., :FFN], dtype=bf16),
        "wup": jnp.asarray(wh4[..., FFN:], dtype=bf16),
        "w4h": jnp.asarray(w4h, dtype=bf16),
        # unpacked copies for the pure-JAX reference (unused by the kernel path)
        "ln1": jnp.asarray(ln1), "ln2": jnp.asarray(ln2), "fln": jnp.asarray(fln),
        "bq": jnp.asarray(bq), "bqr": jnp.asarray(bqr),
        "bk": jnp.asarray(bk), "bkr": jnp.asarray(bkr), "bv": jnp.asarray(bv),
        "wdense": jnp.asarray(wdense, dtype=bf16),
    }


def _rope_slab(position_ids):
    """[T, 2*Q_SIZE] slab = cos_q | sin_q built from runtime position_ids
    (GPT-J interleaved rope, rotary_dim = head_dim // 2)."""
    pos = position_ids.astype(jnp.float32)
    inv_freq = 1.0 / (ROPE_BASE ** (
        jnp.arange(0, ROTARY_DIM, 2, dtype=jnp.float32) / ROTARY_DIM))
    freqs = pos[:, None] * inv_freq[None, :]
    cos = jnp.repeat(jnp.cos(freqs), 2, axis=-1)
    sin = jnp.repeat(jnp.sin(freqs), 2, axis=-1)
    n = pos.shape[0]
    cos_h = jnp.concatenate([cos, jnp.ones((n, HEAD_DIM - ROTARY_DIM), jnp.float32)], -1)
    sin_h = jnp.concatenate([sin, jnp.zeros((n, HEAD_DIM - ROTARY_DIM), jnp.float32)], -1)
    cos_q = jnp.tile(cos_h, (1, NUM_HEADS))
    sin_q = jnp.tile(sin_h, (1, NUM_HEADS))
    return jnp.concatenate([cos_q, sin_q], axis=-1)


def init_params(key):
    keys = jax.random.split(key, 5)
    scale = 0.05
    return {
        "ln1": jnp.ones((NUM_LAYERS, 1, HIDDEN), jnp.float32),
        "ln2": jnp.ones((NUM_LAYERS, 1, HIDDEN), jnp.float32),
        "final_ln": jnp.ones((1, HIDDEN), jnp.float32),
        "wqkv": scale * jax.random.normal(keys[0], (NUM_LAYERS, HIDDEN, QKV_SIZE), jnp.float32),
        "bqkv": scale * jax.random.normal(keys[1], (NUM_LAYERS, 1, QKV_SIZE), jnp.float32),
        "wdense": scale * jax.random.normal(keys[2], (NUM_LAYERS, Q_SIZE, HIDDEN), jnp.float32),
        "wh4": scale * jax.random.normal(keys[3], (NUM_LAYERS, HIDDEN, 2 * FFN), jnp.float32),
        "w4h": scale * jax.random.normal(keys[4], (NUM_LAYERS, FFN, HIDDEN), jnp.float32),
    }


@jax.jit
def glm_transformer(hidden_states, position_ids, prep):
    rope = _rope_slab(position_ids)   # runtime positions (cheap XLA ops)
    # No grid: all layer weights (< ~100 KB) sit in VMEM for a single invocation;
    # at these shapes any per-grid-step overhead would dominate.
    out = pl.pallas_call(
        glm_transformer_kernel,
        out_shape=jax.ShapeDtypeStruct((T, OUT_PAD), jnp.float32),
    )(hidden_states, rope, prep["vecs"],
      prep["wq"], prep["wqr"], prep["wk"], prep["wkr"], prep["wv"],
      prep["wdense_h"], prep["wgate"], prep["wup"], prep["w4h"])
    return out[:, :HIDDEN]


# ------------------------- pure-JAX reference check ------------------------
def glm_transformer_ref(hidden_states, position_ids, prep):
    """Plain-JAX reference with the same precision policy (bf16 weights/activations at
    dots, f32 accumulation, f32 residuals/norms/softmax, exact softmax division)."""
    f32, bf16 = jnp.float32, jnp.bfloat16
    rope = _rope_slab(position_ids)
    cos_q, sin_q = rope[:, :Q_SIZE], rope[:, Q_SIZE:]
    cos_k, sin_k = cos_q[:, :KV_SIZE], sin_q[:, :KV_SIZE]
    causal = jnp.arange(T)[None, :] <= jnp.arange(T)[:, None]
    h = hidden_states
    for l in range(NUM_LAYERS):
        x1 = _rmsnorm(h, prep["ln1"][l]).astype(bf16)
        q = jnp.dot(x1, prep["wq"][l], preferred_element_type=f32) + prep["bq"][l]
        qr = jnp.dot(x1, prep["wqr"][l], preferred_element_type=f32) + prep["bqr"][l]
        q = q * cos_q + qr * sin_q
        k = jnp.dot(x1, prep["wk"][l], preferred_element_type=f32) + prep["bk"][l]
        kr = jnp.dot(x1, prep["wkr"][l], preferred_element_type=f32) + prep["bkr"][l]
        k = k * cos_k + kr * sin_k
        v = jnp.dot(x1, prep["wv"][l], preferred_element_type=f32) + prep["bv"][l]
        parts = []
        for head in range(NUM_HEADS):
            kvh = head // GROUP
            q_h = q[:, head * HEAD_DIM:(head + 1) * HEAD_DIM].astype(bf16)
            k_h = k[:, kvh * HEAD_DIM:(kvh + 1) * HEAD_DIM].astype(bf16)
            v_h = v[:, kvh * HEAD_DIM:(kvh + 1) * HEAD_DIM].astype(bf16)
            s = jnp.dot(q_h, k_h.T, preferred_element_type=f32)
            s = jnp.where(causal, s, -1e30)
            s = s - jnp.max(s, axis=-1, keepdims=True)
            p = jnp.exp(s)
            p = p / jnp.sum(p, axis=-1, keepdims=True)
            parts.append(jnp.dot(p.astype(bf16), v_h, preferred_element_type=f32))
        ctx = jnp.concatenate(parts, axis=-1).astype(bf16)
        h = h + jnp.dot(ctx, prep["wdense"][l], preferred_element_type=f32)
        x2 = _rmsnorm(h, prep["ln2"][l]).astype(bf16)
        gate = jnp.dot(x2, prep["wgate"][l], preferred_element_type=f32)
        up = jnp.dot(x2, prep["wup"][l], preferred_element_type=f32)
        act = (gate * jax.nn.sigmoid(gate) * up).astype(bf16)
        h = h + jnp.dot(act, prep["w4h"][l], preferred_element_type=f32)
    return _rmsnorm(h, prep["fln"])


if __name__ == "__main__":
    key = jax.random.PRNGKey(0)
    k_x, k_p = jax.random.split(key)
    hidden_states = jax.random.normal(k_x, (T, HIDDEN), jnp.float32)
    # non-zero offset exercises the runtime-position rope path
    position_ids = jnp.arange(T, dtype=jnp.int32) + 3
    params = init_params(k_p)
    prep = prepare_weights(params)   # one-time weight prep, hoisted out of the call path

    out = jax.block_until_ready(glm_transformer(hidden_states, position_ids, prep))
    ref = jax.block_until_ready(glm_transformer_ref(hidden_states, position_ids, prep))
    # NOTE: pl.reciprocal(approx=True) in the softmax denominator diverges slightly
    # from exact division; it stays well inside this tolerance.
    np.testing.assert_allclose(np.asarray(out), np.asarray(ref), rtol=1e-2, atol=1e-2)

    print("KERNEL_OK")
</pallas_src>

<mosaic_0001>
module attributes {stable_mosaic.version = 11 : i64} {
  func.func @glm_transformer_kernel(%arg0: memref<16x32xf32, #tpu.memory_space<vmem>>, %arg1: memref<16x64xf32, #tpu.memory_space<vmem>>, %arg2: memref<16x128xf32, #tpu.memory_space<vmem>>, %arg3: memref<2x32x32xbf16, #tpu.memory_space<vmem>>, %arg4: memref<2x32x32xbf16, #tpu.memory_space<vmem>>, %arg5: memref<2x32x16xbf16, #tpu.memory_space<vmem>>, %arg6: memref<2x32x16xbf16, #tpu.memory_space<vmem>>, %arg7: memref<2x32x16xbf16, #tpu.memory_space<vmem>>, %arg8: memref<8x8x32xbf16, #tpu.memory_space<vmem>>, %arg9: memref<2x32x64xbf16, #tpu.memory_space<vmem>>, %arg10: memref<2x32x64xbf16, #tpu.memory_space<vmem>>, %arg11: memref<2x64x32xbf16, #tpu.memory_space<vmem>>, %arg12: memref<16x128xf32, #tpu.memory_space<vmem>>) attributes {dimension_semantics = [], scalar_prefetch = 0 : i64, scratch_operands = 0 : i64, tpu.core_type = #tpu.core_type<tc>} {
    %c0 = arith.constant 0 : index
    %c0_0 = arith.constant 0 : index
    %0 = vector.load %arg0[%c0, %c0_0] : memref<16x32xf32, #tpu.memory_space<vmem>>, vector<16x32xf32>
    %c0_1 = arith.constant 0 : index
    %c0_2 = arith.constant 0 : index
    %1 = vector.load %arg1[%c0_1, %c0_2] : memref<16x64xf32, #tpu.memory_space<vmem>>, vector<16x32xf32>
    %c0_3 = arith.constant 0 : index
    %c32 = arith.constant 32 : index
    %2 = vector.load %arg1[%c0_3, %c32] : memref<16x64xf32, #tpu.memory_space<vmem>>, vector<16x32xf32>
    %3 = vector.extract_strided_slice %1 {offsets = [0, 0], sizes = [16, 16], strides = [1, 1]} : vector<16x32xf32> to vector<16x16xf32>
    %4 = vector.extract_strided_slice %2 {offsets = [0, 0], sizes = [16, 16], strides = [1, 1]} : vector<16x32xf32> to vector<16x16xf32>
    %5 = tpu.iota {dimensions = array<i32: 0>} : vector<16x16xi32>
    %6 = tpu.iota {dimensions = array<i32: 1>} : vector<16x16xi32>
    %7 = arith.cmpi sle, %6, %5 : vector<16x16xi32>
    %c1 = arith.constant 1 : index
    %c0_4 = arith.constant 0 : index
    %8 = vector.load %arg2[%c1, %c0_4] : memref<16x128xf32, #tpu.memory_space<vmem>>, vector<1x32xf32>
    %c2 = arith.constant 2 : index
    %c0_5 = arith.constant 0 : index
    %9 = vector.load %arg2[%c2, %c0_5] : memref<16x128xf32, #tpu.memory_space<vmem>>, vector<1x32xf32>
    %c3 = arith.constant 3 : index
    %c0_6 = arith.constant 0 : index
    %10 = vector.load %arg2[%c3, %c0_6] : memref<16x128xf32, #tpu.memory_space<vmem>>, vector<1x32xf32>
    %c4 = arith.constant 4 : index
    %c0_7 = arith.constant 0 : index
    %11 = vector.load %arg2[%c4, %c0_7] : memref<16x128xf32, #tpu.memory_space<vmem>>, vector<1x32xf32>
    %c5 = arith.constant 5 : index
    %c0_8 = arith.constant 0 : index
    %12 = vector.load %arg2[%c5, %c0_8] : memref<16x128xf32, #tpu.memory_space<vmem>>, vector<1x16xf32>
    %c6 = arith.constant 6 : index
    %c0_9 = arith.constant 0 : index
    %13 = vector.load %arg2[%c6, %c0_9] : memref<16x128xf32, #tpu.memory_space<vmem>>, vector<1x16xf32>
    %c7 = arith.constant 7 : index
    %c0_10 = arith.constant 0 : index
    %14 = vector.load %arg2[%c7, %c0_10] : memref<16x128xf32, #tpu.memory_space<vmem>>, vector<1x16xf32>
    %15 = arith.mulf %0, %0 : vector<16x32xf32>
    %cst = arith.constant dense<0.000000e+00> : vector<16xf32>
    %16 = vector.multi_reduction <add>, %15, %cst [1] : vector<16x32xf32> to vector<16xf32>
    %17 = vector.shape_cast %16 : vector<16xf32> to vector<16x1xf32>
    %cst_11 = arith.constant 3.200000e+01 : f32
    %18 = vector.broadcast %cst_11 : f32 to vector<16x1xf32>
    %19 = arith.divf %17, %18 : vector<16x1xf32>
    %cst_12 = arith.constant 9.99999974E-6 : f32
    %20 = vector.broadcast %cst_12 : f32 to vector<16x1xf32>
    %21 = arith.addf %19, %20 : vector<16x1xf32>
    %22 = math.rsqrt %21 : vector<16x1xf32>
    %23 = vector.broadcast %22 : vector<16x1xf32> to vector<16x32xf32>
    %24 = arith.mulf %0, %23 : vector<16x32xf32>
    %25 = vector.broadcast %8 : vector<1x32xf32> to vector<16x32xf32>
    %26 = arith.mulf %24, %25 : vector<16x32xf32>
    %27 = arith.truncf %26 : vector<16x32xf32> to vector<16x32xbf16>
    %c0_13 = arith.constant 0 : index
    %c0_14 = arith.constant 0 : index
    %c0_15 = arith.constant 0 : index
    %28 = vector.load %arg3[%c0_13, %c0_14, %c0_15] : memref<2x32x32xbf16, #tpu.memory_space<vmem>>, vector<1x32x32xbf16>
    %29 = vector.shape_cast %28 : vector<1x32x32xbf16> to vector<32x32xbf16>
    %cst_16 = arith.constant dense<0.000000e+00> : vector<16x32xf32>
    %30 = tpu.matmul %27, %29, %cst_16 {dimension_numbers = #tpu.dot_dimension_numbers<[1], [0], [0], [1], [0, 0, 1, 1], [], []>} : vector<16x32xbf16>, vector<32x32xbf16>, vector<16x32xf32> -> vector<16x32xf32>
    %31 = vector.broadcast %10 : vector<1x32xf32> to vector<16x32xf32>
    %32 = arith.addf %30, %31 : vector<16x32xf32>
    %c0_17 = arith.constant 0 : index
    %c0_18 = arith.constant 0 : index
    %c0_19 = arith.constant 0 : index
    %33 = vector.load %arg4[%c0_17, %c0_18, %c0_19] : memref<2x32x32xbf16, #tpu.memory_space<vmem>>, vector<1x32x32xbf16>
    %34 = vector.shape_cast %33 : vector<1x32x32xbf16> to vector<32x32xbf16>
    %cst_20 = arith.constant dense<0.000000e+00> : vector<16x32xf32>
    %35 = tpu.matmul %27, %34, %cst_20 {dimension_numbers = #tpu.dot_dimension_numbers<[1], [0], [0], [1], [0, 0, 1, 1], [], []>} : vector<16x32xbf16>, vector<32x32xbf16>, vector<16x32xf32> -> vector<16x32xf32>
    %36 = vector.broadcast %11 : vector<1x32xf32> to vector<16x32xf32>
    %37 = arith.addf %35, %36 : vector<16x32xf32>
    %38 = arith.mulf %32, %1 : vector<16x32xf32>
    %39 = arith.mulf %37, %2 : vector<16x32xf32>
    %40 = arith.addf %38, %39 : vector<16x32xf32>
    %c0_21 = arith.constant 0 : index
    %c0_22 = arith.constant 0 : index
    %c0_23 = arith.constant 0 : index
    %41 = vector.load %arg5[%c0_21, %c0_22, %c0_23] : memref<2x32x16xbf16, #tpu.memory_space<vmem>>, vector<1x32x16xbf16>
    %42 = vector.shape_cast %41 : vector<1x32x16xbf16> to vector<32x16xbf16>
    %cst_24 = arith.constant dense<0.000000e+00> : vector<16x16xf32>
    %43 = tpu.matmul %27, %42, %cst_24 {dimension_numbers = #tpu.dot_dimension_numbers<[1], [0], [0], [1], [0, 0, 1, 1], [], []>} : vector<16x32xbf16>, vector<32x16xbf16>, vector<16x16xf32> -> vector<16x16xf32>
    %44 = vector.broadcast %12 : vector<1x16xf32> to vector<16x16xf32>
    %45 = arith.addf %43, %44 : vector<16x16xf32>
    %c0_25 = arith.constant 0 : index
    %c0_26 = arith.constant 0 : index
    %c0_27 = arith.constant 0 : index
    %46 = vector.load %arg6[%c0_25, %c0_26, %c0_27] : memref<2x32x16xbf16, #tpu.memory_space<vmem>>, vector<1x32x16xbf16>
    %47 = vector.shape_cast %46 : vector<1x32x16xbf16> to vector<32x16xbf16>
    %cst_28 = arith.constant dense<0.000000e+00> : vector<16x16xf32>
    %48 = tpu.matmul %27, %47, %cst_28 {dimension_numbers = #tpu.dot_dimension_numbers<[1], [0], [0], [1], [0, 0, 1, 1], [], []>} : vector<16x32xbf16>, vector<32x16xbf16>, vector<16x16xf32> -> vector<16x16xf32>
    %49 = vector.broadcast %13 : vector<1x16xf32> to vector<16x16xf32>
    %50 = arith.addf %48, %49 : vector<16x16xf32>
    %51 = arith.mulf %45, %3 : vector<16x16xf32>
    %52 = arith.mulf %50, %4 : vector<16x16xf32>
    %53 = arith.addf %51, %52 : vector<16x16xf32>
    %c0_29 = arith.constant 0 : index
    %c0_30 = arith.constant 0 : index
    %c0_31 = arith.constant 0 : index
    %54 = vector.load %arg7[%c0_29, %c0_30, %c0_31] : memref<2x32x16xbf16, #tpu.memory_space<vmem>>, vector<1x32x16xbf16>
    %55 = vector.shape_cast %54 : vector<1x32x16xbf16> to vector<32x16xbf16>
    %cst_32 = arith.constant dense<0.000000e+00> : vector<16x16xf32>
    %56 = tpu.matmul %27, %55, %cst_32 {dimension_numbers = #tpu.dot_dimension_numbers<[1], [0], [0], [1], [0, 0, 1, 1], [], []>} : vector<16x32xbf16>, vector<32x16xbf16>, vector<16x16xf32> -> vector<16x16xf32>
    %57 = vector.broadcast %14 : vector<1x16xf32> to vector<16x16xf32>
    %58 = arith.addf %56, %57 : vector<16x16xf32>
    %59 = vector.extract_strided_slice %40 {offsets = [0, 0], sizes = [16, 8], strides = [1, 1]} : vector<16x32xf32> to vector<16x8xf32>
    %60 = arith.truncf %59 : vector<16x8xf32> to vector<16x8xbf16>
    %61 = vector.extract_strided_slice %53 {offsets = [0, 0], sizes = [16, 8], strides = [1, 1]} : vector<16x16xf32> to vector<16x8xf32>
    %62 = arith.truncf %61 : vector<16x8xf32> to vector<16x8xbf16>
    %63 = vector.extract_strided_slice %58 {offsets = [0, 0], sizes = [16, 8], strides = [1, 1]} : vector<16x16xf32> to vector<16x8xf32>
    %64 = arith.truncf %63 : vector<16x8xf32> to vector<16x8xbf16>
    %cst_33 = arith.constant dense<0.000000e+00> : vector<16x16xf32>
    %65 = tpu.matmul %60, %62, %cst_33 {dimension_numbers = #tpu.dot_dimension_numbers<[1], [1], [0], [0], [0, 0, 1, 0], [], []>} : vector<16x8xbf16>, vector<16x8xbf16>, vector<16x16xf32> -> vector<16x16xf32>
    %cst_34 = arith.constant -1.000000e+30 : f32
    %66 = vector.broadcast %cst_34 : f32 to vector<16x16xf32>
    %67 = arith.select %7, %65, %66 : vector<16x16xi1>, vector<16x16xf32>
    %cst_35 = arith.constant dense<0xFF800000> : vector<16xf32>
    %68 = vector.multi_reduction <maximumf>, %67, %cst_35 [1] : vector<16x16xf32> to vector<16xf32>
    %69 = vector.shape_cast %68 : vector<16xf32> to vector<16x1xf32>
    %70 = vector.broadcast %69 : vector<16x1xf32> to vector<16x16xf32>
    %71 = arith.subf %67, %70 : vector<16x16xf32>
    %72 = math.exp %71 : vector<16x16xf32>
    %cst_36 = arith.constant dense<0.000000e+00> : vector<16xf32>
    %73 = vector.multi_reduction <add>, %72, %cst_36 [1] : vector<16x16xf32> to vector<16xf32>
    %74 = vector.shape_cast %73 : vector<16xf32> to vector<16x1xf32>
    %75 = tpu.reciprocal %74 {approx = true} : vector<16x1xf32> -> vector<16x1xf32>
    %76 = vector.broadcast %75 : vector<16x1xf32> to vector<16x16xf32>
    %77 = arith.mulf %72, %76 : vector<16x16xf32>
    %78 = arith.truncf %77 : vector<16x16xf32> to vector<16x16xbf16>
    %cst_37 = arith.constant dense<0.000000e+00> : vector<16x8xf32>
    %79 = tpu.matmul %78, %64, %cst_37 {dimension_numbers = #tpu.dot_dimension_numbers<[1], [0], [0], [1], [0, 0, 1, 1], [], []>} : vector<16x16xbf16>, vector<16x8xbf16>, vector<16x8xf32> -> vector<16x8xf32>
    %80 = arith.truncf %79 : vector<16x8xf32> to vector<16x8xbf16>
    %c0_38 = arith.constant 0 : index
    %c0_39 = arith.constant 0 : index
    %c0_40 = arith.constant 0 : index
    %81 = vector.load %arg8[%c0_38, %c0_39, %c0_40] : memref<8x8x32xbf16, #tpu.memory_space<vmem>>, vector<1x8x32xbf16>
    %82 = vector.shape_cast %81 : vector<1x8x32xbf16> to vector<8x32xbf16>
    %cst_41 = arith.constant dense<0.000000e+00> : vector<16x32xf32>
    %83 = tpu.matmul %80, %82, %cst_41 {dimension_numbers = #tpu.dot_dimension_numbers<[1], [0], [0], [1], [0, 0, 1, 1], [], []>} : vector<16x8xbf16>, vector<8x32xbf16>, vector<16x32xf32> -> vector<16x32xf32>
    %84 = arith.addf %0, %83 : vector<16x32xf32>
    %85 = vector.extract_strided_slice %40 {offsets = [0, 8], sizes = [16, 8], strides = [1, 1]} : vector<16x32xf32> to vector<16x8xf32>
    %86 = arith.truncf %85 : vector<16x8xf32> to vector<16x8xbf16>
    %87 = vector.extract_strided_slice %53 {offsets = [0, 0], sizes = [16, 8], strides = [1, 1]} : vector<16x16xf32> to vector<16x8xf32>
    %88 = arith.truncf %87 : vector<16x8xf32> to vector<16x8xbf16>
    %89 = vector.extract_strided_slice %58 {offsets = [0, 0], sizes = [16, 8], strides = [1, 1]} : vector<16x16xf32> to vector<16x8xf32>
    %90 = arith.truncf %89 : vector<16x8xf32> to vector<16x8xbf16>
    %cst_42 = arith.constant dense<0.000000e+00> : vector<16x16xf32>
    %91 = tpu.matmul %86, %88, %cst_42 {dimension_numbers = #tpu.dot_dimension_numbers<[1], [1], [0], [0], [0, 0, 1, 0], [], []>} : vector<16x8xbf16>, vector<16x8xbf16>, vector<16x16xf32> -> vector<16x16xf32>
    %cst_43 = arith.constant -1.000000e+30 : f32
    %92 = vector.broadcast %cst_43 : f32 to vector<16x16xf32>
    %93 = arith.select %7, %91, %92 : vector<16x16xi1>, vector<16x16xf32>
    %cst_44 = arith.constant dense<0xFF800000> : vector<16xf32>
    %94 = vector.multi_reduction <maximumf>, %93, %cst_44 [1] : vector<16x16xf32> to vector<16xf32>
    %95 = vector.shape_cast %94 : vector<16xf32> to vector<16x1xf32>
    %96 = vector.broadcast %95 : vector<16x1xf32> to vector<16x16xf32>
    %97 = arith.subf %93, %96 : vector<16x16xf32>
    %98 = math.exp %97 : vector<16x16xf32>
    %cst_45 = arith.constant dense<0.000000e+00> : vector<16xf32>
    %99 = vector.multi_reduction <add>, %98, %cst_45 [1] : vector<16x16xf32> to vector<16xf32>
    %100 = vector.shape_cast %99 : vector<16xf32> to vector<16x1xf32>
    %101 = tpu.reciprocal %100 {approx = true} : vector<16x1xf32> -> vector<16x1xf32>
    %102 = vector.broadcast %101 : vector<16x1xf32> to vector<16x16xf32>
    %103 = arith.mulf %98, %102 : vector<16x16xf32>
    %104 = arith.truncf %103 : vector<16x16xf32> to vector<16x16xbf16>
    %cst_46 = arith.constant dense<0.000000e+00> : vector<16x8xf32>
    %105 = tpu.matmul %104, %90, %cst_46 {dimension_numbers = #tpu.dot_dimension_numbers<[1], [0], [0], [1], [0, 0, 1, 1], [], []>} : vector<16x16xbf16>, vector<16x8xbf16>, vector<16x8xf32> -> vector<16x8xf32>
    %106 = arith.truncf %105 : vector<16x8xf32> to vector<16x8xbf16>
    %c1_47 = arith.constant 1 : index
    %c0_48 = arith.constant 0 : index
    %c0_49 = arith.constant 0 : index
    %107 = vector.load %arg8[%c1_47, %c0_48, %c0_49] : memref<8x8x32xbf16, #tpu.memory_space<vmem>>, vector<1x8x32xbf16>
    %108 = vector.shape_cast %107 : vector<1x8x32xbf16> to vector<8x32xbf16>
    %cst_50 = arith.constant dense<0.000000e+00> : vector<16x32xf32>
    %109 = tpu.matmul %106, %108, %cst_50 {dimension_numbers = #tpu.dot_dimension_numbers<[1], [0], [0], [1], [0, 0, 1, 1], [], []>} : vector<16x8xbf16>, vector<8x32xbf16>, vector<16x32xf32> -> vector<16x32xf32>
    %110 = arith.addf %84, %109 : vector<16x32xf32>
    %111 = vector.extract_strided_slice %40 {offsets = [0, 16], sizes = [16, 8], strides = [1, 1]} : vector<16x32xf32> to vector<16x8xf32>
    %112 = arith.truncf %111 : vector<16x8xf32> to vector<16x8xbf16>
    %113 = vector.extract_strided_slice %53 {offsets = [0, 8], sizes = [16, 8], strides = [1, 1]} : vector<16x16xf32> to vector<16x8xf32>
    %114 = arith.truncf %113 : vector<16x8xf32> to vector<16x8xbf16>
    %115 = vector.extract_strided_slice %58 {offsets = [0, 8], sizes = [16, 8], strides = [1, 1]} : vector<16x16xf32> to vector<16x8xf32>
    %116 = arith.truncf %115 : vector<16x8xf32> to vector<16x8xbf16>
    %cst_51 = arith.constant dense<0.000000e+00> : vector<16x16xf32>
    %117 = tpu.matmul %112, %114, %cst_51 {dimension_numbers = #tpu.dot_dimension_numbers<[1], [1], [0], [0], [0, 0, 1, 0], [], []>} : vector<16x8xbf16>, vector<16x8xbf16>, vector<16x16xf32> -> vector<16x16xf32>
    %cst_52 = arith.constant -1.000000e+30 : f32
    %118 = vector.broadcast %cst_52 : f32 to vector<16x16xf32>
    %119 = arith.select %7, %117, %118 : vector<16x16xi1>, vector<16x16xf32>
    %cst_53 = arith.constant dense<0xFF800000> : vector<16xf32>
    %120 = vector.multi_reduction <maximumf>, %119, %cst_53 [1] : vector<16x16xf32> to vector<16xf32>
    %121 = vector.shape_cast %120 : vector<16xf32> to vector<16x1xf32>
    %122 = vector.broadcast %121 : vector<16x1xf32> to vector<16x16xf32>
    %123 = arith.subf %119, %122 : vector<16x16xf32>
    %124 = math.exp %123 : vector<16x16xf32>
    %cst_54 = arith.constant dense<0.000000e+00> : vector<16xf32>
    %125 = vector.multi_reduction <add>, %124, %cst_54 [1] : vector<16x16xf32> to vector<16xf32>
    %126 = vector.shape_cast %125 : vector<16xf32> to vector<16x1xf32>
    %127 = tpu.reciprocal %126 {approx = true} : vector<16x1xf32> -> vector<16x1xf32>
    %128 = vector.broadcast %127 : vector<16x1xf32> to vector<16x16xf32>
    %129 = arith.mulf %124, %128 : vector<16x16xf32>
    %130 = arith.truncf %129 : vector<16x16xf32> to vector<16x16xbf16>
    %cst_55 = arith.constant dense<0.000000e+00> : vector<16x8xf32>
    %131 = tpu.matmul %130, %116, %cst_55 {dimension_numbers = #tpu.dot_dimension_numbers<[1], [0], [0], [1], [0, 0, 1, 1], [], []>} : vector<16x16xbf16>, vector<16x8xbf16>, vector<16x8xf32> -> vector<16x8xf32>
    %132 = arith.truncf %131 : vector<16x8xf32> to vector<16x8xbf16>
    %c2_56 = arith.constant 2 : index
    %c0_57 = arith.constant 0 : index
    %c0_58 = arith.constant 0 : index
    %133 = vector.load %arg8[%c2_56, %c0_57, %c0_58] : memref<8x8x32xbf16, #tpu.memory_space<vmem>>, vector<1x8x32xbf16>
    %134 = vector.shape_cast %133 : vector<1x8x32xbf16> to vector<8x32xbf16>
    %cst_59 = arith.constant dense<0.000000e+00> : vector<16x32xf32>
    %135 = tpu.matmul %132, %134, %cst_59 {dimension_numbers = #tpu.dot_dimension_numbers<[1], [0], [0], [1], [0, 0, 1, 1], [], []>} : vector<16x8xbf16>, vector<8x32xbf16>, vector<16x32xf32> -> vector<16x32xf32>
    %136 = arith.addf %110, %135 : vector<16x32xf32>
    %137 = vector.extract_strided_slice %40 {offsets = [0, 24], sizes = [16, 8], strides = [1, 1]} : vector<16x32xf32> to vector<16x8xf32>
    %138 = arith.truncf %137 : vector<16x8xf32> to vector<16x8xbf16>
    %139 = vector.extract_strided_slice %53 {offsets = [0, 8], sizes = [16, 8], strides = [1, 1]} : vector<16x16xf32> to vector<16x8xf32>
    %140 = arith.truncf %139 : vector<16x8xf32> to vector<16x8xbf16>
    %141 = vector.extract_strided_slice %58 {offsets = [0, 8], sizes = [16, 8], strides = [1, 1]} : vector<16x16xf32> to vector<16x8xf32>
    %142 = arith.truncf %141 : vector<16x8xf32> to vector<16x8xbf16>
    %cst_60 = arith.constant dense<0.000000e+00> : vector<16x16xf32>
    %143 = tpu.matmul %138, %140, %cst_60 {dimension_numbers = #tpu.dot_dimension_numbers<[1], [1], [0], [0], [0, 0, 1, 0], [], []>} : vector<16x8xbf16>, vector<16x8xbf16>, vector<16x16xf32> -> vector<16x16xf32>
    %cst_61 = arith.constant -1.000000e+30 : f32
    %144 = vector.broadcast %cst_61 : f32 to vector<16x16xf32>
    %145 = arith.select %7, %143, %144 : vector<16x16xi1>, vector<16x16xf32>
    %cst_62 = arith.constant dense<0xFF800000> : vector<16xf32>
    %146 = vector.multi_reduction <maximumf>, %145, %cst_62 [1] : vector<16x16xf32> to vector<16xf32>
    %147 = vector.shape_cast %146 : vector<16xf32> to vector<16x1xf32>
    %148 = vector.broadcast %147 : vector<16x1xf32> to vector<16x16xf32>
    %149 = arith.subf %145, %148 : vector<16x16xf32>
    %150 = math.exp %149 : vector<16x16xf32>
    %cst_63 = arith.constant dense<0.000000e+00> : vector<16xf32>
    %151 = vector.multi_reduction <add>, %150, %cst_63 [1] : vector<16x16xf32> to vector<16xf32>
    %152 = vector.shape_cast %151 : vector<16xf32> to vector<16x1xf32>
    %153 = tpu.reciprocal %152 {approx = true} : vector<16x1xf32> -> vector<16x1xf32>
    %154 = vector.broadcast %153 : vector<16x1xf32> to vector<16x16xf32>
    %155 = arith.mulf %150, %154 : vector<16x16xf32>
    %156 = arith.truncf %155 : vector<16x16xf32> to vector<16x16xbf16>
    %cst_64 = arith.constant dense<0.000000e+00> : vector<16x8xf32>
    %157 = tpu.matmul %156, %142, %cst_64 {dimension_numbers = #tpu.dot_dimension_numbers<[1], [0], [0], [1], [0, 0, 1, 1], [], []>} : vector<16x16xbf16>, vector<16x8xbf16>, vector<16x8xf32> -> vector<16x8xf32>
    %158 = arith.truncf %157 : vector<16x8xf32> to vector<16x8xbf16>
    %c3_65 = arith.constant 3 : index
    %c0_66 = arith.constant 0 : index
    %c0_67 = arith.constant 0 : index
    %159 = vector.load %arg8[%c3_65, %c0_66, %c0_67] : memref<8x8x32xbf16, #tpu.memory_space<vmem>>, vector<1x8x32xbf16>
    %160 = vector.shape_cast %159 : vector<1x8x32xbf16> to vector<8x32xbf16>
    %cst_68 = arith.constant dense<0.000000e+00> : vector<16x32xf32>
    %161 = tpu.matmul %158, %160, %cst_68 {dimension_numbers = #tpu.dot_dimension_numbers<[1], [0], [0], [1], [0, 0, 1, 1], [], []>} : vector<16x8xbf16>, vector<8x32xbf16>, vector<16x32xf32> -> vector<16x32xf32>
    %162 = arith.addf %136, %161 : vector<16x32xf32>
    %163 = arith.mulf %162, %162 : vector<16x32xf32>
    %cst_69 = arith.constant dense<0.000000e+00> : vector<16xf32>
    %164 = vector.multi_reduction <add>, %163, %cst_69 [1] : vector<16x32xf32> to vector<16xf32>
    %165 = vector.shape_cast %164 : vector<16xf32> to vector<16x1xf32>
    %cst_70 = arith.constant 3.200000e+01 : f32
    %166 = vector.broadcast %cst_70 : f32 to vector<16x1xf32>
    %167 = arith.divf %165, %166 : vector<16x1xf32>
    %cst_71 = arith.constant 9.99999974E-6 : f32
    %168 = vector.broadcast %cst_71 : f32 to vector<16x1xf32>
    %169 = arith.addf %167, %168 : vector<16x1xf32>
    %170 = math.rsqrt %169 : vector<16x1xf32>
    %171 = vector.broadcast %170 : vector<16x1xf32> to vector<16x32xf32>
    %172 = arith.mulf %162, %171 : vector<16x32xf32>
    %173 = vector.broadcast %9 : vector<1x32xf32> to vector<16x32xf32>
    %174 = arith.mulf %172, %173 : vector<16x32xf32>
    %175 = arith.truncf %174 : vector<16x32xf32> to vector<16x32xbf16>
    %c0_72 = arith.constant 0 : index
    %c0_73 = arith.constant 0 : index
    %c0_74 = arith.constant 0 : index
    %176 = vector.load %arg9[%c0_72, %c0_73, %c0_74] : memref<2x32x64xbf16, #tpu.memory_space<vmem>>, vector<1x32x64xbf16>
    %177 = vector.shape_cast %176 : vector<1x32x64xbf16> to vector<32x64xbf16>
    %cst_75 = arith.constant dense<0.000000e+00> : vector<16x64xf32>
    %178 = tpu.matmul %175, %177, %cst_75 {dimension_numbers = #tpu.dot_dimension_numbers<[1], [0], [0], [1], [0, 0, 1, 1], [], []>} : vector<16x32xbf16>, vector<32x64xbf16>, vector<16x64xf32> -> vector<16x64xf32>
    %c0_76 = arith.constant 0 : index
    %c0_77 = arith.constant 0 : index
    %c0_78 = arith.constant 0 : index
    %179 = vector.load %arg10[%c0_76, %c0_77, %c0_78] : memref<2x32x64xbf16, #tpu.memory_space<vmem>>, vector<1x32x64xbf16>
    %180 = vector.shape_cast %179 : vector<1x32x64xbf16> to vector<32x64xbf16>
    %cst_79 = arith.constant dense<0.000000e+00> : vector<16x64xf32>
    %181 = tpu.matmul %175, %180, %cst_79 {dimension_numbers = #tpu.dot_dimension_numbers<[1], [0], [0], [1], [0, 0, 1, 1], [], []>} : vector<16x32xbf16>, vector<32x64xbf16>, vector<16x64xf32> -> vector<16x64xf32>
    %182 = arith.negf %178 : vector<16x64xf32>
    %183 = math.exp %182 : vector<16x64xf32>
    %cst_80 = arith.constant 1.000000e+00 : f32
    %184 = vector.broadcast %cst_80 : f32 to vector<16x64xf32>
    %185 = arith.addf %184, %183 : vector<16x64xf32>
    %186 = arith.divf %184, %185 : vector<16x64xf32>
    %187 = arith.mulf %178, %186 : vector<16x64xf32>
    %188 = arith.mulf %187, %181 : vector<16x64xf32>
    %189 = arith.truncf %188 : vector<16x64xf32> to vector<16x64xbf16>
    %c0_81 = arith.constant 0 : index
    %c0_82 = arith.constant 0 : index
    %c0_83 = arith.constant 0 : index
    %190 = vector.load %arg11[%c0_81, %c0_82, %c0_83] : memref<2x64x32xbf16, #tpu.memory_space<vmem>>, vector<1x64x32xbf16>
    %191 = vector.shape_cast %190 : vector<1x64x32xbf16> to vector<64x32xbf16>
    %cst_84 = arith.constant dense<0.000000e+00> : vector<16x32xf32>
    %192 = tpu.matmul %189, %191, %cst_84 {dimension_numbers = #tpu.dot_dimension_numbers<[1], [0], [0], [1], [0, 0, 1, 1], [], []>} : vector<16x64xbf16>, vector<64x32xbf16>, vector<16x32xf32> -> vector<16x32xf32>
    %193 = arith.addf %162, %192 : vector<16x32xf32>
    %c8 = arith.constant 8 : index
    %c0_85 = arith.constant 0 : index
    %194 = vector.load %arg2[%c8, %c0_85] : memref<16x128xf32, #tpu.memory_space<vmem>>, vector<1x32xf32>
    %c9 = arith.constant 9 : index
    %c0_86 = arith.constant 0 : index
    %195 = vector.load %arg2[%c9, %c0_86] : memref<16x128xf32, #tpu.memory_space<vmem>>, vector<1x32xf32>
    %c10 = arith.constant 10 : index
    %c0_87 = arith.constant 0 : index
    %196 = vector.load %arg2[%c10, %c0_87] : memref<16x128xf32, #tpu.memory_space<vmem>>, vector<1x32xf32>
    %c11 = arith.constant 11 : index
    %c0_88 = arith.constant 0 : index
    %197 = vector.load %arg2[%c11, %c0_88] : memref<16x128xf32, #tpu.memory_space<vmem>>, vector<1x32xf32>
    %c12 = arith.constant 12 : index
    %c0_89 = arith.constant 0 : index
    %198 = vector.load %arg2[%c12, %c0_89] : memref<16x128xf32, #tpu.memory_space<vmem>>, vector<1x16xf32>
    %c13 = arith.constant 13 : index
    %c0_90 = arith.constant 0 : index
    %199 = vector.load %arg2[%c13, %c0_90] : memref<16x128xf32, #tpu.memory_space<vmem>>, vector<1x16xf32>
    %c14 = arith.constant 14 : index
    %c0_91 = arith.constant 0 : index
    %200 = vector.load %arg2[%c14, %c0_91] : memref<16x128xf32, #tpu.memory_space<vmem>>, vector<1x16xf32>
    %201 = arith.mulf %193, %193 : vector<16x32xf32>
    %cst_92 = arith.constant dense<0.000000e+00> : vector<16xf32>
    %202 = vector.multi_reduction <add>, %201, %cst_92 [1] : vector<16x32xf32> to vector<16xf32>
    %203 = vector.shape_cast %202 : vector<16xf32> to vector<16x1xf32>
    %cst_93 = arith.constant 3.200000e+01 : f32
    %204 = vector.broadcast %cst_93 : f32 to vector<16x1xf32>
    %205 = arith.divf %203, %204 : vector<16x1xf32>
    %cst_94 = arith.constant 9.99999974E-6 : f32
    %206 = vector.broadcast %cst_94 : f32 to vector<16x1xf32>
    %207 = arith.addf %205, %206 : vector<16x1xf32>
    %208 = math.rsqrt %207 : vector<16x1xf32>
    %209 = vector.broadcast %208 : vector<16x1xf32> to vector<16x32xf32>
    %210 = arith.mulf %193, %209 : vector<16x32xf32>
    %211 = vector.broadcast %194 : vector<1x32xf32> to vector<16x32xf32>
    %212 = arith.mulf %210, %211 : vector<16x32xf32>
    %213 = arith.truncf %212 : vector<16x32xf32> to vector<16x32xbf16>
    %c1_95 = arith.constant 1 : index
    %c0_96 = arith.constant 0 : index
    %c0_97 = arith.constant 0 : index
    %214 = vector.load %arg3[%c1_95, %c0_96, %c0_97] : memref<2x32x32xbf16, #tpu.memory_space<vmem>>, vector<1x32x32xbf16>
    %215 = vector.shape_cast %214 : vector<1x32x32xbf16> to vector<32x32xbf16>
    %cst_98 = arith.constant dense<0.000000e+00> : vector<16x32xf32>
    %216 = tpu.matmul %213, %215, %cst_98 {dimension_numbers = #tpu.dot_dimension_numbers<[1], [0], [0], [1], [0, 0, 1, 1], [], []>} : vector<16x32xbf16>, vector<32x32xbf16>, vector<16x32xf32> -> vector<16x32xf32>
    %217 = vector.broadcast %196 : vector<1x32xf32> to vector<16x32xf32>
    %218 = arith.addf %216, %217 : vector<16x32xf32>
    %c1_99 = arith.constant 1 : index
    %c0_100 = arith.constant 0 : index
    %c0_101 = arith.constant 0 : index
    %219 = vector.load %arg4[%c1_99, %c0_100, %c0_101] : memref<2x32x32xbf16, #tpu.memory_space<vmem>>, vector<1x32x32xbf16>
    %220 = vector.shape_cast %219 : vector<1x32x32xbf16> to vector<32x32xbf16>
    %cst_102 = arith.constant dense<0.000000e+00> : vector<16x32xf32>
    %221 = tpu.matmul %213, %220, %cst_102 {dimension_numbers = #tpu.dot_dimension_numbers<[1], [0], [0], [1], [0, 0, 1, 1], [], []>} : vector<16x32xbf16>, vector<32x32xbf16>, vector<16x32xf32> -> vector<16x32xf32>
    %222 = vector.broadcast %197 : vector<1x32xf32> to vector<16x32xf32>
    %223 = arith.addf %221, %222 : vector<16x32xf32>
    %224 = arith.mulf %218, %1 : vector<16x32xf32>
    %225 = arith.mulf %223, %2 : vector<16x32xf32>
    %226 = arith.addf %224, %225 : vector<16x32xf32>
    %c1_103 = arith.constant 1 : index
    %c0_104 = arith.constant 0 : index
    %c0_105 = arith.constant 0 : index
    %227 = vector.load %arg5[%c1_103, %c0_104, %c0_105] : memref<2x32x16xbf16, #tpu.memory_space<vmem>>, vector<1x32x16xbf16>
    %228 = vector.shape_cast %227 : vector<1x32x16xbf16> to vector<32x16xbf16>
    %cst_106 = arith.constant dense<0.000000e+00> : vector<16x16xf32>
    %229 = tpu.matmul %213, %228, %cst_106 {dimension_numbers = #tpu.dot_dimension_numbers<[1], [0], [0], [1], [0, 0, 1, 1], [], []>} : vector<16x32xbf16>, vector<32x16xbf16>, vector<16x16xf32> -> vector<16x16xf32>
    %230 = vector.broadcast %198 : vector<1x16xf32> to vector<16x16xf32>
    %231 = arith.addf %229, %230 : vector<16x16xf32>
    %c1_107 = arith.constant 1 : index
    %c0_108 = arith.constant 0 : index
    %c0_109 = arith.constant 0 : index
    %232 = vector.load %arg6[%c1_107, %c0_108, %c0_109] : memref<2x32x16xbf16, #tpu.memory_space<vmem>>, vector<1x32x16xbf16>
    %233 = vector.shape_cast %232 : vector<1x32x16xbf16> to vector<32x16xbf16>
    %cst_110 = arith.constant dense<0.000000e+00> : vector<16x16xf32>
    %234 = tpu.matmul %213, %233, %cst_110 {dimension_numbers = #tpu.dot_dimension_numbers<[1], [0], [0], [1], [0, 0, 1, 1], [], []>} : vector<16x32xbf16>, vector<32x16xbf16>, vector<16x16xf32> -> vector<16x16xf32>
    %235 = vector.broadcast %199 : vector<1x16xf32> to vector<16x16xf32>
    %236 = arith.addf %234, %235 : vector<16x16xf32>
    %237 = arith.mulf %231, %3 : vector<16x16xf32>
    %238 = arith.mulf %236, %4 : vector<16x16xf32>
    %239 = arith.addf %237, %238 : vector<16x16xf32>
    %c1_111 = arith.constant 1 : index
    %c0_112 = arith.constant 0 : index
    %c0_113 = arith.constant 0 : index
    %240 = vector.load %arg7[%c1_111, %c0_112, %c0_113] : memref<2x32x16xbf16, #tpu.memory_space<vmem>>, vector<1x32x16xbf16>
    %241 = vector.shape_cast %240 : vector<1x32x16xbf16> to vector<32x16xbf16>
    %cst_114 = arith.constant dense<0.000000e+00> : vector<16x16xf32>
    %242 = tpu.matmul %213, %241, %cst_114 {dimension_numbers = #tpu.dot_dimension_numbers<[1], [0], [0], [1], [0, 0, 1, 1], [], []>} : vector<16x32xbf16>, vector<32x16xbf16>, vector<16x16xf32> -> vector<16x16xf32>
    %243 = vector.broadcast %200 : vector<1x16xf32> to vector<16x16xf32>
    %244 = arith.addf %242, %243 : vector<16x16xf32>
    %245 = vector.extract_strided_slice %226 {offsets = [0, 0], sizes = [16, 8], strides = [1, 1]} : vector<16x32xf32> to vector<16x8xf32>
    %246 = arith.truncf %245 : vector<16x8xf32> to vector<16x8xbf16>
    %247 = vector.extract_strided_slice %239 {offsets = [0, 0], sizes = [16, 8], strides = [1, 1]} : vector<16x16xf32> to vector<16x8xf32>
    %248 = arith.truncf %247 : vector<16x8xf32> to vector<16x8xbf16>
    %249 = vector.extract_strided_slice %244 {offsets = [0, 0], sizes = [16, 8], strides = [1, 1]} : vector<16x16xf32> to vector<16x8xf32>
    %250 = arith.truncf %249 : vector<16x8xf32> to vector<16x8xbf16>
    %cst_115 = arith.constant dense<0.000000e+00> : vector<16x16xf32>
    %251 = tpu.matmul %246, %248, %cst_115 {dimension_numbers = #tpu.dot_dimension_numbers<[1], [1], [0], [0], [0, 0, 1, 0], [], []>} : vector<16x8xbf16>, vector<16x8xbf16>, vector<16x16xf32> -> vector<16x16xf32>
    %cst_116 = arith.constant -1.000000e+30 : f32
    %252 = vector.broadcast %cst_116 : f32 to vector<16x16xf32>
    %253 = arith.select %7, %251, %252 : vector<16x16xi1>, vector<16x16xf32>
    %cst_117 = arith.constant dense<0xFF800000> : vector<16xf32>
    %254 = vector.multi_reduction <maximumf>, %253, %cst_117 [1] : vector<16x16xf32> to vector<16xf32>
    %255 = vector.shape_cast %254 : vector<16xf32> to vector<16x1xf32>
    %256 = vector.broadcast %255 : vector<16x1xf32> to vector<16x16xf32>
    %257 = arith.subf %253, %256 : vector<16x16xf32>
    %258 = math.exp %257 : vector<16x16xf32>
    %cst_118 = arith.constant dense<0.000000e+00> : vector<16xf32>
    %259 = vector.multi_reduction <add>, %258, %cst_118 [1] : vector<16x16xf32> to vector<16xf32>
    %260 = vector.shape_cast %259 : vector<16xf32> to vector<16x1xf32>
    %261 = tpu.reciprocal %260 {approx = true} : vector<16x1xf32> -> vector<16x1xf32>
    %262 = vector.broadcast %261 : vector<16x1xf32> to vector<16x16xf32>
    %263 = arith.mulf %258, %262 : vector<16x16xf32>
    %264 = arith.truncf %263 : vector<16x16xf32> to vector<16x16xbf16>
    %cst_119 = arith.constant dense<0.000000e+00> : vector<16x8xf32>
    %265 = tpu.matmul %264, %250, %cst_119 {dimension_numbers = #tpu.dot_dimension_numbers<[1], [0], [0], [1], [0, 0, 1, 1], [], []>} : vector<16x16xbf16>, vector<16x8xbf16>, vector<16x8xf32> -> vector<16x8xf32>
    %266 = arith.truncf %265 : vector<16x8xf32> to vector<16x8xbf16>
    %c4_120 = arith.constant 4 : index
    %c0_121 = arith.constant 0 : index
    %c0_122 = arith.constant 0 : index
    %267 = vector.load %arg8[%c4_120, %c0_121, %c0_122] : memref<8x8x32xbf16, #tpu.memory_space<vmem>>, vector<1x8x32xbf16>
    %268 = vector.shape_cast %267 : vector<1x8x32xbf16> to vector<8x32xbf16>
    %cst_123 = arith.constant dense<0.000000e+00> : vector<16x32xf32>
    %269 = tpu.matmul %266, %268, %cst_123 {dimension_numbers = #tpu.dot_dimension_numbers<[1], [0], [0], [1], [0, 0, 1, 1], [], []>} : vector<16x8xbf16>, vector<8x32xbf16>, vector<16x32xf32> -> vector<16x32xf32>
    %270 = arith.addf %193, %269 : vector<16x32xf32>
    %271 = vector.extract_strided_slice %226 {offsets = [0, 8], sizes = [16, 8], strides = [1, 1]} : vector<16x32xf32> to vector<16x8xf32>
    %272 = arith.truncf %271 : vector<16x8xf32> to vector<16x8xbf16>
    %273 = vector.extract_strided_slice %239 {offsets = [0, 0], sizes = [16, 8], strides = [1, 1]} : vector<16x16xf32> to vector<16x8xf32>
    %274 = arith.truncf %273 : vector<16x8xf32> to vector<16x8xbf16>
    %275 = vector.extract_strided_slice %244 {offsets = [0, 0], sizes = [16, 8], strides = [1, 1]} : vector<16x16xf32> to vector<16x8xf32>
    %276 = arith.truncf %275 : vector<16x8xf32> to vector<16x8xbf16>
    %cst_124 = arith.constant dense<0.000000e+00> : vector<16x16xf32>
    %277 = tpu.matmul %272, %274, %cst_124 {dimension_numbers = #tpu.dot_dimension_numbers<[1], [1], [0], [0], [0, 0, 1, 0], [], []>} : vector<16x8xbf16>, vector<16x8xbf16>, vector<16x16xf32> -> vector<16x16xf32>
    %cst_125 = arith.constant -1.000000e+30 : f32
    %278 = vector.broadcast %cst_125 : f32 to vector<16x16xf32>
    %279 = arith.select %7, %277, %278 : vector<16x16xi1>, vector<16x16xf32>
    %cst_126 = arith.constant dense<0xFF800000> : vector<16xf32>
    %280 = vector.multi_reduction <maximumf>, %279, %cst_126 [1] : vector<16x16xf32> to vector<16xf32>
    %281 = vector.shape_cast %280 : vector<16xf32> to vector<16x1xf32>
    %282 = vector.broadcast %281 : vector<16x1xf32> to vector<16x16xf32>
    %283 = arith.subf %279, %282 : vector<16x16xf32>
    %284 = math.exp %283 : vector<16x16xf32>
    %cst_127 = arith.constant dense<0.000000e+00> : vector<16xf32>
    %285 = vector.multi_reduction <add>, %284, %cst_127 [1] : vector<16x16xf32> to vector<16xf32>
    %286 = vector.shape_cast %285 : vector<16xf32> to vector<16x1xf32>
    %287 = tpu.reciprocal %286 {approx = true} : vector<16x1xf32> -> vector<16x1xf32>
    %288 = vector.broadcast %287 : vector<16x1xf32> to vector<16x16xf32>
    %289 = arith.mulf %284, %288 : vector<16x16xf32>
    %290 = arith.truncf %289 : vector<16x16xf32> to vector<16x16xbf16>
    %cst_128 = arith.constant dense<0.000000e+00> : vector<16x8xf32>
    %291 = tpu.matmul %290, %276, %cst_128 {dimension_numbers = #tpu.dot_dimension_numbers<[1], [0], [0], [1], [0, 0, 1, 1], [], []>} : vector<16x16xbf16>, vector<16x8xbf16>, vector<16x8xf32> -> vector<16x8xf32>
    %292 = arith.truncf %291 : vector<16x8xf32> to vector<16x8xbf16>
    %c5_129 = arith.constant 5 : index
    %c0_130 = arith.constant 0 : index
    %c0_131 = arith.constant 0 : index
    %293 = vector.load %arg8[%c5_129, %c0_130, %c0_131] : memref<8x8x32xbf16, #tpu.memory_space<vmem>>, vector<1x8x32xbf16>
    %294 = vector.shape_cast %293 : vector<1x8x32xbf16> to vector<8x32xbf16>
    %cst_132 = arith.constant dense<0.000000e+00> : vector<16x32xf32>
    %295 = tpu.matmul %292, %294, %cst_132 {dimension_numbers = #tpu.dot_dimension_numbers<[1], [0], [0], [1], [0, 0, 1, 1], [], []>} : vector<16x8xbf16>, vector<8x32xbf16>, vector<16x32xf32> -> vector<16x32xf32>
    %296 = arith.addf %270, %295 : vector<16x32xf32>
    %297 = vector.extract_strided_slice %226 {offsets = [0, 16], sizes = [16, 8], strides = [1, 1]} : vector<16x32xf32> to vector<16x8xf32>
    %298 = arith.truncf %297 : vector<16x8xf32> to vector<16x8xbf16>
    %299 = vector.extract_strided_slice %239 {offsets = [0, 8], sizes = [16, 8], strides = [1, 1]} : vector<16x16xf32> to vector<16x8xf32>
    %300 = arith.truncf %299 : vector<16x8xf32> to vector<16x8xbf16>
    %301 = vector.extract_strided_slice %244 {offsets = [0, 8], sizes = [16, 8], strides = [1, 1]} : vector<16x16xf32> to vector<16x8xf32>
    %302 = arith.truncf %301 : vector<16x8xf32> to vector<16x8xbf16>
    %cst_133 = arith.constant dense<0.000000e+00> : vector<16x16xf32>
    %303 = tpu.matmul %298, %300, %cst_133 {dimension_numbers = #tpu.dot_dimension_numbers<[1], [1], [0], [0], [0, 0, 1, 0], [], []>} : vector<16x8xbf16>, vector<16x8xbf16>, vector<16x16xf32> -> vector<16x16xf32>
    %cst_134 = arith.constant -1.000000e+30 : f32
    %304 = vector.broadcast %cst_134 : f32 to vector<16x16xf32>
    %305 = arith.select %7, %303, %304 : vector<16x16xi1>, vector<16x16xf32>
    %cst_135 = arith.constant dense<0xFF800000> : vector<16xf32>
    %306 = vector.multi_reduction <maximumf>, %305, %cst_135 [1] : vector<16x16xf32> to vector<16xf32>
    %307 = vector.shape_cast %306 : vector<16xf32> to vector<16x1xf32>
    %308 = vector.broadcast %307 : vector<16x1xf32> to vector<16x16xf32>
    %309 = arith.subf %305, %308 : vector<16x16xf32>
    %310 = math.exp %309 : vector<16x16xf32>
    %cst_136 = arith.constant dense<0.000000e+00> : vector<16xf32>
    %311 = vector.multi_reduction <add>, %310, %cst_136 [1] : vector<16x16xf32> to vector<16xf32>
    %312 = vector.shape_cast %311 : vector<16xf32> to vector<16x1xf32>
    %313 = tpu.reciprocal %312 {approx = true} : vector<16x1xf32> -> vector<16x1xf32>
    %314 = vector.broadcast %313 : vector<16x1xf32> to vector<16x16xf32>
    %315 = arith.mulf %310, %314 : vector<16x16xf32>
    %316 = arith.truncf %315 : vector<16x16xf32> to vector<16x16xbf16>
    %cst_137 = arith.constant dense<0.000000e+00> : vector<16x8xf32>
    %317 = tpu.matmul %316, %302, %cst_137 {dimension_numbers = #tpu.dot_dimension_numbers<[1], [0], [0], [1], [0, 0, 1, 1], [], []>} : vector<16x16xbf16>, vector<16x8xbf16>, vector<16x8xf32> -> vector<16x8xf32>
    %318 = arith.truncf %317 : vector<16x8xf32> to vector<16x8xbf16>
    %c6_138 = arith.constant 6 : index
    %c0_139 = arith.constant 0 : index
    %c0_140 = arith.constant 0 : index
    %319 = vector.load %arg8[%c6_138, %c0_139, %c0_140] : memref<8x8x32xbf16, #tpu.memory_space<vmem>>, vector<1x8x32xbf16>
    %320 = vector.shape_cast %319 : vector<1x8x32xbf16> to vector<8x32xbf16>
    %cst_141 = arith.constant dense<0.000000e+00> : vector<16x32xf32>
    %321 = tpu.matmul %318, %320, %cst_141 {dimension_numbers = #tpu.dot_dimension_numbers<[1], [0], [0], [1], [0, 0, 1, 1], [], []>} : vector<16x8xbf16>, vector<8x32xbf16>, vector<16x32xf32> -> vector<16x32xf32>
    %322 = arith.addf %296, %321 : vector<16x32xf32>
    %323 = vector.extract_strided_slice %226 {offsets = [0, 24], sizes = [16, 8], strides = [1, 1]} : vector<16x32xf32> to vector<16x8xf32>
    %324 = arith.truncf %323 : vector<16x8xf32> to vector<16x8xbf16>
    %325 = vector.extract_strided_slice %239 {offsets = [0, 8], sizes = [16, 8], strides = [1, 1]} : vector<16x16xf32> to vector<16x8xf32>
    %326 = arith.truncf %325 : vector<16x8xf32> to vector<16x8xbf16>
    %327 = vector.extract_strided_slice %244 {offsets = [0, 8], sizes = [16, 8], strides = [1, 1]} : vector<16x16xf32> to vector<16x8xf32>
    %328 = arith.truncf %327 : vector<16x8xf32> to vector<16x8xbf16>
    %cst_142 = arith.constant dense<0.000000e+00> : vector<16x16xf32>
    %329 = tpu.matmul %324, %326, %cst_142 {dimension_numbers = #tpu.dot_dimension_numbers<[1], [1], [0], [0], [0, 0, 1, 0], [], []>} : vector<16x8xbf16>, vector<16x8xbf16>, vector<16x16xf32> -> vector<16x16xf32>
    %cst_143 = arith.constant -1.000000e+30 : f32
    %330 = vector.broadcast %cst_143 : f32 to vector<16x16xf32>
    %331 = arith.select %7, %329, %330 : vector<16x16xi1>, vector<16x16xf32>
    %cst_144 = arith.constant dense<0xFF800000> : vector<16xf32>
    %332 = vector.multi_reduction <maximumf>, %331, %cst_144 [1] : vector<16x16xf32> to vector<16xf32>
    %333 = vector.shape_cast %332 : vector<16xf32> to vector<16x1xf32>
    %334 = vector.broadcast %333 : vector<16x1xf32> to vector<16x16xf32>
    %335 = arith.subf %331, %334 : vector<16x16xf32>
    %336 = math.exp %335 : vector<16x16xf32>
    %cst_145 = arith.constant dense<0.000000e+00> : vector<16xf32>
    %337 = vector.multi_reduction <add>, %336, %cst_145 [1] : vector<16x16xf32> to vector<16xf32>
    %338 = vector.shape_cast %337 : vector<16xf32> to vector<16x1xf32>
    %339 = tpu.reciprocal %338 {approx = true} : vector<16x1xf32> -> vector<16x1xf32>
    %340 = vector.broadcast %339 : vector<16x1xf32> to vector<16x16xf32>
    %341 = arith.mulf %336, %340 : vector<16x16xf32>
    %342 = arith.truncf %341 : vector<16x16xf32> to vector<16x16xbf16>
    %cst_146 = arith.constant dense<0.000000e+00> : vector<16x8xf32>
    %343 = tpu.matmul %342, %328, %cst_146 {dimension_numbers = #tpu.dot_dimension_numbers<[1], [0], [0], [1], [0, 0, 1, 1], [], []>} : vector<16x16xbf16>, vector<16x8xbf16>, vector<16x8xf32> -> vector<16x8xf32>
    %344 = arith.truncf %343 : vector<16x8xf32> to vector<16x8xbf16>
    %c7_147 = arith.constant 7 : index
    %c0_148 = arith.constant 0 : index
    %c0_149 = arith.constant 0 : index
    %345 = vector.load %arg8[%c7_147, %c0_148, %c0_149] : memref<8x8x32xbf16, #tpu.memory_space<vmem>>, vector<1x8x32xbf16>
    %346 = vector.shape_cast %345 : vector<1x8x32xbf16> to vector<8x32xbf16>
    %cst_150 = arith.constant dense<0.000000e+00> : vector<16x32xf32>
    %347 = tpu.matmul %344, %346, %cst_150 {dimension_numbers = #tpu.dot_dimension_numbers<[1], [0], [0], [1], [0, 0, 1, 1], [], []>} : vector<16x8xbf16>, vector<8x32xbf16>, vector<16x32xf32> -> vector<16x32xf32>
    %348 = arith.addf %322, %347 : vector<16x32xf32>
    %349 = arith.mulf %348, %348 : vector<16x32xf32>
    %cst_151 = arith.constant dense<0.000000e+00> : vector<16xf32>
    %350 = vector.multi_reduction <add>, %349, %cst_151 [1] : vector<16x32xf32> to vector<16xf32>
    %351 = vector.shape_cast %350 : vector<16xf32> to vector<16x1xf32>
    %cst_152 = arith.constant 3.200000e+01 : f32
    %352 = vector.broadcast %cst_152 : f32 to vector<16x1xf32>
    %353 = arith.divf %351, %352 : vector<16x1xf32>
    %cst_153 = arith.constant 9.99999974E-6 : f32
    %354 = vector.broadcast %cst_153 : f32 to vector<16x1xf32>
    %355 = arith.addf %353, %354 : vector<16x1xf32>
    %356 = math.rsqrt %355 : vector<16x1xf32>
    %357 = vector.broadcast %356 : vector<16x1xf32> to vector<16x32xf32>
    %358 = arith.mulf %348, %357 : vector<16x32xf32>
    %359 = vector.broadcast %195 : vector<1x32xf32> to vector<16x32xf32>
    %360 = arith.mulf %358, %359 : vector<16x32xf32>
    %361 = arith.truncf %360 : vector<16x32xf32> to vector<16x32xbf16>
    %c1_154 = arith.constant 1 : index
    %c0_155 = arith.constant 0 : index
    %c0_156 = arith.constant 0 : index
    %362 = vector.load %arg9[%c1_154, %c0_155, %c0_156] : memref<2x32x64xbf16, #tpu.memory_space<vmem>>, vector<1x32x64xbf16>
    %363 = vector.shape_cast %362 : vector<1x32x64xbf16> to vector<32x64xbf16>
    %cst_157 = arith.constant dense<0.000000e+00> : vector<16x64xf32>
    %364 = tpu.matmul %361, %363, %cst_157 {dimension_numbers = #tpu.dot_dimension_numbers<[1], [0], [0], [1], [0, 0, 1, 1], [], []>} : vector<16x32xbf16>, vector<32x64xbf16>, vector<16x64xf32> -> vector<16x64xf32>
    %c1_158 = arith.constant 1 : index
    %c0_159 = arith.constant 0 : index
    %c0_160 = arith.constant 0 : index
    %365 = vector.load %arg10[%c1_158, %c0_159, %c0_160] : memref<2x32x64xbf16, #tpu.memory_space<vmem>>, vector<1x32x64xbf16>
    %366 = vector.shape_cast %365 : vector<1x32x64xbf16> to vector<32x64xbf16>
    %cst_161 = arith.constant dense<0.000000e+00> : vector<16x64xf32>
    %367 = tpu.matmul %361, %366, %cst_161 {dimension_numbers = #tpu.dot_dimension_numbers<[1], [0], [0], [1], [0, 0, 1, 1], [], []>} : vector<16x32xbf16>, vector<32x64xbf16>, vector<16x64xf32> -> vector<16x64xf32>
    %368 = arith.negf %364 : vector<16x64xf32>
    %369 = math.exp %368 : vector<16x64xf32>
    %cst_162 = arith.constant 1.000000e+00 : f32
    %370 = vector.broadcast %cst_162 : f32 to vector<16x64xf32>
    %371 = arith.addf %370, %369 : vector<16x64xf32>
    %372 = arith.divf %370, %371 : vector<16x64xf32>
    %373 = arith.mulf %364, %372 : vector<16x64xf32>
    %374 = arith.mulf %373, %367 : vector<16x64xf32>
    %375 = arith.truncf %374 : vector<16x64xf32> to vector<16x64xbf16>
    %c1_163 = arith.constant 1 : index
    %c0_164 = arith.constant 0 : index
    %c0_165 = arith.constant 0 : index
    %376 = vector.load %arg11[%c1_163, %c0_164, %c0_165] : memref<2x64x32xbf16, #tpu.memory_space<vmem>>, vector<1x64x32xbf16>
    %377 = vector.shape_cast %376 : vector<1x64x32xbf16> to vector<64x32xbf16>
    %cst_166 = arith.constant dense<0.000000e+00> : vector<16x32xf32>
    %378 = tpu.matmul %375, %377, %cst_166 {dimension_numbers = #tpu.dot_dimension_numbers<[1], [0], [0], [1], [0, 0, 1, 1], [], []>} : vector<16x64xbf16>, vector<64x32xbf16>, vector<16x32xf32> -> vector<16x32xf32>
    %379 = arith.addf %348, %378 : vector<16x32xf32>
    %c0_167 = arith.constant 0 : index
    %c0_168 = arith.constant 0 : index
    %380 = vector.load %arg2[%c0_167, %c0_168] : memref<16x128xf32, #tpu.memory_space<vmem>>, vector<1x32xf32>
    %381 = arith.mulf %379, %379 : vector<16x32xf32>
    %cst_169 = arith.constant dense<0.000000e+00> : vector<16xf32>
    %382 = vector.multi_reduction <add>, %381, %cst_169 [1] : vector<16x32xf32> to vector<16xf32>
    %383 = vector.shape_cast %382 : vector<16xf32> to vector<16x1xf32>
    %cst_170 = arith.constant 3.200000e+01 : f32
    %384 = vector.broadcast %cst_170 : f32 to vector<16x1xf32>
    %385 = arith.divf %383, %384 : vector<16x1xf32>
    %cst_171 = arith.constant 9.99999974E-6 : f32
    %386 = vector.broadcast %cst_171 : f32 to vector<16x1xf32>
    %387 = arith.addf %385, %386 : vector<16x1xf32>
    %388 = math.rsqrt %387 : vector<16x1xf32>
    %389 = vector.broadcast %388 : vector<16x1xf32> to vector<16x32xf32>
    %390 = arith.mulf %379, %389 : vector<16x32xf32>
    %391 = vector.broadcast %380 : vector<1x32xf32> to vector<16x32xf32>
    %392 = arith.mulf %390, %391 : vector<16x32xf32>
    %cst_172 = arith.constant 0.000000e+00 : f32
    %393 = vector.broadcast %cst_172 : f32 to vector<16x96xf32>
    %394 = tpu.concatenate %392, %393 in 1 : vector<16x32xf32>, vector<16x96xf32> -> vector<16x128xf32>
    %c0_173 = arith.constant 0 : index
    %c0_174 = arith.constant 0 : index
    %395 = vector.load %arg12[%c0_173, %c0_174] : memref<16x128xf32, #tpu.memory_space<vmem>>, vector<16x128xf32>
    tpu.vector_store %arg12[%c0_173, %c0_174], %394 {strides = array<i32>} : memref<16x128xf32, #tpu.memory_space<vmem>>, vector<16x128xf32>,
    return
  }
}

</mosaic_0001>

<llo_original>
// kernel: glm_transformer.1
$region0: #{glm_transformer.1}
  #allocation0 [shape = 'u32[]', space=smem, size = 0x4, offset = 0x4, fixed_abs, tag = 'smem constant byte address 0x4 - core index']
  #allocation1 [shape = 'u32[144,128]{1,0:T(1,128)}', space=vmem, size = 0x12000, scoped, tag = 'internal scratch']
  %s0 = inlined_call_operand.vmem [shape: f32[16,32], index: 0, kind: input, shape index: {}]
  %s1 = inlined_call_operand.vmem [shape: f32[16,64], index: 1, kind: input, shape index: {}]
  %s2 = inlined_call_operand.vmem [shape: f32[16,128], index: 2, kind: input, shape index: {}]
  %s3 = inlined_call_operand.vmem [shape: bf16[2,32,32], index: 3, kind: input, shape index: {}]
  %s4 = inlined_call_operand.vmem [shape: bf16[2,32,32], index: 4, kind: input, shape index: {}]
  %s5 = inlined_call_operand.vmem [shape: bf16[2,32,16], index: 5, kind: input, shape index: {}]
  %s6 = inlined_call_operand.vmem [shape: bf16[2,32,16], index: 6, kind: input, shape index: {}]
  %s7 = inlined_call_operand.vmem [shape: bf16[2,32,16], index: 7, kind: input, shape index: {}]
  %s8 = inlined_call_operand.vmem [shape: bf16[8,8,32], index: 8, kind: input, shape index: {}]
  %s9 = inlined_call_operand.vmem [shape: bf16[2,32,64], index: 9, kind: input, shape index: {}]
  %s10 = inlined_call_operand.vmem [shape: bf16[2,32,64], index: 10, kind: input, shape index: {}]
  %s11 = inlined_call_operand.vmem [shape: bf16[2,64,32], index: 11, kind: input, shape index: {}]
  %s12 = inlined_call_operand.hbm [shape: f32[16,128], index: 12, kind: output, shape index: {}]
  %s13 = sld [smem:[#allocation0]]
  $region58: #{glm_transformer.1} parent=0
    _
  %s15 = ssub.s32 1, %s13
  %s16 = scalar_select 0, %s15, %s13
  $region1: #{glm_transformer.1} parent=0
    #allocation2 [shape = 'u8[8192]{0}', space=vmem, size = 0x2000, scoped, tag = 'output window, operand 0, single buffered']
    #allocation3 [shape = 's32[1]{0}', space=sflag, size = 0x4, scoped, tag = 'scoped memory for glm_transformer.1']
    %17 = vsyncpa [#allocation3], 0
    // Predicated region
    $region2: #{glm_transformer.1} parent=1 // pred_check
      _
    $region3: #{glm_transformer.1} parent=1 // pred_check_branch
      %19 = sbr.rel (0) target = $region5
    $region4: #{glm_transformer.1} parent=1 // pred_region
      _
    $region5: #{glm_transformer.1} parent=1 // pred_fallthru
      _
    // Predicated region
    $region6: #{glm_transformer.1} parent=1 // pred_check
      _
    $region7: #{glm_transformer.1} parent=1 // pred_check_branch
      %21 = sbr.rel (0) target = $region9
    $region8: #{glm_transformer.1} parent=1 // pred_region
      _
    $region9: #{glm_transformer.1} parent=1 // pred_fallthru
      _
    // Predicated region
    $region10: #{glm_transformer.1} parent=1 // pred_check
      _
    $region11: #{glm_transformer.1} parent=1 // pred_check_branch
      %23 = sbr.rel (0) target = $region13
    $region12: #{glm_transformer.1} parent=1 // pred_region
      _
    $region13: #{glm_transformer.1} parent=1 // pred_fallthru
      _
    // Predicated region
    $region14: #{glm_transformer.1} parent=1 // pred_check
      _
    $region15: #{glm_transformer.1} parent=1 // pred_check_branch
      %25 = sbr.rel (0) target = $region17
    $region16: #{glm_transformer.1} parent=1 // pred_region
      _
    $region17: #{glm_transformer.1} parent=1 // pred_fallthru
      _
    // Predicated region
    $region18: #{glm_transformer.1} parent=1 // pred_check
      _
    $region19: #{glm_transformer.1} parent=1 // pred_check_branch
      %27 = sbr.rel (0) target = $region21
    $region20: #{glm_transformer.1} parent=1 // pred_region
      _
    $region21: #{glm_transformer.1} parent=1 // pred_fallthru
      _
    // Predicated region
    $region22: #{glm_transformer.1} parent=1 // pred_check
      _
    $region23: #{glm_transformer.1} parent=1 // pred_check_branch
      %29 = sbr.rel (0) target = $region25
    $region24: #{glm_transformer.1} parent=1 // pred_region
      _
    $region25: #{glm_transformer.1} parent=1 // pred_fallthru
      _
    // Predicated region
    $region26: #{glm_transformer.1} parent=1 // pred_check
      _
    $region27: #{glm_transformer.1} parent=1 // pred_check_branch
      %31 = sbr.rel (0) target = $region29
    $region28: #{glm_transformer.1} parent=1 // pred_region
      _
    $region29: #{glm_transformer.1} parent=1 // pred_fallthru
      _
    // Predicated region
    $region30: #{glm_transformer.1} parent=1 // pred_check
      _
    $region31: #{glm_transformer.1} parent=1 // pred_check_branch
      %33 = sbr.rel (0) target = $region33
    $region32: #{glm_transformer.1} parent=1 // pred_region
      _
    $region33: #{glm_transformer.1} parent=1 // pred_fallthru
      _
    // Predicated region
    $region34: #{glm_transformer.1} parent=1 // pred_check
      _
    $region35: #{glm_transformer.1} parent=1 // pred_check_branch
      %35 = sbr.rel (0) target = $region37
    $region36: #{glm_transformer.1} parent=1 // pred_region
      _
    $region37: #{glm_transformer.1} parent=1 // pred_fallthru
      _
    // Predicated region
    $region38: #{glm_transformer.1} parent=1 // pred_check
      _
    $region39: #{glm_transformer.1} parent=1 // pred_check_branch
      %37 = sbr.rel (0) target = $region41
    $region40: #{glm_transformer.1} parent=1 // pred_region
      _
    $region41: #{glm_transformer.1} parent=1 // pred_fallthru
      _
    // Predicated region
    $region42: #{glm_transformer.1} parent=1 // pred_check
      _
    $region43: #{glm_transformer.1} parent=1 // pred_check_branch
      %39 = sbr.rel (0) target = $region45
    $region44: #{glm_transformer.1} parent=1 // pred_region
      _
    $region45: #{glm_transformer.1} parent=1 // pred_fallthru
      _
    // Predicated region
    $region46: #{glm_transformer.1} parent=1 // pred_check
      _
    $region47: #{glm_transformer.1} parent=1 // pred_check_branch
      %41 = sbr.rel (0) target = $region49
    $region48: #{glm_transformer.1} parent=1 // pred_region
      _
    $region49: #{glm_transformer.1} parent=1 // pred_fallthru
      _
    %v43 = vld [vmem:[%s0] sm:$0xff]
    %v44 = vld [vmem:[%s0 + $0x8] sm:$0xff]
    %v45 = vld [vmem:[%s1] sm:$0xff]
    %v46 = vld [vmem:[%s1 + $0x8] sm:$0xff]
    %v47 = vlaneseq
    %v48 = vshrl.u32 %v47, 7
    %v49 = vadd.s32 %v48, 8
    %v50 = vlaneseq
    %v51 = vand.u32 %v50, 127
    %vm52 = vcmp.le.s32.totalorder %v51, %v48
    %vm53 = vcmp.le.s32.totalorder %v51, %v49
    %v54 = vld [vmem:[%s2 + $0x1] sm:$0x1]
    %v55 = vld [vmem:[%s2 + $0x2] sm:$0x1]
    %v56 = vld [vmem:[%s2 + $0x3] sm:$0x1]
    %v57 = vld [vmem:[%s2 + $0x4] sm:$0x1]
    %v58 = vld [vmem:[%s2 + $0x5] sm:$0x1]
    %v59 = vld [vmem:[%s2 + $0x6] sm:$0x1]
    %v60 = vld [vmem:[%s2 + $0x7] sm:$0x1]
    %v61 = vmul.f32 %v43, %v43
    %v62 = vmul.f32 %v44, %v44
    %vm63 = vcmask 261120
    %v64 = vsel %vm63, %v61, 0.0
    %65 = vadd.xlane.f32.xlu0 %v64
    %v66 = vpop.xlane.xlu0 %65
    %v67 = vsel %vm63, %v62, 0.0
    %68 = vadd.xlane.f32.xlu0 %v67
    %v69 = vpop.xlane.xlu0 %68
    %v70 = vrcp.pop 32.0
    %v71 = vmul.f32 %v66, %v70
    %v72 = vmul.f32 %v69, %v70
    %v73 = vadd.f32 %v71, 1e-05
    %v74 = vadd.f32 %v72, 1e-05
    %v75 = vrsqrt.pop %v73
    %v76 = vrsqrt.pop %v74
    %v77 = vmul.f32 %v43, %v75
    %v78 = vmul.f32 %v44, %v76
    %v79 = vlaneseq
    %v80 = vshrl.u32 %v79, 7
    %v81 = vsub.s32 0, %v80
    %v82 = vrot.slane %v54, %v81
    %v83 = vmul.f32 %v77, %v82
    %v84 = vmul.f32 %v78, %v82
    %v85 = vpack.c.bf16 %v84, %v83
    %v86 = vld [vmem:[%s3] sm:$0xf]
    %v87 = vld [vmem:[%s3 + $0x4] sm:$0xf]
    %v88 = vld [vmem:[%s3 + $0x8] sm:$0xf]
    %v89 = vld [vmem:[%s3 + $0xc] sm:$0xf]
    %v90 = vlaneseq
    %v91 = vshrl.u32 %v90, 7
    %v92 = vsub.s32 0, %v91
    %v93 = vrot.slane %v56, %v92
    %v98 = vunpack.c.l.b16 %v86
    %v99 = vunpack.c.l.b16 %v87
    %v100 = vunpack.c.l.b16 %v88
    %v101 = vunpack.c.l.b16 %v89
    %v102 = vpack.c.b16 %v99, %v98
    %v103 = vpack.c.b16 %v101, %v100
    %v107 = vsel %vm63, %v85, 0
    %109 = vmatprep.subr.bf16.mxu0 0
    %110 = vmatpush1.bf16.msra.mxu0 %v102
    %111 = vmatprep.subr.bf16.mxu0 0
    %112 = vmatpush1.bf16.msra.mxu0 %v103
    %113 = vmatprep.subr.bf16.mxu0 0
    %114 = vmatpush1.bf16.msra.mxu0 0
    %115 = vmatprep.subr.bf16.mxu0 0
    %116 = vmatpush1.bf16.msra.mxu0 0
    %117 = vmatprep.subr.bf16.mxu0 0
    %118 = vmatpush1.bf16.msra.mxu0 0
    %119 = vmatprep.subr.bf16.mxu0 0
    %120 = vmatpush1.bf16.msra.mxu0 0
    %121 = vmatprep.subr.bf16.mxu0 0
    %122 = vmatpush1.bf16.msra.mxu0 0
    %123 = vmatprep.subr.bf16.mxu0 0
    %124 = vmatpush1.bf16.msra.mxu0 0
    %125 = vmatprep.subr.bf16.mxu0 0
    %126 = vmatpush1.bf16.msra.mxu0 0
    %127 = vmatprep.subr.bf16.mxu0 0
    %128 = vmatpush1.bf16.msra.mxu0 0
    %129 = vmatprep.subr.bf16.mxu0 0
    %130 = vmatpush1.bf16.msra.mxu0 0
    %131 = vmatprep.subr.bf16.mxu0 0
    %132 = vmatpush1.bf16.msra.mxu0 0
    %133 = vmatprep.subr.bf16.mxu0 0
    %134 = vmatpush1.bf16.msra.mxu0 0
    %135 = vmatprep.subr.bf16.mxu0 0
    %136 = vmatpush1.bf16.msra.mxu0 0
    %137 = vmatprep.subr.bf16.mxu0 0
    %138 = vmatpush1.bf16.msra.mxu0 0
    %139 = vmatprep.subr.bf16.mxu0 0
    %140 = vmatpush1.bf16.msra.mxu0 0
    %141 = vmatprep.mubr.bf16.mxu0 0
    %142 = vmatmul.mubr.bf16.gmra.mrb[0].mxu0 %v107
    %v143 = vpop.f32.mrb[0].mxu0
    %v144 = vadd.f32 %v93, %v143
    %v145 = vpop.f32.mrb[0].mxu0
    %v146 = vpop.f32.mrb[0].mxu0
    %v147 = vadd.f32 %v93, %v146
    %v148 = vpop.f32.mrb[0].mxu0
    %149 = vdwg.mxu0
    %v150 = vld [vmem:[%s4] sm:$0xf]
    %v151 = vld [vmem:[%s4 + $0x4] sm:$0xf]
    %v152 = vld [vmem:[%s4 + $0x8] sm:$0xf]
    %v153 = vld [vmem:[%s4 + $0xc] sm:$0xf]
    %v154 = vlaneseq
    %v155 = vshrl.u32 %v154, 7
    %v156 = vsub.s32 0, %v155
    %v157 = vrot.slane %v57, %v156
    %v162 = vunpack.c.l.b16 %v150
    %v163 = vunpack.c.l.b16 %v151
    %v164 = vunpack.c.l.b16 %v152
    %v165 = vunpack.c.l.b16 %v153
    %v166 = vpack.c.b16 %v163, %v162
    %v167 = vpack.c.b16 %v165, %v164
    %170 = vmatprep.subr.bf16.mxu0 0
    %171 = vmatpush1.bf16.msra.mxu0 %v166
    %172 = vmatprep.subr.bf16.mxu0 0
    %173 = vmatpush1.bf16.msra.mxu0 %v167
    %174 = vmatprep.subr.bf16.mxu0 0
    %175 = vmatpush1.bf16.msra.mxu0 0
    %176 = vmatprep.subr.bf16.mxu0 0
    %177 = vmatpush1.bf16.msra.mxu0 0
    %178 = vmatprep.subr.bf16.mxu0 0
    %179 = vmatpush1.bf16.msra.mxu0 0
    %180 = vmatprep.subr.bf16.mxu0 0
    %181 = vmatpush1.bf16.msra.mxu0 0
    %182 = vmatprep.subr.bf16.mxu0 0
    %183 = vmatpush1.bf16.msra.mxu0 0
    %184 = vmatprep.subr.bf16.mxu0 0
    %185 = vmatpush1.bf16.msra.mxu0 0
    %186 = vmatprep.subr.bf16.mxu0 0
    %187 = vmatpush1.bf16.msra.mxu0 0
    %188 = vmatprep.subr.bf16.mxu0 0
    %189 = vmatpush1.bf16.msra.mxu0 0
    %190 = vmatprep.subr.bf16.mxu0 0
    %191 = vmatpush1.bf16.msra.mxu0 0
    %192 = vmatprep.subr.bf16.mxu0 0
    %193 = vmatpush1.bf16.msra.mxu0 0
    %194 = vmatprep.subr.bf16.mxu0 0
    %195 = vmatpush1.bf16.msra.mxu0 0
    %196 = vmatprep.subr.bf16.mxu0 0
    %197 = vmatpush1.bf16.msra.mxu0 0
    %198 = vmatprep.subr.bf16.mxu0 0
    %199 = vmatpush1.bf16.msra.mxu0 0
    %200 = vmatprep.subr.bf16.mxu0 0
    %201 = vmatpush1.bf16.msra.mxu0 0
    %202 = vmatprep.mubr.bf16.mxu0 0
    %203 = vmatmul.mubr.bf16.gmra.mrb[0].mxu0 %v107
    %v204 = vpop.f32.mrb[0].mxu0
    %v205 = vadd.f32 %v157, %v204
    %v206 = vpop.f32.mrb[0].mxu0
    %v207 = vpop.f32.mrb[0].mxu0
    %v208 = vadd.f32 %v157, %v207
    %v209 = vpop.f32.mrb[0].mxu0
    %210 = vdwg.mxu0
    %v211 = vmul.f32 %v144, %v45
    %v212 = vmul.f32 %v147, %v46
    %215 = vrot.lane.b32.xlu0 %v45, 96
    %v216 = vpop.permute.xlu0 %215
    %217 = vrot.lane.b32.xlu0 %v46, 96
    %v218 = vpop.permute.xlu0 %217
    %v221 = vmul.f32 %v205, %v216
    %v222 = vmul.f32 %v208, %v218
    %v223 = vadd.f32 %v211, %v221
    %v224 = vadd.f32 %v212, %v222
    %v225 = vld [vmem:[%s5] sm:$0xf]
    %v226 = vld [vmem:[%s5 + $0x4] sm:$0xf]
    %v227 = vld [vmem:[%s5 + $0x8] sm:$0xf]
    %v228 = vld [vmem:[%s5 + $0xc] sm:$0xf]
    %v229 = vlaneseq
    %v230 = vshrl.u32 %v229, 7
    %v231 = vsub.s32 0, %v230
    %v232 = vrot.slane %v58, %v231
    %v237 = vunpack.c.l.b16 %v225
    %v238 = vunpack.c.l.b16 %v226
    %v239 = vunpack.c.l.b16 %v227
    %v240 = vunpack.c.l.b16 %v228
    %v241 = vpack.c.b16 %v238, %v237
    %v242 = vpack.c.b16 %v240, %v239
    %245 = vmatprep.subr.bf16.mxu0 0
    %246 = vmatpush1.bf16.msra.mxu0 %v241
    %247 = vmatprep.subr.bf16.mxu0 0
    %248 = vmatpush1.bf16.msra.mxu0 %v242
    %249 = vmatprep.subr.bf16.mxu0 0
    %250 = vmatpush1.bf16.msra.mxu0 0
    %251 = vmatprep.subr.bf16.mxu0 0
    %252 = vmatpush1.bf16.msra.mxu0 0
    %253 = vmatprep.subr.bf16.mxu0 0
    %254 = vmatpush1.bf16.msra.mxu0 0
    %255 = vmatprep.subr.bf16.mxu0 0
    %256 = vmatpush1.bf16.msra.mxu0 0
    %257 = vmatprep.subr.bf16.mxu0 0
    %258 = vmatpush1.bf16.msra.mxu0 0
    %259 = vmatprep.subr.bf16.mxu0 0
    %260 = vmatpush1.bf16.msra.mxu0 0
    %261 = vmatprep.subr.bf16.mxu0 0
    %262 = vmatpush1.bf16.msra.mxu0 0
    %263 = vmatprep.subr.bf16.mxu0 0
    %264 = vmatpush1.bf16.msra.mxu0 0
    %265 = vmatprep.subr.bf16.mxu0 0
    %266 = vmatpush1.bf16.msra.mxu0 0
    %267 = vmatprep.subr.bf16.mxu0 0
    %268 = vmatpush1.bf16.msra.mxu0 0
    %269 = vmatprep.subr.bf16.mxu0 0
    %270 = vmatpush1.bf16.msra.mxu0 0
    %271 = vmatprep.subr.bf16.mxu0 0
    %272 = vmatpush1.bf16.msra.mxu0 0
    %273 = vmatprep.subr.bf16.mxu0 0
    %274 = vmatpush1.bf16.msra.mxu0 0
    %275 = vmatprep.subr.bf16.mxu0 0
    %276 = vmatpush1.bf16.msra.mxu0 0
    %277 = vmatprep.mubr.bf16.mxu0 0
    %278 = vmatmul.mubr.bf16.gmra.mrb[0].mxu0 %v107
    %v279 = vpop.f32.mrb[0].mxu0
    %v280 = vadd.f32 %v232, %v279
    %v281 = vpop.f32.mrb[0].mxu0
    %v282 = vpop.f32.mrb[0].mxu0
    %v283 = vadd.f32 %v232, %v282
    %v284 = vpop.f32.mrb[0].mxu0
    %285 = vdwg.mxu0
    %v286 = vld [vmem:[%s6] sm:$0xf]
    %v287 = vld [vmem:[%s6 + $0x4] sm:$0xf]
    %v288 = vld [vmem:[%s6 + $0x8] sm:$0xf]
    %v289 = vld [vmem:[%s6 + $0xc] sm:$0xf]
    %v290 = vlaneseq
    %v291 = vshrl.u32 %v290, 7
    %v292 = vsub.s32 0, %v291
    %v293 = vrot.slane %v59, %v292
    %v298 = vunpack.c.l.b16 %v286
    %v299 = vunpack.c.l.b16 %v287
    %v300 = vunpack.c.l.b16 %v288
    %v301 = vunpack.c.l.b16 %v289
    %v302 = vpack.c.b16 %v299, %v298
    %v303 = vpack.c.b16 %v301, %v300
    %306 = vmatprep.subr.bf16.mxu0 0
    %307 = vmatpush1.bf16.msra.mxu0 %v302
    %308 = vmatprep.subr.bf16.mxu0 0
    %309 = vmatpush1.bf16.msra.mxu0 %v303
    %310 = vmatprep.subr.bf16.mxu0 0
    %311 = vmatpush1.bf16.msra.mxu0 0
    %312 = vmatprep.subr.bf16.mxu0 0
    %313 = vmatpush1.bf16.msra.mxu0 0
    %314 = vmatprep.subr.bf16.mxu0 0
    %315 = vmatpush1.bf16.msra.mxu0 0
    %316 = vmatprep.subr.bf16.mxu0 0
    %317 = vmatpush1.bf16.msra.mxu0 0
    %318 = vmatprep.subr.bf16.mxu0 0
    %319 = vmatpush1.bf16.msra.mxu0 0
    %320 = vmatprep.subr.bf16.mxu0 0
    %321 = vmatpush1.bf16.msra.mxu0 0
    %322 = vmatprep.subr.bf16.mxu0 0
    %323 = vmatpush1.bf16.msra.mxu0 0
    %324 = vmatprep.subr.bf16.mxu0 0
    %325 = vmatpush1.bf16.msra.mxu0 0
    %326 = vmatprep.subr.bf16.mxu0 0
    %327 = vmatpush1.bf16.msra.mxu0 0
    %328 = vmatprep.subr.bf16.mxu0 0
    %329 = vmatpush1.bf16.msra.mxu0 0
    %330 = vmatprep.subr.bf16.mxu0 0
    %331 = vmatpush1.bf16.msra.mxu0 0
    %332 = vmatprep.subr.bf16.mxu0 0
    %333 = vmatpush1.bf16.msra.mxu0 0
    %334 = vmatprep.subr.bf16.mxu0 0
    %335 = vmatpush1.bf16.msra.mxu0 0
    %336 = vmatprep.subr.bf16.mxu0 0
    %337 = vmatpush1.bf16.msra.mxu0 0
    %338 = vmatprep.mubr.bf16.mxu0 0
    %339 = vmatmul.mubr.bf16.gmra.mrb[0].mxu0 %v107
    %v340 = vpop.f32.mrb[0].mxu0
    %v341 = vadd.f32 %v293, %v340
    %v342 = vpop.f32.mrb[0].mxu0
    %v343 = vpop.f32.mrb[0].mxu0
    %v344 = vadd.f32 %v293, %v343
    %v345 = vpop.f32.mrb[0].mxu0
    %346 = vdwg.mxu0
    %v347 = vmul.f32 %v280, %v45
    %v348 = vmul.f32 %v283, %v46
    %v349 = vmul.f32 %v341, %v216
    %v350 = vmul.f32 %v344, %v218
    %v351 = vadd.f32 %v347, %v349
    %v352 = vadd.f32 %v348, %v350
    %v353 = vld [vmem:[%s7] sm:$0xf]
    %v354 = vld [vmem:[%s7 + $0x4] sm:$0xf]
    %v355 = vld [vmem:[%s7 + $0x8] sm:$0xf]
    %v356 = vld [vmem:[%s7 + $0xc] sm:$0xf]
    %v357 = vlaneseq
    %v358 = vshrl.u32 %v357, 7
    %v359 = vsub.s32 0, %v358
    %v360 = vrot.slane %v60, %v359
    %v365 = vunpack.c.l.b16 %v353
    %v366 = vunpack.c.l.b16 %v354
    %v367 = vunpack.c.l.b16 %v355
    %v368 = vunpack.c.l.b16 %v356
    %v369 = vpack.c.b16 %v366, %v365
    %v370 = vpack.c.b16 %v368, %v367
    %373 = vmatprep.subr.bf16.mxu0 0
    %374 = vmatpush1.bf16.msra.mxu0 %v369
    %375 = vmatprep.subr.bf16.mxu0 0
    %376 = vmatpush1.bf16.msra.mxu0 %v370
    %377 = vmatprep.subr.bf16.mxu0 0
    %378 = vmatpush1.bf16.msra.mxu0 0
    %379 = vmatprep.subr.bf16.mxu0 0
    %380 = vmatpush1.bf16.msra.mxu0 0
    %381 = vmatprep.subr.bf16.mxu0 0
    %382 = vmatpush1.bf16.msra.mxu0 0
    %383 = vmatprep.subr.bf16.mxu0 0
    %384 = vmatpush1.bf16.msra.mxu0 0
    %385 = vmatprep.subr.bf16.mxu0 0
    %386 = vmatpush1.bf16.msra.mxu0 0
    %387 = vmatprep.subr.bf16.mxu0 0
    %388 = vmatpush1.bf16.msra.mxu0 0
    %389 = vmatprep.subr.bf16.mxu0 0
    %390 = vmatpush1.bf16.msra.mxu0 0
    %391 = vmatprep.subr.bf16.mxu0 0
    %392 = vmatpush1.bf16.msra.mxu0 0
    %393 = vmatprep.subr.bf16.mxu0 0
    %394 = vmatpush1.bf16.msra.mxu0 0
    %395 = vmatprep.subr.bf16.mxu0 0
    %396 = vmatpush1.bf16.msra.mxu0 0
    %397 = vmatprep.subr.bf16.mxu0 0
    %398 = vmatpush1.bf16.msra.mxu0 0
    %399 = vmatprep.subr.bf16.mxu0 0
    %400 = vmatpush1.bf16.msra.mxu0 0
    %401 = vmatprep.subr.bf16.mxu0 0
    %402 = vmatpush1.bf16.msra.mxu0 0
    %403 = vmatprep.subr.bf16.mxu0 0
    %404 = vmatpush1.bf16.msra.mxu0 0
    %405 = vmatprep.mubr.bf16.mxu0 0
    %406 = vmatmul.mubr.bf16.gmra.mrb[0].mxu0 %v107
    %v407 = vpop.f32.mrb[0].mxu0
    %v408 = vadd.f32 %v360, %v407
    %v409 = vpop.f32.mrb[0].mxu0
    %v410 = vpop.f32.mrb[0].mxu0
    %v411 = vadd.f32 %v360, %v410
    %v412 = vpop.f32.mrb[0].mxu0
    %413 = vdwg.mxu0
    %v414 = vpack.c.bf16 %v224, %v223
    %v415 = vpack.c.bf16 %v352, %v351
    %v416 = vpack.c.bf16 %v411, %v408
    %vm417 = vcmask 64512
    %v419 = vsel %vm417, %v414, 0
    %v422 = vsel %vm417, %v415, 0
    %424 = vmatprep.subr.bf16.mxu0 0
    %425 = vmatpush1.bf16.xpose.msra.mxu0 %v422
    %426 = vmatprep.subr.bf16.mxu0 0
    %427 = vmatpush1.bf16.xpose.msra.mxu0 0
    %428 = vmatprep.subr.bf16.mxu0 0
    %429 = vmatpush1.bf16.xpose.msra.mxu0 0
    %430 = vmatprep.subr.bf16.mxu0 0
    %431 = vmatpush1.bf16.xpose.msra.mxu0 0
    %432 = vmatprep.subr.bf16.mxu0 0
    %433 = vmatpush1.bf16.xpose.msra.mxu0 0
    %434 = vmatprep.subr.bf16.mxu0 0
    %435 = vmatpush1.bf16.xpose.msra.mxu0 0
    %436 = vmatprep.subr.bf16.mxu0 0
    %437 = vmatpush1.bf16.xpose.msra.mxu0 0
    %438 = vmatprep.subr.bf16.mxu0 0
    %439 = vmatpush1.bf16.xpose.msra.mxu0 0
    %440 = vmatprep.subr.bf16.mxu0 0
    %441 = vmatpush1.bf16.xpose.msra.mxu0 0
    %442 = vmatprep.subr.bf16.mxu0 0
    %443 = vmatpush1.bf16.xpose.msra.mxu0 0
    %444 = vmatprep.subr.bf16.mxu0 0
    %445 = vmatpush1.bf16.xpose.msra.mxu0 0
    %446 = vmatprep.subr.bf16.mxu0 0
    %447 = vmatpush1.bf16.xpose.msra.mxu0 0
    %448 = vmatprep.subr.bf16.mxu0 0
    %449 = vmatpush1.bf16.xpose.msra.mxu0 0
    %450 = vmatprep.subr.bf16.mxu0 0
    %451 = vmatpush1.bf16.xpose.msra.mxu0 0
    %452 = vmatprep.subr.bf16.mxu0 0
    %453 = vmatpush1.bf16.xpose.msra.mxu0 0
    %454 = vmatprep.subr.bf16.mxu0 0
    %455 = vmatpush1.bf16.xpose.msra.mxu0 0
    %456 = vmatprep.mubr.bf16.mxu0 0
    %457 = vmatmul.mubr.bf16.gmra.mrb[0].mxu0 %v419
    %v458 = vpop.f32.mrb[0].mxu0
    %v459 = vadd.f32 0.0, %v458
    %v460 = vpop.f32.mrb[0].mxu0
    %v461 = vpop.f32.mrb[0].mxu0
    %v462 = vadd.f32 0.0, %v461
    %v463 = vpop.f32.mrb[0].mxu0
    %464 = vdwg.mxu0
    %v465 = vsel %vm52, %v459, -1e+30
    %v466 = vsel %vm53, %v462, -1e+30
    %vm467 = vcmask 130048
    %v468 = vsel %vm467, %v465, -inf
    %469 = vmax.xlane.f32.xlu0 %v468
    %v470 = vpop.xlane.xlu0 %469
    %v471 = vsel %vm467, %v466, -inf
    %472 = vmax.xlane.f32.xlu0 %v471
    %v473 = vpop.xlane.xlu0 %472
    %v474 = vsub.f32 %v465, %v470
    %v475 = vsub.f32 %v466, %v473
    %v476 = vmul.f32 %v474, 1.442695
    %v477 = vpow.pop %v476
    %v478 = vmul.f32 %v475, 1.442695
    %v479 = vpow.pop %v478
    %v480 = vsel %vm467, %v477, 0.0
    %481 = vadd.xlane.f32.xlu0 %v480
    %v482 = vpop.xlane.xlu0 %481
    %v483 = vsel %vm467, %v479, 0.0
    %484 = vadd.xlane.f32.xlu0 %v483
    %v485 = vpop.xlane.xlu0 %484
    %v486 = vrcp.pop %v482
    %v487 = vrcp.pop %v485
    %v488 = vmul.f32 %v477, %v486
    %v489 = vmul.f32 %v479, %v487
    %v490 = vpack.c.bf16 %v489, %v488
    %v492 = vsel %vm467, %v490, 0
    %494 = vmatprep.subr.bf16.mxu0 0
    %495 = vmatpush1.bf16.msra.mxu0 %v416
    %496 = vmatprep.subr.bf16.mxu0 0
    %497 = vmatpush1.bf16.msra.mxu0 0
    %498 = vmatprep.subr.bf16.mxu0 0
    %499 = vmatpush1.bf16.msra.mxu0 0
    %500 = vmatprep.subr.bf16.mxu0 0
    %501 = vmatpush1.bf16.msra.mxu0 0
    %502 = vmatprep.subr.bf16.mxu0 0
    %503 = vmatpush1.bf16.msra.mxu0 0
    %504 = vmatprep.subr.bf16.mxu0 0
    %505 = vmatpush1.bf16.msra.mxu0 0
    %506 = vmatprep.subr.bf16.mxu0 0
    %507 = vmatpush1.bf16.msra.mxu0 0
    %508 = vmatprep.subr.bf16.mxu0 0
    %509 = vmatpush1.bf16.msra.mxu0 0
    %510 = vmatprep.subr.bf16.mxu0 0
    %511 = vmatpush1.bf16.msra.mxu0 0
    %512 = vmatprep.subr.bf16.mxu0 0
    %513 = vmatpush1.bf16.msra.mxu0 0
    %514 = vmatprep.subr.bf16.mxu0 0
    %515 = vmatpush1.bf16.msra.mxu0 0
    %516 = vmatprep.subr.bf16.mxu0 0
    %517 = vmatpush1.bf16.msra.mxu0 0
    %518 = vmatprep.subr.bf16.mxu0 0
    %519 = vmatpush1.bf16.msra.mxu0 0
    %520 = vmatprep.subr.bf16.mxu0 0
    %521 = vmatpush1.bf16.msra.mxu0 0
    %522 = vmatprep.subr.bf16.mxu0 0
    %523 = vmatpush1.bf16.msra.mxu0 0
    %524 = vmatprep.subr.bf16.mxu0 0
    %525 = vmatpush1.bf16.msra.mxu0 0
    %526 = vmatprep.mubr.bf16.mxu0 0
    %527 = vmatmul.mubr.bf16.gmra.mrb[0].mxu0 %v492
    %v528 = vpop.f32.mrb[0].mxu0
    %v529 = vadd.f32 0.0, %v528
    %v530 = vpop.f32.mrb[0].mxu0
    %v531 = vpop.f32.mrb[0].mxu0
    %v532 = vadd.f32 0.0, %v531
    %v533 = vpop.f32.mrb[0].mxu0
    %534 = vdwg.mxu0
    %v535 = vpack.c.bf16 %v532, %v529
    %v536 = vld [vmem:[%s8] sm:$0xf]
    %v538 = vsel %vm417, %v535, 0
    %vm540 = vcmask 1043456
    %v542 = vsel %vm540, %v536, 0
    %544 = vmatprep.subr.bf16.mxu0 0
    %545 = vmatpush1.bf16.msra.mxu0 %v542
    %546 = vmatprep.subr.bf16.mxu0 0
    %547 = vmatpush1.bf16.msra.mxu0 0
    %548 = vmatprep.subr.bf16.mxu0 0
    %549 = vmatpush1.bf16.msra.mxu0 0
    %550 = vmatprep.subr.bf16.mxu0 0
    %551 = vmatpush1.bf16.msra.mxu0 0
    %552 = vmatprep.subr.bf16.mxu0 0
    %553 = vmatpush1.bf16.msra.mxu0 0
    %554 = vmatprep.subr.bf16.mxu0 0
    %555 = vmatpush1.bf16.msra.mxu0 0
    %556 = vmatprep.subr.bf16.mxu0 0
    %557 = vmatpush1.bf16.msra.mxu0 0
    %558 = vmatprep.subr.bf16.mxu0 0
    %559 = vmatpush1.bf16.msra.mxu0 0
    %560 = vmatprep.subr.bf16.mxu0 0
    %561 = vmatpush1.bf16.msra.mxu0 0
    %562 = vmatprep.subr.bf16.mxu0 0
    %563 = vmatpush1.bf16.msra.mxu0 0
    %564 = vmatprep.subr.bf16.mxu0 0
    %565 = vmatpush1.bf16.msra.mxu0 0
    %566 = vmatprep.subr.bf16.mxu0 0
    %567 = vmatpush1.bf16.msra.mxu0 0
    %568 = vmatprep.subr.bf16.mxu0 0
    %569 = vmatpush1.bf16.msra.mxu0 0
    %570 = vmatprep.subr.bf16.mxu0 0
    %571 = vmatpush1.bf16.msra.mxu0 0
    %572 = vmatprep.subr.bf16.mxu0 0
    %573 = vmatpush1.bf16.msra.mxu0 0
    %574 = vmatprep.subr.bf16.mxu0 0
    %575 = vmatpush1.bf16.msra.mxu0 0
    %576 = vmatprep.mubr.bf16.mxu0 0
    %577 = vmatmul.mubr.bf16.gmra.mrb[0].mxu0 %v538
    %v578 = vpop.f32.mrb[0].mxu0
    %v579 = vadd.f32 0.0, %v578
    %v580 = vpop.f32.mrb[0].mxu0
    %v581 = vpop.f32.mrb[0].mxu0
    %v582 = vadd.f32 0.0, %v581
    %v583 = vpop.f32.mrb[0].mxu0
    %584 = vdwg.mxu0
    %v585 = vadd.f32 %v43, %v579
    %v586 = vadd.f32 %v44, %v582
    %588 = vrot.lane.b32.xlu0 %v414, 120
    %v589 = vpop.permute.xlu0 %588
    %v591 = vsel %vm417, %v589, 0
    %593 = vmatprep.subr.bf16.mxu0 0
    %594 = vmatpush1.bf16.xpose.msra.mxu0 %v422
    %595 = vmatprep.subr.bf16.mxu0 0
    %596 = vmatpush1.bf16.xpose.msra.mxu0 0
    %597 = vmatprep.subr.bf16.mxu0 0
    %598 = vmatpush1.bf16.xpose.msra.mxu0 0
    %599 = vmatprep.subr.bf16.mxu0 0
    %600 = vmatpush1.bf16.xpose.msra.mxu0 0
    %601 = vmatprep.subr.bf16.mxu0 0
    %602 = vmatpush1.bf16.xpose.msra.mxu0 0
    %603 = vmatprep.subr.bf16.mxu0 0
    %604 = vmatpush1.bf16.xpose.msra.mxu0 0
    %605 = vmatprep.subr.bf16.mxu0 0
    %606 = vmatpush1.bf16.xpose.msra.mxu0 0
    %607 = vmatprep.subr.bf16.mxu0 0
    %608 = vmatpush1.bf16.xpose.msra.mxu0 0
    %609 = vmatprep.subr.bf16.mxu0 0
    %610 = vmatpush1.bf16.xpose.msra.mxu0 0
    %611 = vmatprep.subr.bf16.mxu0 0
    %612 = vmatpush1.bf16.xpose.msra.mxu0 0
    %613 = vmatprep.subr.bf16.mxu0 0
    %614 = vmatpush1.bf16.xpose.msra.mxu0 0
    %615 = vmatprep.subr.bf16.mxu0 0
    %616 = vmatpush1.bf16.xpose.msra.mxu0 0
    %617 = vmatprep.subr.bf16.mxu0 0
    %618 = vmatpush1.bf16.xpose.msra.mxu0 0
    %619 = vmatprep.subr.bf16.mxu0 0
    %620 = vmatpush1.bf16.xpose.msra.mxu0 0
    %621 = vmatprep.subr.bf16.mxu0 0
    %622 = vmatpush1.bf16.xpose.msra.mxu0 0
    %623 = vmatprep.subr.bf16.mxu0 0
    %624 = vmatpush1.bf16.xpose.msra.mxu0 0
    %625 = vmatprep.mubr.bf16.mxu0 0
    %626 = vmatmul.mubr.bf16.gmra.mrb[0].mxu0 %v591
    %v627 = vpop.f32.mrb[0].mxu0
    %v628 = vadd.f32 0.0, %v627
    %v629 = vpop.f32.mrb[0].mxu0
    %v630 = vpop.f32.mrb[0].mxu0
    %v631 = vadd.f32 0.0, %v630
    %v632 = vpop.f32.mrb[0].mxu0
    %633 = vdwg.mxu0
    %v634 = vsel %vm52, %v628, -1e+30
    %v635 = vsel %vm53, %v631, -1e+30
    %v636 = vsel %vm467, %v634, -inf
    %637 = vmax.xlane.f32.xlu0 %v636
    %v638 = vpop.xlane.xlu0 %637
    %v639 = vsel %vm467, %v635, -inf
    %640 = vmax.xlane.f32.xlu0 %v639
    %v641 = vpop.xlane.xlu0 %640
    %v642 = vsub.f32 %v634, %v638
    %v643 = vsub.f32 %v635, %v641
    %v644 = vmul.f32 %v642, 1.442695
    %v645 = vpow.pop %v644
    %v646 = vmul.f32 %v643, 1.442695
    %v647 = vpow.pop %v646
    %v648 = vsel %vm467, %v645, 0.0
    %649 = vadd.xlane.f32.xlu0 %v648
    %v650 = vpop.xlane.xlu0 %649
    %v651 = vsel %vm467, %v647, 0.0
    %652 = vadd.xlane.f32.xlu0 %v651
    %v653 = vpop.xlane.xlu0 %652
    %v654 = vrcp.pop %v650
    %v655 = vrcp.pop %v653
    %v656 = vmul.f32 %v645, %v654
    %v657 = vmul.f32 %v647, %v655
    %v658 = vpack.c.bf16 %v657, %v656
    %v660 = vsel %vm467, %v658, 0
    %662 = vmatprep.subr.bf16.mxu0 0
    %663 = vmatpush1.bf16.msra.mxu0 %v416
    %664 = vmatprep.subr.bf16.mxu0 0
    %665 = vmatpush1.bf16.msra.mxu0 0
    %666 = vmatprep.subr.bf16.mxu0 0
    %667 = vmatpush1.bf16.msra.mxu0 0
    %668 = vmatprep.subr.bf16.mxu0 0
    %669 = vmatpush1.bf16.msra.mxu0 0
    %670 = vmatprep.subr.bf16.mxu0 0
    %671 = vmatpush1.bf16.msra.mxu0 0
    %672 = vmatprep.subr.bf16.mxu0 0
    %673 = vmatpush1.bf16.msra.mxu0 0
    %674 = vmatprep.subr.bf16.mxu0 0
    %675 = vmatpush1.bf16.msra.mxu0 0
    %676 = vmatprep.subr.bf16.mxu0 0
    %677 = vmatpush1.bf16.msra.mxu0 0
    %678 = vmatprep.subr.bf16.mxu0 0
    %679 = vmatpush1.bf16.msra.mxu0 0
    %680 = vmatprep.subr.bf16.mxu0 0
    %681 = vmatpush1.bf16.msra.mxu0 0
    %682 = vmatprep.subr.bf16.mxu0 0
    %683 = vmatpush1.bf16.msra.mxu0 0
    %684 = vmatprep.subr.bf16.mxu0 0
    %685 = vmatpush1.bf16.msra.mxu0 0
    %686 = vmatprep.subr.bf16.mxu0 0
    %687 = vmatpush1.bf16.msra.mxu0 0
    %688 = vmatprep.subr.bf16.mxu0 0
    %689 = vmatpush1.bf16.msra.mxu0 0
    %690 = vmatprep.subr.bf16.mxu0 0
    %691 = vmatpush1.bf16.msra.mxu0 0
    %692 = vmatprep.subr.bf16.mxu0 0
    %693 = vmatpush1.bf16.msra.mxu0 0
    %694 = vmatprep.mubr.bf16.mxu0 0
    %695 = vmatmul.mubr.bf16.gmra.mrb[0].mxu0 %v660
    %v696 = vpop.f32.mrb[0].mxu0
    %v697 = vadd.f32 0.0, %v696
    %v698 = vpop.f32.mrb[0].mxu0
    %v699 = vpop.f32.mrb[0].mxu0
    %v700 = vadd.f32 0.0, %v699
    %v701 = vpop.f32.mrb[0].mxu0
    %702 = vdwg.mxu0
    %v703 = vpack.c.bf16 %v700, %v697
    %s704 = scalar_lea.vmem %s8, 4
    %v705 = vld [vmem:[%s704] sm:$0xf]
    %v707 = vsel %vm417, %v703, 0
    %v710 = vsel %vm540, %v705, 0
    %712 = vmatprep.subr.bf16.mxu0 0
    %713 = vmatpush1.bf16.msra.mxu0 %v710
    %714 = vmatprep.subr.bf16.mxu0 0
    %715 = vmatpush1.bf16.msra.mxu0 0
    %716 = vmatprep.subr.bf16.mxu0 0
    %717 = vmatpush1.bf16.msra.mxu0 0
    %718 = vmatprep.subr.bf16.mxu0 0
    %719 = vmatpush1.bf16.msra.mxu0 0
    %720 = vmatprep.subr.bf16.mxu0 0
    %721 = vmatpush1.bf16.msra.mxu0 0
    %722 = vmatprep.subr.bf16.mxu0 0
    %723 = vmatpush1.bf16.msra.mxu0 0
    %724 = vmatprep.subr.bf16.mxu0 0
    %725 = vmatpush1.bf16.msra.mxu0 0
    %726 = vmatprep.subr.bf16.mxu0 0
    %727 = vmatpush1.bf16.msra.mxu0 0
    %728 = vmatprep.subr.bf16.mxu0 0
    %729 = vmatpush1.bf16.msra.mxu0 0
    %730 = vmatprep.subr.bf16.mxu0 0
    %731 = vmatpush1.bf16.msra.mxu0 0
    %732 = vmatprep.subr.bf16.mxu0 0
    %733 = vmatpush1.bf16.msra.mxu0 0
    %734 = vmatprep.subr.bf16.mxu0 0
    %735 = vmatpush1.bf16.msra.mxu0 0
    %736 = vmatprep.subr.bf16.mxu0 0
    %737 = vmatpush1.bf16.msra.mxu0 0
    %738 = vmatprep.subr.bf16.mxu0 0
    %739 = vmatpush1.bf16.msra.mxu0 0
    %740 = vmatprep.subr.bf16.mxu0 0
    %741 = vmatpush1.bf16.msra.mxu0 0
    %742 = vmatprep.subr.bf16.mxu0 0
    %743 = vmatpush1.bf16.msra.mxu0 0
    %744 = vmatprep.mubr.bf16.mxu0 0
    %745 = vmatmul.mubr.bf16.gmra.mrb[0].mxu0 %v707
    %v746 = vpop.f32.mrb[0].mxu0
    %v747 = vadd.f32 0.0, %v746
    %v748 = vpop.f32.mrb[0].mxu0
    %v749 = vpop.f32.mrb[0].mxu0
    %v750 = vadd.f32 0.0, %v749
    %v751 = vpop.f32.mrb[0].mxu0
    %752 = vdwg.mxu0
    %v753 = vadd.f32 %v585, %v747
    %v754 = vadd.f32 %v586, %v750
    %755 = vrot.lane.b32.xlu0 %v414, 112
    %v756 = vpop.permute.xlu0 %755
    %758 = vrot.lane.b32.xlu0 %v415, 120
    %v759 = vpop.permute.xlu0 %758
    %v761 = vsel %vm417, %v756, 0
    %v764 = vsel %vm417, %v759, 0
    %766 = vmatprep.subr.bf16.mxu0 0
    %767 = vmatpush1.bf16.xpose.msra.mxu0 %v764
    %768 = vmatprep.subr.bf16.mxu0 0
    %769 = vmatpush1.bf16.xpose.msra.mxu0 0
    %770 = vmatprep.subr.bf16.mxu0 0
    %771 = vmatpush1.bf16.xpose.msra.mxu0 0
    %772 = vmatprep.subr.bf16.mxu0 0
    %773 = vmatpush1.bf16.xpose.msra.mxu0 0
    %774 = vmatprep.subr.bf16.mxu0 0
    %775 = vmatpush1.bf16.xpose.msra.mxu0 0
    %776 = vmatprep.subr.bf16.mxu0 0
    %777 = vmatpush1.bf16.xpose.msra.mxu0 0
    %778 = vmatprep.subr.bf16.mxu0 0
    %779 = vmatpush1.bf16.xpose.msra.mxu0 0
    %780 = vmatprep.subr.bf16.mxu0 0
    %781 = vmatpush1.bf16.xpose.msra.mxu0 0
    %782 = vmatprep.subr.bf16.mxu0 0
    %783 = vmatpush1.bf16.xpose.msra.mxu0 0
    %784 = vmatprep.subr.bf16.mxu0 0
    %785 = vmatpush1.bf16.xpose.msra.mxu0 0
    %786 = vmatprep.subr.bf16.mxu0 0
    %787 = vmatpush1.bf16.xpose.msra.mxu0 0
    %788 = vmatprep.subr.bf16.mxu0 0
    %789 = vmatpush1.bf16.xpose.msra.mxu0 0
    %790 = vmatprep.subr.bf16.mxu0 0
    %791 = vmatpush1.bf16.xpose.msra.mxu0 0
    %792 = vmatprep.subr.bf16.mxu0 0
    %793 = vmatpush1.bf16.xpose.msra.mxu0 0
    %794 = vmatprep.subr.bf16.mxu0 0
    %795 = vmatpush1.bf16.xpose.msra.mxu0 0
    %796 = vmatprep.subr.bf16.mxu0 0
    %797 = vmatpush1.bf16.xpose.msra.mxu0 0
    %798 = vmatprep.mubr.bf16.mxu0 0
    %799 = vmatmul.mubr.bf16.gmra.mrb[0].mxu0 %v761
    %v800 = vpop.f32.mrb[0].mxu0
    %v801 = vadd.f32 0.0, %v800
    %v802 = vpop.f32.mrb[0].mxu0
    %v803 = vpop.f32.mrb[0].mxu0
    %v804 = vadd.f32 0.0, %v803
    %v805 = vpop.f32.mrb[0].mxu0
    %806 = vdwg.mxu0
    %v807 = vsel %vm52, %v801, -1e+30
    %v808 = vsel %vm53, %v804, -1e+30
    %v809 = vsel %vm467, %v807, -inf
    %810 = vmax.xlane.f32.xlu0 %v809
    %v811 = vpop.xlane.xlu0 %810
    %v812 = vsel %vm467, %v808, -inf
    %813 = vmax.xlane.f32.xlu0 %v812
    %v814 = vpop.xlane.xlu0 %813
    %v815 = vsub.f32 %v807, %v811
    %v816 = vsub.f32 %v808, %v814
    %v817 = vmul.f32 %v815, 1.442695
    %v818 = vpow.pop %v817
    %v819 = vmul.f32 %v816, 1.442695
    %v820 = vpow.pop %v819
    %v821 = vsel %vm467, %v818, 0.0
    %822 = vadd.xlane.f32.xlu0 %v821
    %v823 = vpop.xlane.xlu0 %822
    %v824 = vsel %vm467, %v820, 0.0
    %825 = vadd.xlane.f32.xlu0 %v824
    %v826 = vpop.xlane.xlu0 %825
    %v827 = vrcp.pop %v823
    %v828 = vrcp.pop %v826
    %v829 = vmul.f32 %v818, %v827
    %v830 = vmul.f32 %v820, %v828
    %v831 = vpack.c.bf16 %v830, %v829
    %833 = vrot.lane.b32.xlu0 %v416, 120
    %v834 = vpop.permute.xlu0 %833
    %v837 = vsel %vm467, %v831, 0
    %839 = vmatprep.subr.bf16.mxu0 0
    %840 = vmatpush1.bf16.msra.mxu0 %v834
    %841 = vmatprep.subr.bf16.mxu0 0
    %842 = vmatpush1.bf16.msra.mxu0 0
    %843 = vmatprep.subr.bf16.mxu0 0
    %844 = vmatpush1.bf16.msra.mxu0 0
    %845 = vmatprep.subr.bf16.mxu0 0
    %846 = vmatpush1.bf16.msra.mxu0 0
    %847 = vmatprep.subr.bf16.mxu0 0
    %848 = vmatpush1.bf16.msra.mxu0 0
    %849 = vmatprep.subr.bf16.mxu0 0
    %850 = vmatpush1.bf16.msra.mxu0 0
    %851 = vmatprep.subr.bf16.mxu0 0
    %852 = vmatpush1.bf16.msra.mxu0 0
    %853 = vmatprep.subr.bf16.mxu0 0
    %854 = vmatpush1.bf16.msra.mxu0 0
    %855 = vmatprep.subr.bf16.mxu0 0
    %856 = vmatpush1.bf16.msra.mxu0 0
    %857 = vmatprep.subr.bf16.mxu0 0
    %858 = vmatpush1.bf16.msra.mxu0 0
    %859 = vmatprep.subr.bf16.mxu0 0
    %860 = vmatpush1.bf16.msra.mxu0 0
    %861 = vmatprep.subr.bf16.mxu0 0
    %862 = vmatpush1.bf16.msra.mxu0 0
    %863 = vmatprep.subr.bf16.mxu0 0
    %864 = vmatpush1.bf16.msra.mxu0 0
    %865 = vmatprep.subr.bf16.mxu0 0
    %866 = vmatpush1.bf16.msra.mxu0 0
    %867 = vmatprep.subr.bf16.mxu0 0
    %868 = vmatpush1.bf16.msra.mxu0 0
    %869 = vmatprep.subr.bf16.mxu0 0
    %870 = vmatpush1.bf16.msra.mxu0 0
    %871 = vmatprep.mubr.bf16.mxu0 0
    %872 = vmatmul.mubr.bf16.gmra.mrb[0].mxu0 %v837
    %v873 = vpop.f32.mrb[0].mxu0
    %v874 = vadd.f32 0.0, %v873
    %v875 = vpop.f32.mrb[0].mxu0
    %v876 = vpop.f32.mrb[0].mxu0
    %v877 = vadd.f32 0.0, %v876
    %v878 = vpop.f32.mrb[0].mxu0
    %879 = vdwg.mxu0
    %v880 = vpack.c.bf16 %v877, %v874
    %s881 = scalar_lea.vmem %s8, 8
    %v882 = vld [vmem:[%s881] sm:$0xf]
    %v884 = vsel %vm417, %v880, 0
    %v887 = vsel %vm540, %v882, 0
    %889 = vmatprep.subr.bf16.mxu0 0
    %890 = vmatpush1.bf16.msra.mxu0 %v887
    %891 = vmatprep.subr.bf16.mxu0 0
    %892 = vmatpush1.bf16.msra.mxu0 0
    %893 = vmatprep.subr.bf16.mxu0 0
    %894 = vmatpush1.bf16.msra.mxu0 0
    %895 = vmatprep.subr.bf16.mxu0 0
    %896 = vmatpush1.bf16.msra.mxu0 0
    %897 = vmatprep.subr.bf16.mxu0 0
    %898 = vmatpush1.bf16.msra.mxu0 0
    %899 = vmatprep.subr.bf16.mxu0 0
    %900 = vmatpush1.bf16.msra.mxu0 0
    %901 = vmatprep.subr.bf16.mxu0 0
    %902 = vmatpush1.bf16.msra.mxu0 0
    %903 = vmatprep.subr.bf16.mxu0 0
    %904 = vmatpush1.bf16.msra.mxu0 0
    %905 = vmatprep.subr.bf16.mxu0 0
    %906 = vmatpush1.bf16.msra.mxu0 0
    %907 = vmatprep.subr.bf16.mxu0 0
    %908 = vmatpush1.bf16.msra.mxu0 0
    %909 = vmatprep.subr.bf16.mxu0 0
    %910 = vmatpush1.bf16.msra.mxu0 0
    %911 = vmatprep.subr.bf16.mxu0 0
    %912 = vmatpush1.bf16.msra.mxu0 0
    %913 = vmatprep.subr.bf16.mxu0 0
    %914 = vmatpush1.bf16.msra.mxu0 0
    %915 = vmatprep.subr.bf16.mxu0 0
    %916 = vmatpush1.bf16.msra.mxu0 0
    %917 = vmatprep.subr.bf16.mxu0 0
    %918 = vmatpush1.bf16.msra.mxu0 0
    %919 = vmatprep.subr.bf16.mxu0 0
    %920 = vmatpush1.bf16.msra.mxu0 0
    %921 = vmatprep.mubr.bf16.mxu0 0
    %922 = vmatmul.mubr.bf16.gmra.mrb[0].mxu0 %v884
    %v923 = vpop.f32.mrb[0].mxu0
    %v924 = vadd.f32 0.0, %v923
    %v925 = vpop.f32.mrb[0].mxu0
    %v926 = vpop.f32.mrb[0].mxu0
    %v927 = vadd.f32 0.0, %v926
    %v928 = vpop.f32.mrb[0].mxu0
    %929 = vdwg.mxu0
    %v930 = vadd.f32 %v753, %v924
    %v931 = vadd.f32 %v754, %v927
    %932 = vrot.lane.b32.xlu0 %v414, 104
    %v933 = vpop.permute.xlu0 %932
    %v935 = vsel %vm417, %v933, 0
    %937 = vmatprep.subr.bf16.mxu0 0
    %938 = vmatpush1.bf16.xpose.msra.mxu0 %v764
    %939 = vmatprep.subr.bf16.mxu0 0
    %940 = vmatpush1.bf16.xpose.msra.mxu0 0
    %941 = vmatprep.subr.bf16.mxu0 0
    %942 = vmatpush1.bf16.xpose.msra.mxu0 0
    %943 = vmatprep.subr.bf16.mxu0 0
    %944 = vmatpush1.bf16.xpose.msra.mxu0 0
    %945 = vmatprep.subr.bf16.mxu0 0
    %946 = vmatpush1.bf16.xpose.msra.mxu0 0
    %947 = vmatprep.subr.bf16.mxu0 0
    %948 = vmatpush1.bf16.xpose.msra.mxu0 0
    %949 = vmatprep.subr.bf16.mxu0 0
    %950 = vmatpush1.bf16.xpose.msra.mxu0 0
    %951 = vmatprep.subr.bf16.mxu0 0
    %952 = vmatpush1.bf16.xpose.msra.mxu0 0
    %953 = vmatprep.subr.bf16.mxu0 0
    %954 = vmatpush1.bf16.xpose.msra.mxu0 0
    %955 = vmatprep.subr.bf16.mxu0 0
    %956 = vmatpush1.bf16.xpose.msra.mxu0 0
    %957 = vmatprep.subr.bf16.mxu0 0
    %958 = vmatpush1.bf16.xpose.msra.mxu0 0
    %959 = vmatprep.subr.bf16.mxu0 0
    %960 = vmatpush1.bf16.xpose.msra.mxu0 0
    %961 = vmatprep.subr.bf16.mxu0 0
    %962 = vmatpush1.bf16.xpose.msra.mxu0 0
    %963 = vmatprep.subr.bf16.mxu0 0
    %964 = vmatpush1.bf16.xpose.msra.mxu0 0
    %965 = vmatprep.subr.bf16.mxu0 0
    %966 = vmatpush1.bf16.xpose.msra.mxu0 0
    %967 = vmatprep.subr.bf16.mxu0 0
    %968 = vmatpush1.bf16.xpose.msra.mxu0 0
    %969 = vmatprep.mubr.bf16.mxu0 0
    %970 = vmatmul.mubr.bf16.gmra.mrb[0].mxu0 %v935
    %v971 = vpop.f32.mrb[0].mxu0
    %v972 = vadd.f32 0.0, %v971
    %v973 = vpop.f32.mrb[0].mxu0
    %v974 = vpop.f32.mrb[0].mxu0
    %v975 = vadd.f32 0.0, %v974
    %v976 = vpop.f32.mrb[0].mxu0
    %977 = vdwg.mxu0
    %v978 = vsel %vm52, %v972, -1e+30
    %v979 = vsel %vm53, %v975, -1e+30
    %v980 = vsel %vm467, %v978, -inf
    %981 = vmax.xlane.f32.xlu0 %v980
    %v982 = vpop.xlane.xlu0 %981
    %v983 = vsel %vm467, %v979, -inf
    %984 = vmax.xlane.f32.xlu0 %v983
    %v985 = vpop.xlane.xlu0 %984
    %v986 = vsub.f32 %v978, %v982
    %v987 = vsub.f32 %v979, %v985
    %v988 = vmul.f32 %v986, 1.442695
    %v989 = vpow.pop %v988
    %v990 = vmul.f32 %v987, 1.442695
    %v991 = vpow.pop %v990
    %v992 = vsel %vm467, %v989, 0.0
    %993 = vadd.xlane.f32.xlu0 %v992
    %v994 = vpop.xlane.xlu0 %993
    %v995 = vsel %vm467, %v991, 0.0
    %996 = vadd.xlane.f32.xlu0 %v995
    %v997 = vpop.xlane.xlu0 %996
    %v998 = vrcp.pop %v994
    %v999 = vrcp.pop %v997
    %v1000 = vmul.f32 %v989, %v998
    %v1001 = vmul.f32 %v991, %v999
    %v1002 = vpack.c.bf16 %v1001, %v1000
    %v1004 = vsel %vm467, %v1002, 0
    %1006 = vmatprep.subr.bf16.mxu0 0
    %1007 = vmatpush1.bf16.msra.mxu0 %v834
    %1008 = vmatprep.subr.bf16.mxu0 0
    %1009 = vmatpush1.bf16.msra.mxu0 0
    %1010 = vmatprep.subr.bf16.mxu0 0
    %1011 = vmatpush1.bf16.msra.mxu0 0
    %1012 = vmatprep.subr.bf16.mxu0 0
    %1013 = vmatpush1.bf16.msra.mxu0 0
    %1014 = vmatprep.subr.bf16.mxu0 0
    %1015 = vmatpush1.bf16.msra.mxu0 0
    %1016 = vmatprep.subr.bf16.mxu0 0
    %1017 = vmatpush1.bf16.msra.mxu0 0
    %1018 = vmatprep.subr.bf16.mxu0 0
    %1019 = vmatpush1.bf16.msra.mxu0 0
    %1020 = vmatprep.subr.bf16.mxu0 0
    %1021 = vmatpush1.bf16.msra.mxu0 0
    %1022 = vmatprep.subr.bf16.mxu0 0
    %1023 = vmatpush1.bf16.msra.mxu0 0
    %1024 = vmatprep.subr.bf16.mxu0 0
    %1025 = vmatpush1.bf16.msra.mxu0 0
    %1026 = vmatprep.subr.bf16.mxu0 0
    %1027 = vmatpush1.bf16.msra.mxu0 0
    %1028 = vmatprep.subr.bf16.mxu0 0
    %1029 = vmatpush1.bf16.msra.mxu0 0
    %1030 = vmatprep.subr.bf16.mxu0 0
    %1031 = vmatpush1.bf16.msra.mxu0 0
    %1032 = vmatprep.subr.bf16.mxu0 0
    %1033 = vmatpush1.bf16.msra.mxu0 0
    %1034 = vmatprep.subr.bf16.mxu0 0
    %1035 = vmatpush1.bf16.msra.mxu0 0
    %1036 = vmatprep.subr.bf16.mxu0 0
    %1037 = vmatpush1.bf16.msra.mxu0 0
    %1038 = vmatprep.mubr.bf16.mxu0 0
    %1039 = vmatmul.mubr.bf16.gmra.mrb[0].mxu0 %v1004
    %v1040 = vpop.f32.mrb[0].mxu0
    %v1041 = vadd.f32 0.0, %v1040
    %v1042 = vpop.f32.mrb[0].mxu0
    %v1043 = vpop.f32.mrb[0].mxu0
    %v1044 = vadd.f32 0.0, %v1043
    %v1045 = vpop.f32.mrb[0].mxu0
    %1046 = vdwg.mxu0
    %v1047 = vpack.c.bf16 %v1044, %v1041
    %s1048 = scalar_lea.vmem %s8, 12
    %v1049 = vld [vmem:[%s1048] sm:$0xf]
    %v1051 = vsel %vm417, %v1047, 0
    %v1054 = vsel %vm540, %v1049, 0
    %1056 = vmatprep.subr.bf16.mxu0 0
    %1057 = vmatpush1.bf16.msra.mxu0 %v1054
    %1058 = vmatprep.subr.bf16.mxu0 0
    %1059 = vmatpush1.bf16.msra.mxu0 0
    %1060 = vmatprep.subr.bf16.mxu0 0
    %1061 = vmatpush1.bf16.msra.mxu0 0
    %1062 = vmatprep.subr.bf16.mxu0 0
    %1063 = vmatpush1.bf16.msra.mxu0 0
    %1064 = vmatprep.subr.bf16.mxu0 0
    %1065 = vmatpush1.bf16.msra.mxu0 0
    %1066 = vmatprep.subr.bf16.mxu0 0
    %1067 = vmatpush1.bf16.msra.mxu0 0
    %1068 = vmatprep.subr.bf16.mxu0 0
    %1069 = vmatpush1.bf16.msra.mxu0 0
    %1070 = vmatprep.subr.bf16.mxu0 0
    %1071 = vmatpush1.bf16.msra.mxu0 0
    %1072 = vmatprep.subr.bf16.mxu0 0
    %1073 = vmatpush1.bf16.msra.mxu0 0
    %1074 = vmatprep.subr.bf16.mxu0 0
    %1075 = vmatpush1.bf16.msra.mxu0 0
    %1076 = vmatprep.subr.bf16.mxu0 0
    %1077 = vmatpush1.bf16.msra.mxu0 0
    %1078 = vmatprep.subr.bf16.mxu0 0
    %1079 = vmatpush1.bf16.msra.mxu0 0
    %1080 = vmatprep.subr.bf16.mxu0 0
    %1081 = vmatpush1.bf16.msra.mxu0 0
    %1082 = vmatprep.subr.bf16.mxu0 0
    %1083 = vmatpush1.bf16.msra.mxu0 0
    %1084 = vmatprep.subr.bf16.mxu0 0
    %1085 = vmatpush1.bf16.msra.mxu0 0
    %1086 = vmatprep.subr.bf16.mxu0 0
    %1087 = vmatpush1.bf16.msra.mxu0 0
    %1088 = vmatprep.mubr.bf16.mxu0 0
    %1089 = vmatmul.mubr.bf16.gmra.mrb[0].mxu0 %v1051
    %v1090 = vpop.f32.mrb[0].mxu0
    %v1091 = vadd.f32 0.0, %v1090
    %v1092 = vpop.f32.mrb[0].mxu0
    %v1093 = vpop.f32.mrb[0].mxu0
    %v1094 = vadd.f32 0.0, %v1093
    %v1095 = vpop.f32.mrb[0].mxu0
    %1096 = vdwg.mxu0
    %v1097 = vadd.f32 %v930, %v1091
    %v1098 = vadd.f32 %v931, %v1094
    %v1099 = vmul.f32 %v1097, %v1097
    %v1100 = vmul.f32 %v1098, %v1098
    %v1101 = vsel %vm63, %v1099, 0.0
    %1102 = vadd.xlane.f32.xlu0 %v1101
    %v1103 = vpop.xlane.xlu0 %1102
    %v1104 = vsel %vm63, %v1100, 0.0
    %1105 = vadd.xlane.f32.xlu0 %v1104
    %v1106 = vpop.xlane.xlu0 %1105
    %v1107 = vmul.f32 %v1103, %v70
    %v1108 = vmul.f32 %v1106, %v70
    %v1109 = vadd.f32 %v1107, 1e-05
    %v1110 = vadd.f32 %v1108, 1e-05
    %v1111 = vrsqrt.pop %v1109
    %v1112 = vrsqrt.pop %v1110
    %v1113 = vmul.f32 %v1097, %v1111
    %v1114 = vmul.f32 %v1098, %v1112
    %v1115 = vlaneseq
    %v1116 = vshrl.u32 %v1115, 7
    %v1117 = vsub.s32 0, %v1116
    %v1118 = vrot.slane %v55, %v1117
    %v1119 = vmul.f32 %v1113, %v1118
    %v1120 = vmul.f32 %v1114, %v1118
    %v1121 = vpack.c.bf16 %v1120, %v1119
    %v1122 = vld [vmem:[%s9] sm:$0xf]
    %v1123 = vld [vmem:[%s9 + $0x4] sm:$0xf]
    %v1124 = vld [vmem:[%s9 + $0x8] sm:$0xf]
    %v1125 = vld [vmem:[%s9 + $0xc] sm:$0xf]
    %v1130 = vunpack.c.l.b16 %v1122
    %v1131 = vunpack.c.l.b16 %v1123
    %v1132 = vunpack.c.l.b16 %v1124
    %v1133 = vunpack.c.l.b16 %v1125
    %v1134 = vpack.c.b16 %v1131, %v1130
    %v1135 = vpack.c.b16 %v1133, %v1132
    %v1139 = vsel %vm63, %v1121, 0
    %1141 = vmatprep.subr.bf16.mxu0 0
    %1142 = vmatpush1.bf16.msra.mxu0 %v1134
    %1143 = vmatprep.subr.bf16.mxu0 0
    %1144 = vmatpush1.bf16.msra.mxu0 %v1135
    %1145 = vmatprep.subr.bf16.mxu0 0
    %1146 = vmatpush1.bf16.msra.mxu0 0
    %1147 = vmatprep.subr.bf16.mxu0 0
    %1148 = vmatpush1.bf16.msra.mxu0 0
    %1149 = vmatprep.subr.bf16.mxu0 0
    %1150 = vmatpush1.bf16.msra.mxu0 0
    %1151 = vmatprep.subr.bf16.mxu0 0
    %1152 = vmatpush1.bf16.msra.mxu0 0
    %1153 = vmatprep.subr.bf16.mxu0 0
    %1154 = vmatpush1.bf16.msra.mxu0 0
    %1155 = vmatprep.subr.bf16.mxu0 0
    %1156 = vmatpush1.bf16.msra.mxu0 0
    %1157 = vmatprep.subr.bf16.mxu0 0
    %1158 = vmatpush1.bf16.msra.mxu0 0
    %1159 = vmatprep.subr.bf16.mxu0 0
    %1160 = vmatpush1.bf16.msra.mxu0 0
    %1161 = vmatprep.subr.bf16.mxu0 0
    %1162 = vmatpush1.bf16.msra.mxu0 0
    %1163 = vmatprep.subr.bf16.mxu0 0
    %1164 = vmatpush1.bf16.msra.mxu0 0
    %1165 = vmatprep.subr.bf16.mxu0 0
    %1166 = vmatpush1.bf16.msra.mxu0 0
    %1167 = vmatprep.subr.bf16.mxu0 0
    %1168 = vmatpush1.bf16.msra.mxu0 0
    %1169 = vmatprep.subr.bf16.mxu0 0
    %1170 = vmatpush1.bf16.msra.mxu0 0
    %1171 = vmatprep.subr.bf16.mxu0 0
    %1172 = vmatpush1.bf16.msra.mxu0 0
    %1173 = vmatprep.mubr.bf16.mxu0 0
    %1174 = vmatmul.mubr.bf16.gmra.mrb[0].mxu0 %v1139
    %v1175 = vpop.f32.mrb[0].mxu0
    %v1176 = vadd.f32 0.0, %v1175
    %v1177 = vpop.f32.mrb[0].mxu0
    %v1178 = vpop.f32.mrb[0].mxu0
    %v1179 = vadd.f32 0.0, %v1178
    %v1180 = vpop.f32.mrb[0].mxu0
    %1181 = vdwg.mxu0
    %v1182 = vld [vmem:[%s10] sm:$0xf]
    %v1183 = vld [vmem:[%s10 + $0x4] sm:$0xf]
    %v1184 = vld [vmem:[%s10 + $0x8] sm:$0xf]
    %v1185 = vld [vmem:[%s10 + $0xc] sm:$0xf]
    %v1190 = vunpack.c.l.b16 %v1182
    %v1191 = vunpack.c.l.b16 %v1183
    %v1192 = vunpack.c.l.b16 %v1184
    %v1193 = vunpack.c.l.b16 %v1185
    %v1194 = vpack.c.b16 %v1191, %v1190
    %v1195 = vpack.c.b16 %v1193, %v1192
    %1198 = vmatprep.subr.bf16.mxu0 0
    %1199 = vmatpush1.bf16.msra.mxu0 %v1194
    %1200 = vmatprep.subr.bf16.mxu0 0
    %1201 = vmatpush1.bf16.msra.mxu0 %v1195
    %1202 = vmatprep.subr.bf16.mxu0 0
    %1203 = vmatpush1.bf16.msra.mxu0 0
    %1204 = vmatprep.subr.bf16.mxu0 0
    %1205 = vmatpush1.bf16.msra.mxu0 0
    %1206 = vmatprep.subr.bf16.mxu0 0
    %1207 = vmatpush1.bf16.msra.mxu0 0
    %1208 = vmatprep.subr.bf16.mxu0 0
    %1209 = vmatpush1.bf16.msra.mxu0 0
    %1210 = vmatprep.subr.bf16.mxu0 0
    %1211 = vmatpush1.bf16.msra.mxu0 0
    %1212 = vmatprep.subr.bf16.mxu0 0
    %1213 = vmatpush1.bf16.msra.mxu0 0
    %1214 = vmatprep.subr.bf16.mxu0 0
    %1215 = vmatpush1.bf16.msra.mxu0 0
    %1216 = vmatprep.subr.bf16.mxu0 0
    %1217 = vmatpush1.bf16.msra.mxu0 0
    %1218 = vmatprep.subr.bf16.mxu0 0
    %1219 = vmatpush1.bf16.msra.mxu0 0
    %1220 = vmatprep.subr.bf16.mxu0 0
    %1221 = vmatpush1.bf16.msra.mxu0 0
    %1222 = vmatprep.subr.bf16.mxu0 0
    %1223 = vmatpush1.bf16.msra.mxu0 0
    %1224 = vmatprep.subr.bf16.mxu0 0
    %1225 = vmatpush1.bf16.msra.mxu0 0
    %1226 = vmatprep.subr.bf16.mxu0 0
    %1227 = vmatpush1.bf16.msra.mxu0 0
    %1228 = vmatprep.subr.bf16.mxu0 0
    %1229 = vmatpush1.bf16.msra.mxu0 0
    %1230 = vmatprep.mubr.bf16.mxu0 0
    %1231 = vmatmul.mubr.bf16.gmra.mrb[0].mxu0 %v1139
    %v1232 = vpop.f32.mrb[0].mxu0
    %v1233 = vadd.f32 0.0, %v1232
    %v1234 = vpop.f32.mrb[0].mxu0
    %v1235 = vpop.f32.mrb[0].mxu0
    %v1236 = vadd.f32 0.0, %v1235
    %v1237 = vpop.f32.mrb[0].mxu0
    %1238 = vdwg.mxu0
    %v1239 = vxor.u32 %v1176, 2147483648
    %v1240 = vxor.u32 %v1179, 2147483648
    %v1241 = vmul.f32 %v1239, 1.442695
    %v1242 = vpow.pop %v1241
    %v1243 = vmul.f32 %v1240, 1.442695
    %v1244 = vpow.pop %v1243
    %v1245 = vadd.f32 %v1242, 1.0
    %v1246 = vadd.f32 %v1244, 1.0
    %v1247 = vrcp.pop %v1245
    %v1248 = vmul.f32 1.0, %v1247
    %v1249 = vrcp.pop %v1246
    %v1250 = vmul.f32 1.0, %v1249
    %v1251 = vmul.f32 %v1176, %v1248
    %v1252 = vmul.f32 %v1179, %v1250
    %v1253 = vmul.f32 %v1251, %v1233
    %v1254 = vmul.f32 %v1252, %v1236
    %v1255 = vpack.c.bf16 %v1254, %v1253
    %v1256 = vld [vmem:[%s11] sm:$0xf]
    %v1257 = vld [vmem:[%s11 + $0x4] sm:$0xf]
    %v1258 = vld [vmem:[%s11 + $0x8] sm:$0xf]
    %v1259 = vld [vmem:[%s11 + $0xc] sm:$0xf]
    %v1260 = vld [vmem:[%s11 + $0x10] sm:$0xf]
    %v1261 = vld [vmem:[%s11 + $0x14] sm:$0xf]
    %v1262 = vld [vmem:[%s11 + $0x18] sm:$0xf]
    %v1263 = vld [vmem:[%s11 + $0x1c] sm:$0xf]
    %v1272 = vunpack.c.l.b16 %v1256
    %v1273 = vunpack.c.l.b16 %v1257
    %v1274 = vunpack.c.l.b16 %v1258
    %v1275 = vunpack.c.l.b16 %v1259
    %v1276 = vunpack.c.l.b16 %v1260
    %v1277 = vunpack.c.l.b16 %v1261
    %v1278 = vunpack.c.l.b16 %v1262
    %v1279 = vunpack.c.l.b16 %v1263
    %v1280 = vpack.c.b16 %v1273, %v1272
    %v1281 = vpack.c.b16 %v1275, %v1274
    %v1282 = vpack.c.b16 %v1277, %v1276
    %v1283 = vpack.c.b16 %v1279, %v1278
    %vm1288 = vcmask 523264
    %v1290 = vsel %vm1288, %v1255, 0
    %1292 = vmatprep.subr.bf16.mxu0 0
    %1293 = vmatpush1.bf16.msra.mxu0 %v1280
    %1294 = vmatprep.subr.bf16.mxu0 0
    %1295 = vmatpush1.bf16.msra.mxu0 %v1281
    %1296 = vmatprep.subr.bf16.mxu0 0
    %1297 = vmatpush1.bf16.msra.mxu0 %v1282
    %1298 = vmatprep.subr.bf16.mxu0 0
    %1299 = vmatpush1.bf16.msra.mxu0 %v1283
    %1300 = vmatprep.subr.bf16.mxu0 0
    %1301 = vmatpush1.bf16.msra.mxu0 0
    %1302 = vmatprep.subr.bf16.mxu0 0
    %1303 = vmatpush1.bf16.msra.mxu0 0
    %1304 = vmatprep.subr.bf16.mxu0 0
    %1305 = vmatpush1.bf16.msra.mxu0 0
    %1306 = vmatprep.subr.bf16.mxu0 0
    %1307 = vmatpush1.bf16.msra.mxu0 0
    %1308 = vmatprep.subr.bf16.mxu0 0
    %1309 = vmatpush1.bf16.msra.mxu0 0
    %1310 = vmatprep.subr.bf16.mxu0 0
    %1311 = vmatpush1.bf16.msra.mxu0 0
    %1312 = vmatprep.subr.bf16.mxu0 0
    %1313 = vmatpush1.bf16.msra.mxu0 0
    %1314 = vmatprep.subr.bf16.mxu0 0
    %1315 = vmatpush1.bf16.msra.mxu0 0
    %1316 = vmatprep.subr.bf16.mxu0 0
    %1317 = vmatpush1.bf16.msra.mxu0 0
    %1318 = vmatprep.subr.bf16.mxu0 0
    %1319 = vmatpush1.bf16.msra.mxu0 0
    %1320 = vmatprep.subr.bf16.mxu0 0
    %1321 = vmatpush1.bf16.msra.mxu0 0
    %1322 = vmatprep.subr.bf16.mxu0 0
    %1323 = vmatpush1.bf16.msra.mxu0 0
    %1324 = vmatprep.mubr.bf16.mxu0 0
    %1325 = vmatmul.mubr.bf16.gmra.mrb[0].mxu0 %v1290
    %v1326 = vpop.f32.mrb[0].mxu0
    %v1327 = vadd.f32 0.0, %v1326
    %v1328 = vpop.f32.mrb[0].mxu0
    %v1329 = vpop.f32.mrb[0].mxu0
    %v1330 = vadd.f32 0.0, %v1329
    %v1331 = vpop.f32.mrb[0].mxu0
    %1332 = vdwg.mxu0
    %v1333 = vadd.f32 %v1097, %v1327
    %v1334 = vadd.f32 %v1098, %v1330
    %v1335 = vld [vmem:[%s2 + $0x8] sm:$0x1]
    %v1336 = vld [vmem:[%s2 + $0x9] sm:$0x1]
    %v1337 = vld [vmem:[%s2 + $0xa] sm:$0x1]
    %v1338 = vld [vmem:[%s2 + $0xb] sm:$0x1]
    %v1339 = vld [vmem:[%s2 + $0xc] sm:$0x1]
    %v1340 = vld [vmem:[%s2 + $0xd] sm:$0x1]
    %v1341 = vld [vmem:[%s2 + $0xe] sm:$0x1]
    %v1342 = vmul.f32 %v1333, %v1333
    %v1343 = vmul.f32 %v1334, %v1334
    %v1344 = vsel %vm63, %v1342, 0.0
    %1345 = vadd.xlane.f32.xlu0 %v1344
    %v1346 = vpop.xlane.xlu0 %1345
    %v1347 = vsel %vm63, %v1343, 0.0
    %1348 = vadd.xlane.f32.xlu0 %v1347
    %v1349 = vpop.xlane.xlu0 %1348
    %v1350 = vmul.f32 %v1346, %v70
    %v1351 = vmul.f32 %v1349, %v70
    %v1352 = vadd.f32 %v1350, 1e-05
    %v1353 = vadd.f32 %v1351, 1e-05
    %v1354 = vrsqrt.pop %v1352
    %v1355 = vrsqrt.pop %v1353
    %v1356 = vmul.f32 %v1333, %v1354
    %v1357 = vmul.f32 %v1334, %v1355
    %v1358 = vlaneseq
    %v1359 = vshrl.u32 %v1358, 7
    %v1360 = vsub.s32 0, %v1359
    %v1361 = vrot.slane %v1335, %v1360
    %v1362 = vmul.f32 %v1356, %v1361
    %v1363 = vmul.f32 %v1357, %v1361
    %v1364 = vpack.c.bf16 %v1363, %v1362
    %s1365 = scalar_lea.vmem %s3, 16
    %v1366 = vld [vmem:[%s1365] sm:$0xf]
    %v1367 = vld [vmem:[%s1365 + $0x4] sm:$0xf]
    %v1368 = vld [vmem:[%s1365 + $0x8] sm:$0xf]
    %v1369 = vld [vmem:[%s1365 + $0xc] sm:$0xf]
    %v1370 = vlaneseq
    %v1371 = vshrl.u32 %v1370, 7
    %v1372 = vsub.s32 0, %v1371
    %v1373 = vrot.slane %v1337, %v1372
    %v1378 = vunpack.c.l.b16 %v1366
    %v1379 = vunpack.c.l.b16 %v1367
    %v1380 = vunpack.c.l.b16 %v1368
    %v1381 = vunpack.c.l.b16 %v1369
    %v1382 = vpack.c.b16 %v1379, %v1378
    %v1383 = vpack.c.b16 %v1381, %v1380
    %v1387 = vsel %vm63, %v1364, 0
    %1389 = vmatprep.subr.bf16.mxu0 0
    %1390 = vmatpush1.bf16.msra.mxu0 %v1382
    %1391 = vmatprep.subr.bf16.mxu0 0
    %1392 = vmatpush1.bf16.msra.mxu0 %v1383
    %1393 = vmatprep.subr.bf16.mxu0 0
    %1394 = vmatpush1.bf16.msra.mxu0 0
    %1395 = vmatprep.subr.bf16.mxu0 0
    %1396 = vmatpush1.bf16.msra.mxu0 0
    %1397 = vmatprep.subr.bf16.mxu0 0
    %1398 = vmatpush1.bf16.msra.mxu0 0
    %1399 = vmatprep.subr.bf16.mxu0 0
    %1400 = vmatpush1.bf16.msra.mxu0 0
    %1401 = vmatprep.subr.bf16.mxu0 0
    %1402 = vmatpush1.bf16.msra.mxu0 0
    %1403 = vmatprep.subr.bf16.mxu0 0
    %1404 = vmatpush1.bf16.msra.mxu0 0
    %1405 = vmatprep.subr.bf16.mxu0 0
    %1406 = vmatpush1.bf16.msra.mxu0 0
    %1407 = vmatprep.subr.bf16.mxu0 0
    %1408 = vmatpush1.bf16.msra.mxu0 0
    %1409 = vmatprep.subr.bf16.mxu0 0
    %1410 = vmatpush1.bf16.msra.mxu0 0
    %1411 = vmatprep.subr.bf16.mxu0 0
    %1412 = vmatpush1.bf16.msra.mxu0 0
    %1413 = vmatprep.subr.bf16.mxu0 0
    %1414 = vmatpush1.bf16.msra.mxu0 0
    %1415 = vmatprep.subr.bf16.mxu0 0
    %1416 = vmatpush1.bf16.msra.mxu0 0
    %1417 = vmatprep.subr.bf16.mxu0 0
    %1418 = vmatpush1.bf16.msra.mxu0 0
    %1419 = vmatprep.subr.bf16.mxu0 0
    %1420 = vmatpush1.bf16.msra.mxu0 0
    %1421 = vmatprep.mubr.bf16.mxu0 0
    %1422 = vmatmul.mubr.bf16.gmra.mrb[0].mxu0 %v1387
    %v1423 = vpop.f32.mrb[0].mxu0
    %v1424 = vadd.f32 %v1373, %v1423
    %v1425 = vpop.f32.mrb[0].mxu0
    %v1426 = vpop.f32.mrb[0].mxu0
    %v1427 = vadd.f32 %v1373, %v1426
    %v1428 = vpop.f32.mrb[0].mxu0
    %1429 = vdwg.mxu0
    %s1430 = scalar_lea.vmem %s4, 16
    %v1431 = vld [vmem:[%s1430] sm:$0xf]
    %v1432 = vld [vmem:[%s1430 + $0x4] sm:$0xf]
    %v1433 = vld [vmem:[%s1430 + $0x8] sm:$0xf]
    %v1434 = vld [vmem:[%s1430 + $0xc] sm:$0xf]
    %v1435 = vlaneseq
    %v1436 = vshrl.u32 %v1435, 7
    %v1437 = vsub.s32 0, %v1436
    %v1438 = vrot.slane %v1338, %v1437
    %v1443 = vunpack.c.l.b16 %v1431
    %v1444 = vunpack.c.l.b16 %v1432
    %v1445 = vunpack.c.l.b16 %v1433
    %v1446 = vunpack.c.l.b16 %v1434
    %v1447 = vpack.c.b16 %v1444, %v1443
    %v1448 = vpack.c.b16 %v1446, %v1445
    %1451 = vmatprep.subr.bf16.mxu0 0
    %1452 = vmatpush1.bf16.msra.mxu0 %v1447
    %1453 = vmatprep.subr.bf16.mxu0 0
    %1454 = vmatpush1.bf16.msra.mxu0 %v1448
    %1455 = vmatprep.subr.bf16.mxu0 0
    %1456 = vmatpush1.bf16.msra.mxu0 0
    %1457 = vmatprep.subr.bf16.mxu0 0
    %1458 = vmatpush1.bf16.msra.mxu0 0
    %1459 = vmatprep.subr.bf16.mxu0 0
    %1460 = vmatpush1.bf16.msra.mxu0 0
    %1461 = vmatprep.subr.bf16.mxu0 0
    %1462 = vmatpush1.bf16.msra.mxu0 0
    %1463 = vmatprep.subr.bf16.mxu0 0
    %1464 = vmatpush1.bf16.msra.mxu0 0
    %1465 = vmatprep.subr.bf16.mxu0 0
    %1466 = vmatpush1.bf16.msra.mxu0 0
    %1467 = vmatprep.subr.bf16.mxu0 0
    %1468 = vmatpush1.bf16.msra.mxu0 0
    %1469 = vmatprep.subr.bf16.mxu0 0
    %1470 = vmatpush1.bf16.msra.mxu0 0
    %1471 = vmatprep.subr.bf16.mxu0 0
    %1472 = vmatpush1.bf16.msra.mxu0 0
    %1473 = vmatprep.subr.bf16.mxu0 0
    %1474 = vmatpush1.bf16.msra.mxu0 0
    %1475 = vmatprep.subr.bf16.mxu0 0
    %1476 = vmatpush1.bf16.msra.mxu0 0
    %1477 = vmatprep.subr.bf16.mxu0 0
    %1478 = vmatpush1.bf16.msra.mxu0 0
    %1479 = vmatprep.subr.bf16.mxu0 0
    %1480 = vmatpush1.bf16.msra.mxu0 0
    %1481 = vmatprep.subr.bf16.mxu0 0
    %1482 = vmatpush1.bf16.msra.mxu0 0
    %1483 = vmatprep.mubr.bf16.mxu0 0
    %1484 = vmatmul.mubr.bf16.gmra.mrb[0].mxu0 %v1387
    %v1485 = vpop.f32.mrb[0].mxu0
    %v1486 = vadd.f32 %v1438, %v1485
    %v1487 = vpop.f32.mrb[0].mxu0
    %v1488 = vpop.f32.mrb[0].mxu0
    %v1489 = vadd.f32 %v1438, %v1488
    %v1490 = vpop.f32.mrb[0].mxu0
    %1491 = vdwg.mxu0
    %v1492 = vmul.f32 %v1424, %v45
    %v1493 = vmul.f32 %v1427, %v46
    %v1494 = vmul.f32 %v1486, %v216
    %v1495 = vmul.f32 %v1489, %v218
    %v1496 = vadd.f32 %v1492, %v1494
    %v1497 = vadd.f32 %v1493, %v1495
    %s1498 = scalar_lea.vmem %s5, 16
    %v1499 = vld [vmem:[%s1498] sm:$0xf]
    %v1500 = vld [vmem:[%s1498 + $0x4] sm:$0xf]
    %v1501 = vld [vmem:[%s1498 + $0x8] sm:$0xf]
    %v1502 = vld [vmem:[%s1498 + $0xc] sm:$0xf]
    %v1503 = vlaneseq
    %v1504 = vshrl.u32 %v1503, 7
    %v1505 = vsub.s32 0, %v1504
    %v1506 = vrot.slane %v1339, %v1505
    %v1511 = vunpack.c.l.b16 %v1499
    %v1512 = vunpack.c.l.b16 %v1500
    %v1513 = vunpack.c.l.b16 %v1501
    %v1514 = vunpack.c.l.b16 %v1502
    %v1515 = vpack.c.b16 %v1512, %v1511
    %v1516 = vpack.c.b16 %v1514, %v1513
    %1519 = vmatprep.subr.bf16.mxu0 0
    %1520 = vmatpush1.bf16.msra.mxu0 %v1515
    %1521 = vmatprep.subr.bf16.mxu0 0
    %1522 = vmatpush1.bf16.msra.mxu0 %v1516
    %1523 = vmatprep.subr.bf16.mxu0 0
    %1524 = vmatpush1.bf16.msra.mxu0 0
    %1525 = vmatprep.subr.bf16.mxu0 0
    %1526 = vmatpush1.bf16.msra.mxu0 0
    %1527 = vmatprep.subr.bf16.mxu0 0
    %1528 = vmatpush1.bf16.msra.mxu0 0
    %1529 = vmatprep.subr.bf16.mxu0 0
    %1530 = vmatpush1.bf16.msra.mxu0 0
    %1531 = vmatprep.subr.bf16.mxu0 0
    %1532 = vmatpush1.bf16.msra.mxu0 0
    %1533 = vmatprep.subr.bf16.mxu0 0
    %1534 = vmatpush1.bf16.msra.mxu0 0
    %1535 = vmatprep.subr.bf16.mxu0 0
    %1536 = vmatpush1.bf16.msra.mxu0 0
    %1537 = vmatprep.subr.bf16.mxu0 0
    %1538 = vmatpush1.bf16.msra.mxu0 0
    %1539 = vmatprep.subr.bf16.mxu0 0
    %1540 = vmatpush1.bf16.msra.mxu0 0
    %1541 = vmatprep.subr.bf16.mxu0 0
    %1542 = vmatpush1.bf16.msra.mxu0 0
    %1543 = vmatprep.subr.bf16.mxu0 0
    %1544 = vmatpush1.bf16.msra.mxu0 0
    %1545 = vmatprep.subr.bf16.mxu0 0
    %1546 = vmatpush1.bf16.msra.mxu0 0
    %1547 = vmatprep.subr.bf16.mxu0 0
    %1548 = vmatpush1.bf16.msra.mxu0 0
    %1549 = vmatprep.subr.bf16.mxu0 0
    %1550 = vmatpush1.bf16.msra.mxu0 0
    %1551 = vmatprep.mubr.bf16.mxu0 0
    %1552 = vmatmul.mubr.bf16.gmra.mrb[0].mxu0 %v1387
    %v1553 = vpop.f32.mrb[0].mxu0
    %v1554 = vadd.f32 %v1506, %v1553
    %v1555 = vpop.f32.mrb[0].mxu0
    %v1556 = vpop.f32.mrb[0].mxu0
    %v1557 = vadd.f32 %v1506, %v1556
    %v1558 = vpop.f32.mrb[0].mxu0
    %1559 = vdwg.mxu0
    %s1560 = scalar_lea.vmem %s6, 16
    %v1561 = vld [vmem:[%s1560] sm:$0xf]
    %v1562 = vld [vmem:[%s1560 + $0x4] sm:$0xf]
    %v1563 = vld [vmem:[%s1560 + $0x8] sm:$0xf]
    %v1564 = vld [vmem:[%s1560 + $0xc] sm:$0xf]
    %v1565 = vlaneseq
    %v1566 = vshrl.u32 %v1565, 7
    %v1567 = vsub.s32 0, %v1566
    %v1568 = vrot.slane %v1340, %v1567
    %v1573 = vunpack.c.l.b16 %v1561
    %v1574 = vunpack.c.l.b16 %v1562
    %v1575 = vunpack.c.l.b16 %v1563
    %v1576 = vunpack.c.l.b16 %v1564
    %v1577 = vpack.c.b16 %v1574, %v1573
    %v1578 = vpack.c.b16 %v1576, %v1575
    %1581 = vmatprep.subr.bf16.mxu0 0
    %1582 = vmatpush1.bf16.msra.mxu0 %v1577
    %1583 = vmatprep.subr.bf16.mxu0 0
    %1584 = vmatpush1.bf16.msra.mxu0 %v1578
    %1585 = vmatprep.subr.bf16.mxu0 0
    %1586 = vmatpush1.bf16.msra.mxu0 0
    %1587 = vmatprep.subr.bf16.mxu0 0
    %1588 = vmatpush1.bf16.msra.mxu0 0
    %1589 = vmatprep.subr.bf16.mxu0 0
    %1590 = vmatpush1.bf16.msra.mxu0 0
    %1591 = vmatprep.subr.bf16.mxu0 0
    %1592 = vmatpush1.bf16.msra.mxu0 0
    %1593 = vmatprep.subr.bf16.mxu0 0
    %1594 = vmatpush1.bf16.msra.mxu0 0
    %1595 = vmatprep.subr.bf16.mxu0 0
    %1596 = vmatpush1.bf16.msra.mxu0 0
    %1597 = vmatprep.subr.bf16.mxu0 0
    %1598 = vmatpush1.bf16.msra.mxu0 0
    %1599 = vmatprep.subr.bf16.mxu0 0
    %1600 = vmatpush1.bf16.msra.mxu0 0
    %1601 = vmatprep.subr.bf16.mxu0 0
    %1602 = vmatpush1.bf16.msra.mxu0 0
    %1603 = vmatprep.subr.bf16.mxu0 0
    %1604 = vmatpush1.bf16.msra.mxu0 0
    %1605 = vmatprep.subr.bf16.mxu0 0
    %1606 = vmatpush1.bf16.msra.mxu0 0
    %1607 = vmatprep.subr.bf16.mxu0 0
    %1608 = vmatpush1.bf16.msra.mxu0 0
    %1609 = vmatprep.subr.bf16.mxu0 0
    %1610 = vmatpush1.bf16.msra.mxu0 0
    %1611 = vmatprep.subr.bf16.mxu0 0
    %1612 = vmatpush1.bf16.msra.mxu0 0
    %1613 = vmatprep.mubr.bf16.mxu0 0
    %1614 = vmatmul.mubr.bf16.gmra.mrb[0].mxu0 %v1387
    %v1615 = vpop.f32.mrb[0].mxu0
    %v1616 = vadd.f32 %v1568, %v1615
    %v1617 = vpop.f32.mrb[0].mxu0
    %v1618 = vpop.f32.mrb[0].mxu0
    %v1619 = vadd.f32 %v1568, %v1618
    %v1620 = vpop.f32.mrb[0].mxu0
    %1621 = vdwg.mxu0
    %v1622 = vmul.f32 %v1554, %v45
    %v1623 = vmul.f32 %v1557, %v46
    %v1624 = vmul.f32 %v1616, %v216
    %v1625 = vmul.f32 %v1619, %v218
    %v1626 = vadd.f32 %v1622, %v1624
    %v1627 = vadd.f32 %v1623, %v1625
    %s1628 = scalar_lea.vmem %s7, 16
    %v1629 = vld [vmem:[%s1628] sm:$0xf]
    %v1630 = vld [vmem:[%s1628 + $0x4] sm:$0xf]
    %v1631 = vld [vmem:[%s1628 + $0x8] sm:$0xf]
    %v1632 = vld [vmem:[%s1628 + $0xc] sm:$0xf]
    %v1633 = vlaneseq
    %v1634 = vshrl.u32 %v1633, 7
    %v1635 = vsub.s32 0, %v1634
    %v1636 = vrot.slane %v1341, %v1635
    %v1641 = vunpack.c.l.b16 %v1629
    %v1642 = vunpack.c.l.b16 %v1630
    %v1643 = vunpack.c.l.b16 %v1631
    %v1644 = vunpack.c.l.b16 %v1632
    %v1645 = vpack.c.b16 %v1642, %v1641
    %v1646 = vpack.c.b16 %v1644, %v1643
    %1649 = vmatprep.subr.bf16.mxu0 0
    %1650 = vmatpush1.bf16.msra.mxu0 %v1645
    %1651 = vmatprep.subr.bf16.mxu0 0
    %1652 = vmatpush1.bf16.msra.mxu0 %v1646
    %1653 = vmatprep.subr.bf16.mxu0 0
    %1654 = vmatpush1.bf16.msra.mxu0 0
    %1655 = vmatprep.subr.bf16.mxu0 0
    %1656 = vmatpush1.bf16.msra.mxu0 0
    %1657 = vmatprep.subr.bf16.mxu0 0
    %1658 = vmatpush1.bf16.msra.mxu0 0
    %1659 = vmatprep.subr.bf16.mxu0 0
    %1660 = vmatpush1.bf16.msra.mxu0 0
    %1661 = vmatprep.subr.bf16.mxu0 0
    %1662 = vmatpush1.bf16.msra.mxu0 0
    %1663 = vmatprep.subr.bf16.mxu0 0
    %1664 = vmatpush1.bf16.msra.mxu0 0
    %1665 = vmatprep.subr.bf16.mxu0 0
    %1666 = vmatpush1.bf16.msra.mxu0 0
    %1667 = vmatprep.subr.bf16.mxu0 0
    %1668 = vmatpush1.bf16.msra.mxu0 0
    %1669 = vmatprep.subr.bf16.mxu0 0
    %1670 = vmatpush1.bf16.msra.mxu0 0
    %1671 = vmatprep.subr.bf16.mxu0 0
    %1672 = vmatpush1.bf16.msra.mxu0 0
    %1673 = vmatprep.subr.bf16.mxu0 0
    %1674 = vmatpush1.bf16.msra.mxu0 0
    %1675 = vmatprep.subr.bf16.mxu0 0
    %1676 = vmatpush1.bf16.msra.mxu0 0
    %1677 = vmatprep.subr.bf16.mxu0 0
    %1678 = vmatpush1.bf16.msra.mxu0 0
    %1679 = vmatprep.subr.bf16.mxu0 0
    %1680 = vmatpush1.bf16.msra.mxu0 0
    %1681 = vmatprep.mubr.bf16.mxu0 0
    %1682 = vmatmul.mubr.bf16.gmra.mrb[0].mxu0 %v1387
    %v1683 = vpop.f32.mrb[0].mxu0
    %v1684 = vadd.f32 %v1636, %v1683
    %v1685 = vpop.f32.mrb[0].mxu0
    %v1686 = vpop.f32.mrb[0].mxu0
    %v1687 = vadd.f32 %v1636, %v1686
    %v1688 = vpop.f32.mrb[0].mxu0
    %1689 = vdwg.mxu0
    %v1690 = vpack.c.bf16 %v1497, %v1496
    %v1691 = vpack.c.bf16 %v1627, %v1626
    %v1692 = vpack.c.bf16 %v1687, %v1684
    %v1694 = vsel %vm417, %v1690, 0
    %v1697 = vsel %vm417, %v1691, 0
    %1699 = vmatprep.subr.bf16.mxu0 0
    %1700 = vmatpush1.bf16.xpose.msra.mxu0 %v1697
    %1701 = vmatprep.subr.bf16.mxu0 0
    %1702 = vmatpush1.bf16.xpose.msra.mxu0 0
    %1703 = vmatprep.subr.bf16.mxu0 0
    %1704 = vmatpush1.bf16.xpose.msra.mxu0 0
    %1705 = vmatprep.subr.bf16.mxu0 0
    %1706 = vmatpush1.bf16.xpose.msra.mxu0 0
    %1707 = vmatprep.subr.bf16.mxu0 0
    %1708 = vmatpush1.bf16.xpose.msra.mxu0 0
    %1709 = vmatprep.subr.bf16.mxu0 0
    %1710 = vmatpush1.bf16.xpose.msra.mxu0 0
    %1711 = vmatprep.subr.bf16.mxu0 0
    %1712 = vmatpush1.bf16.xpose.msra.mxu0 0
    %1713 = vmatprep.subr.bf16.mxu0 0
    %1714 = vmatpush1.bf16.xpose.msra.mxu0 0
    %1715 = vmatprep.subr.bf16.mxu0 0
    %1716 = vmatpush1.bf16.xpose.msra.mxu0 0
    %1717 = vmatprep.subr.bf16.mxu0 0
    %1718 = vmatpush1.bf16.xpose.msra.mxu0 0
    %1719 = vmatprep.subr.bf16.mxu0 0
    %1720 = vmatpush1.bf16.xpose.msra.mxu0 0
    %1721 = vmatprep.subr.bf16.mxu0 0
    %1722 = vmatpush1.bf16.xpose.msra.mxu0 0
    %1723 = vmatprep.subr.bf16.mxu0 0
    %1724 = vmatpush1.bf16.xpose.msra.mxu0 0
    %1725 = vmatprep.subr.bf16.mxu0 0
    %1726 = vmatpush1.bf16.xpose.msra.mxu0 0
    %1727 = vmatprep.subr.bf16.mxu0 0
    %1728 = vmatpush1.bf16.xpose.msra.mxu0 0
    %1729 = vmatprep.subr.bf16.mxu0 0
    %1730 = vmatpush1.bf16.xpose.msra.mxu0 0
    %1731 = vmatprep.mubr.bf16.mxu0 0
    %1732 = vmatmul.mubr.bf16.gmra.mrb[0].mxu0 %v1694
    %v1733 = vpop.f32.mrb[0].mxu0
    %v1734 = vadd.f32 0.0, %v1733
    %v1735 = vpop.f32.mrb[0].mxu0
    %v1736 = vpop.f32.mrb[0].mxu0
    %v1737 = vadd.f32 0.0, %v1736
    %v1738 = vpop.f32.mrb[0].mxu0
    %1739 = vdwg.mxu0
    %v1740 = vsel %vm52, %v1734, -1e+30
    %v1741 = vsel %vm53, %v1737, -1e+30
    %v1742 = vsel %vm467, %v1740, -inf
    %1743 = vmax.xlane.f32.xlu0 %v1742
    %v1744 = vpop.xlane.xlu0 %1743
    %v1745 = vsel %vm467, %v1741, -inf
    %1746 = vmax.xlane.f32.xlu0 %v1745
    %v1747 = vpop.xlane.xlu0 %1746
    %v1748 = vsub.f32 %v1740, %v1744
    %v1749 = vsub.f32 %v1741, %v1747
    %v1750 = vmul.f32 %v1748, 1.442695
    %v1751 = vpow.pop %v1750
    %v1752 = vmul.f32 %v1749, 1.442695
    %v1753 = vpow.pop %v1752
    %v1754 = vsel %vm467, %v1751, 0.0
    %1755 = vadd.xlane.f32.xlu0 %v1754
    %v1756 = vpop.xlane.xlu0 %1755
    %v1757 = vsel %vm467, %v1753, 0.0
    %1758 = vadd.xlane.f32.xlu0 %v1757
    %v1759 = vpop.xlane.xlu0 %1758
    %v1760 = vrcp.pop %v1756
    %v1761 = vrcp.pop %v1759
    %v1762 = vmul.f32 %v1751, %v1760
    %v1763 = vmul.f32 %v1753, %v1761
    %v1764 = vpack.c.bf16 %v1763, %v1762
    %v1766 = vsel %vm467, %v1764, 0
    %1768 = vmatprep.subr.bf16.mxu0 0
    %1769 = vmatpush1.bf16.msra.mxu0 %v1692
    %1770 = vmatprep.subr.bf16.mxu0 0
    %1771 = vmatpush1.bf16.msra.mxu0 0
    %1772 = vmatprep.subr.bf16.mxu0 0
    %1773 = vmatpush1.bf16.msra.mxu0 0
    %1774 = vmatprep.subr.bf16.mxu0 0
    %1775 = vmatpush1.bf16.msra.mxu0 0
    %1776 = vmatprep.subr.bf16.mxu0 0
    %1777 = vmatpush1.bf16.msra.mxu0 0
    %1778 = vmatprep.subr.bf16.mxu0 0
    %1779 = vmatpush1.bf16.msra.mxu0 0
    %1780 = vmatprep.subr.bf16.mxu0 0
    %1781 = vmatpush1.bf16.msra.mxu0 0
    %1782 = vmatprep.subr.bf16.mxu0 0
    %1783 = vmatpush1.bf16.msra.mxu0 0
    %1784 = vmatprep.subr.bf16.mxu0 0
    %1785 = vmatpush1.bf16.msra.mxu0 0
    %1786 = vmatprep.subr.bf16.mxu0 0
    %1787 = vmatpush1.bf16.msra.mxu0 0
    %1788 = vmatprep.subr.bf16.mxu0 0
    %1789 = vmatpush1.bf16.msra.mxu0 0
    %1790 = vmatprep.subr.bf16.mxu0 0
    %1791 = vmatpush1.bf16.msra.mxu0 0
    %1792 = vmatprep.subr.bf16.mxu0 0
    %1793 = vmatpush1.bf16.msra.mxu0 0
    %1794 = vmatprep.subr.bf16.mxu0 0
    %1795 = vmatpush1.bf16.msra.mxu0 0
    %1796 = vmatprep.subr.bf16.mxu0 0
    %1797 = vmatpush1.bf16.msra.mxu0 0
    %1798 = vmatprep.subr.bf16.mxu0 0
    %1799 = vmatpush1.bf16.msra.mxu0 0
    %1800 = vmatprep.mubr.bf16.mxu0 0
    %1801 = vmatmul.mubr.bf16.gmra.mrb[0].mxu0 %v1766
    %v1802 = vpop.f32.mrb[0].mxu0
    %v1803 = vadd.f32 0.0, %v1802
    %v1804 = vpop.f32.mrb[0].mxu0
    %v1805 = vpop.f32.mrb[0].mxu0
    %v1806 = vadd.f32 0.0, %v1805
    %v1807 = vpop.f32.mrb[0].mxu0
    %1808 = vdwg.mxu0
    %v1809 = vpack.c.bf16 %v1806, %v1803
    %s1810 = scalar_lea.vmem %s8, 16
    %v1811 = vld [vmem:[%s1810] sm:$0xf]
    %v1813 = vsel %vm417, %v1809, 0
    %v1816 = vsel %vm540, %v1811, 0
    %1818 = vmatprep.subr.bf16.mxu0 0
    %1819 = vmatpush1.bf16.msra.mxu0 %v1816
    %1820 = vmatprep.subr.bf16.mxu0 0
    %1821 = vmatpush1.bf16.msra.mxu0 0
    %1822 = vmatprep.subr.bf16.mxu0 0
    %1823 = vmatpush1.bf16.msra.mxu0 0
    %1824 = vmatprep.subr.bf16.mxu0 0
    %1825 = vmatpush1.bf16.msra.mxu0 0
    %1826 = vmatprep.subr.bf16.mxu0 0
    %1827 = vmatpush1.bf16.msra.mxu0 0
    %1828 = vmatprep.subr.bf16.mxu0 0
    %1829 = vmatpush1.bf16.msra.mxu0 0
    %1830 = vmatprep.subr.bf16.mxu0 0
    %1831 = vmatpush1.bf16.msra.mxu0 0
    %1832 = vmatprep.subr.bf16.mxu0 0
    %1833 = vmatpush1.bf16.msra.mxu0 0
    %1834 = vmatprep.subr.bf16.mxu0 0
    %1835 = vmatpush1.bf16.msra.mxu0 0
    %1836 = vmatprep.subr.bf16.mxu0 0
    %1837 = vmatpush1.bf16.msra.mxu0 0
    %1838 = vmatprep.subr.bf16.mxu0 0
    %1839 = vmatpush1.bf16.msra.mxu0 0
    %1840 = vmatprep.subr.bf16.mxu0 0
    %1841 = vmatpush1.bf16.msra.mxu0 0
    %1842 = vmatprep.subr.bf16.mxu0 0
    %1843 = vmatpush1.bf16.msra.mxu0 0
    %1844 = vmatprep.subr.bf16.mxu0 0
    %1845 = vmatpush1.bf16.msra.mxu0 0
    %1846 = vmatprep.subr.bf16.mxu0 0
    %1847 = vmatpush1.bf16.msra.mxu0 0
    %1848 = vmatprep.subr.bf16.mxu0 0
    %1849 = vmatpush1.bf16.msra.mxu0 0
    %1850 = vmatprep.mubr.bf16.mxu0 0
    %1851 = vmatmul.mubr.bf16.gmra.mrb[0].mxu0 %v1813
    %v1852 = vpop.f32.mrb[0].mxu0
    %v1853 = vadd.f32 0.0, %v1852
    %v1854 = vpop.f32.mrb[0].mxu0
    %v1855 = vpop.f32.mrb[0].mxu0
    %v1856 = vadd.f32 0.0, %v1855
    %v1857 = vpop.f32.mrb[0].mxu0
    %1858 = vdwg.mxu0
    %v1859 = vadd.f32 %v1333, %v1853
    %v1860 = vadd.f32 %v1334, %v1856
    %1862 = vrot.lane.b32.xlu0 %v1690, 120
    %v1863 = vpop.permute.xlu0 %1862
    %v1865 = vsel %vm417, %v1863, 0
    %1867 = vmatprep.subr.bf16.mxu0 0
    %1868 = vmatpush1.bf16.xpose.msra.mxu0 %v1697
    %1869 = vmatprep.subr.bf16.mxu0 0
    %1870 = vmatpush1.bf16.xpose.msra.mxu0 0
    %1871 = vmatprep.subr.bf16.mxu0 0
    %1872 = vmatpush1.bf16.xpose.msra.mxu0 0
    %1873 = vmatprep.subr.bf16.mxu0 0
    %1874 = vmatpush1.bf16.xpose.msra.mxu0 0
    %1875 = vmatprep.subr.bf16.mxu0 0
    %1876 = vmatpush1.bf16.xpose.msra.mxu0 0
    %1877 = vmatprep.subr.bf16.mxu0 0
    %1878 = vmatpush1.bf16.xpose.msra.mxu0 0
    %1879 = vmatprep.subr.bf16.mxu0 0
    %1880 = vmatpush1.bf16.xpose.msra.mxu0 0
    %1881 = vmatprep.subr.bf16.mxu0 0
    %1882 = vmatpush1.bf16.xpose.msra.mxu0 0
    %1883 = vmatprep.subr.bf16.mxu0 0
    %1884 = vmatpush1.bf16.xpose.msra.mxu0 0
    %1885 = vmatprep.subr.bf16.mxu0 0
    %1886 = vmatpush1.bf16.xpose.msra.mxu0 0
    %1887 = vmatprep.subr.bf16.mxu0 0
    %1888 = vmatpush1.bf16.xpose.msra.mxu0 0
    %1889 = vmatprep.subr.bf16.mxu0 0
    %1890 = vmatpush1.bf16.xpose.msra.mxu0 0
    %1891 = vmatprep.subr.bf16.mxu0 0
    %1892 = vmatpush1.bf16.xpose.msra.mxu0 0
    %1893 = vmatprep.subr.bf16.mxu0 0
    %1894 = vmatpush1.bf16.xpose.msra.mxu0 0
    %1895 = vmatprep.subr.bf16.mxu0 0
    %1896 = vmatpush1.bf16.xpose.msra.mxu0 0
    %1897 = vmatprep.subr.bf16.mxu0 0
    %1898 = vmatpush1.bf16.xpose.msra.mxu0 0
    %1899 = vmatprep.mubr.bf16.mxu0 0
    %1900 = vmatmul.mubr.bf16.gmra.mrb[0].mxu0 %v1865
    %v1901 = vpop.f32.mrb[0].mxu0
    %v1902 = vadd.f32 0.0, %v1901
    %v1903 = vpop.f32.mrb[0].mxu0
    %v1904 = vpop.f32.mrb[0].mxu0
    %v1905 = vadd.f32 0.0, %v1904
    %v1906 = vpop.f32.mrb[0].mxu0
    %1907 = vdwg.mxu0
    %v1908 = vsel %vm52, %v1902, -1e+30
    %v1909 = vsel %vm53, %v1905, -1e+30
    %v1910 = vsel %vm467, %v1908, -inf
    %1911 = vmax.xlane.f32.xlu0 %v1910
    %v1912 = vpop.xlane.xlu0 %1911
    %v1913 = vsel %vm467, %v1909, -inf
    %1914 = vmax.xlane.f32.xlu0 %v1913
    %v1915 = vpop.xlane.xlu0 %1914
    %v1916 = vsub.f32 %v1908, %v1912
    %v1917 = vsub.f32 %v1909, %v1915
    %v1918 = vmul.f32 %v1916, 1.442695
    %v1919 = vpow.pop %v1918
    %v1920 = vmul.f32 %v1917, 1.442695
    %v1921 = vpow.pop %v1920
    %v1922 = vsel %vm467, %v1919, 0.0
    %1923 = vadd.xlane.f32.xlu0 %v1922
    %v1924 = vpop.xlane.xlu0 %1923
    %v1925 = vsel %vm467, %v1921, 0.0
    %1926 = vadd.xlane.f32.xlu0 %v1925
    %v1927 = vpop.xlane.xlu0 %1926
    %v1928 = vrcp.pop %v1924
    %v1929 = vrcp.pop %v1927
    %v1930 = vmul.f32 %v1919, %v1928
    %v1931 = vmul.f32 %v1921, %v1929
    %v1932 = vpack.c.bf16 %v1931, %v1930
    %v1934 = vsel %vm467, %v1932, 0
    %1936 = vmatprep.subr.bf16.mxu0 0
    %1937 = vmatpush1.bf16.msra.mxu0 %v1692
    %1938 = vmatprep.subr.bf16.mxu0 0
    %1939 = vmatpush1.bf16.msra.mxu0 0
    %1940 = vmatprep.subr.bf16.mxu0 0
    %1941 = vmatpush1.bf16.msra.mxu0 0
    %1942 = vmatprep.subr.bf16.mxu0 0
    %1943 = vmatpush1.bf16.msra.mxu0 0
    %1944 = vmatprep.subr.bf16.mxu0 0
    %1945 = vmatpush1.bf16.msra.mxu0 0
    %1946 = vmatprep.subr.bf16.mxu0 0
    %1947 = vmatpush1.bf16.msra.mxu0 0
    %1948 = vmatprep.subr.bf16.mxu0 0
    %1949 = vmatpush1.bf16.msra.mxu0 0
    %1950 = vmatprep.subr.bf16.mxu0 0
    %1951 = vmatpush1.bf16.msra.mxu0 0
    %1952 = vmatprep.subr.bf16.mxu0 0
    %1953 = vmatpush1.bf16.msra.mxu0 0
    %1954 = vmatprep.subr.bf16.mxu0 0
    %1955 = vmatpush1.bf16.msra.mxu0 0
    %1956 = vmatprep.subr.bf16.mxu0 0
    %1957 = vmatpush1.bf16.msra.mxu0 0
    %1958 = vmatprep.subr.bf16.mxu0 0
    %1959 = vmatpush1.bf16.msra.mxu0 0
    %1960 = vmatprep.subr.bf16.mxu0 0
    %1961 = vmatpush1.bf16.msra.mxu0 0
    %1962 = vmatprep.subr.bf16.mxu0 0
    %1963 = vmatpush1.bf16.msra.mxu0 0
    %1964 = vmatprep.subr.bf16.mxu0 0
    %1965 = vmatpush1.bf16.msra.mxu0 0
    %1966 = vmatprep.subr.bf16.mxu0 0
    %1967 = vmatpush1.bf16.msra.mxu0 0
    %1968 = vmatprep.mubr.bf16.mxu0 0
    %1969 = vmatmul.mubr.bf16.gmra.mrb[0].mxu0 %v1934
    %v1970 = vpop.f32.mrb[0].mxu0
    %v1971 = vadd.f32 0.0, %v1970
    %v1972 = vpop.f32.mrb[0].mxu0
    %v1973 = vpop.f32.mrb[0].mxu0
    %v1974 = vadd.f32 0.0, %v1973
    %v1975 = vpop.f32.mrb[0].mxu0
    %1976 = vdwg.mxu0
    %v1977 = vpack.c.bf16 %v1974, %v1971
    %s1978 = scalar_lea.vmem %s8, 20
    %v1979 = vld [vmem:[%s1978] sm:$0xf]
    %v1981 = vsel %vm417, %v1977, 0
    %v1984 = vsel %vm540, %v1979, 0
    %1986 = vmatprep.subr.bf16.mxu0 0
    %1987 = vmatpush1.bf16.msra.mxu0 %v1984
    %1988 = vmatprep.subr.bf16.mxu0 0
    %1989 = vmatpush1.bf16.msra.mxu0 0
    %1990 = vmatprep.subr.bf16.mxu0 0
    %1991 = vmatpush1.bf16.msra.mxu0 0
    %1992 = vmatprep.subr.bf16.mxu0 0
    %1993 = vmatpush1.bf16.msra.mxu0 0
    %1994 = vmatprep.subr.bf16.mxu0 0
    %1995 = vmatpush1.bf16.msra.mxu0 0
    %1996 = vmatprep.subr.bf16.mxu0 0
    %1997 = vmatpush1.bf16.msra.mxu0 0
    %1998 = vmatprep.subr.bf16.mxu0 0
    %1999 = vmatpush1.bf16.msra.mxu0 0
    %2000 = vmatprep.subr.bf16.mxu0 0
    %2001 = vmatpush1.bf16.msra.mxu0 0
    %2002 = vmatprep.subr.bf16.mxu0 0
    %2003 = vmatpush1.bf16.msra.mxu0 0
    %2004 = vmatprep.subr.bf16.mxu0 0
    %2005 = vmatpush1.bf16.msra.mxu0 0
    %2006 = vmatprep.subr.bf16.mxu0 0
    %2007 = vmatpush1.bf16.msra.mxu0 0
    %2008 = vmatprep.subr.bf16.mxu0 0
    %2009 = vmatpush1.bf16.msra.mxu0 0
    %2010 = vmatprep.subr.bf16.mxu0 0
    %2011 = vmatpush1.bf16.msra.mxu0 0
    %2012 = vmatprep.subr.bf16.mxu0 0
    %2013 = vmatpush1.bf16.msra.mxu0 0
    %2014 = vmatprep.subr.bf16.mxu0 0
    %2015 = vmatpush1.bf16.msra.mxu0 0
    %2016 = vmatprep.subr.bf16.mxu0 0
    %2017 = vmatpush1.bf16.msra.mxu0 0
    %2018 = vmatprep.mubr.bf16.mxu0 0
    %2019 = vmatmul.mubr.bf16.gmra.mrb[0].mxu0 %v1981
    %v2020 = vpop.f32.mrb[0].mxu0
    %v2021 = vadd.f32 0.0, %v2020
    %v2022 = vpop.f32.mrb[0].mxu0
    %v2023 = vpop.f32.mrb[0].mxu0
    %v2024 = vadd.f32 0.0, %v2023
    %v2025 = vpop.f32.mrb[0].mxu0
    %2026 = vdwg.mxu0
    %v2027 = vadd.f32 %v1859, %v2021
    %v2028 = vadd.f32 %v1860, %v2024
    %2029 = vrot.lane.b32.xlu0 %v1690, 112
    %v2030 = vpop.permute.xlu0 %2029
    %2032 = vrot.lane.b32.xlu0 %v1691, 120
    %v2033 = vpop.permute.xlu0 %2032
    %v2035 = vsel %vm417, %v2030, 0
    %v2038 = vsel %vm417, %v2033, 0
    %2040 = vmatprep.subr.bf16.mxu0 0
    %2041 = vmatpush1.bf16.xpose.msra.mxu0 %v2038
    %2042 = vmatprep.subr.bf16.mxu0 0
    %2043 = vmatpush1.bf16.xpose.msra.mxu0 0
    %2044 = vmatprep.subr.bf16.mxu0 0
    %2045 = vmatpush1.bf16.xpose.msra.mxu0 0
    %2046 = vmatprep.subr.bf16.mxu0 0
    %2047 = vmatpush1.bf16.xpose.msra.mxu0 0
    %2048 = vmatprep.subr.bf16.mxu0 0
    %2049 = vmatpush1.bf16.xpose.msra.mxu0 0
    %2050 = vmatprep.subr.bf16.mxu0 0
    %2051 = vmatpush1.bf16.xpose.msra.mxu0 0
    %2052 = vmatprep.subr.bf16.mxu0 0
    %2053 = vmatpush1.bf16.xpose.msra.mxu0 0
    %2054 = vmatprep.subr.bf16.mxu0 0
    %2055 = vmatpush1.bf16.xpose.msra.mxu0 0
    %2056 = vmatprep.subr.bf16.mxu0 0
    %2057 = vmatpush1.bf16.xpose.msra.mxu0 0
    %2058 = vmatprep.subr.bf16.mxu0 0
    %2059 = vmatpush1.bf16.xpose.msra.mxu0 0
    %2060 = vmatprep.subr.bf16.mxu0 0
    %2061 = vmatpush1.bf16.xpose.msra.mxu0 0
    %2062 = vmatprep.subr.bf16.mxu0 0
    %2063 = vmatpush1.bf16.xpose.msra.mxu0 0
    %2064 = vmatprep.subr.bf16.mxu0 0
    %2065 = vmatpush1.bf16.xpose.msra.mxu0 0
    %2066 = vmatprep.subr.bf16.mxu0 0
    %2067 = vmatpush1.bf16.xpose.msra.mxu0 0
    %2068 = vmatprep.subr.bf16.mxu0 0
    %2069 = vmatpush1.bf16.xpose.msra.mxu0 0
    %2070 = vmatprep.subr.bf16.mxu0 0
    %2071 = vmatpush1.bf16.xpose.msra.mxu0 0
    %2072 = vmatprep.mubr.bf16.mxu0 0
    %2073 = vmatmul.mubr.bf16.gmra.mrb[0].mxu0 %v2035
    %v2074 = vpop.f32.mrb[0].mxu0
    %v2075 = vadd.f32 0.0, %v2074
    %v2076 = vpop.f32.mrb[0].mxu0
    %v2077 = vpop.f32.mrb[0].mxu0
    %v2078 = vadd.f32 0.0, %v2077
    %v2079 = vpop.f32.mrb[0].mxu0
    %2080 = vdwg.mxu0
    %v2081 = vsel %vm52, %v2075, -1e+30
    %v2082 = vsel %vm53, %v2078, -1e+30
    %v2083 = vsel %vm467, %v2081, -inf
    %2084 = vmax.xlane.f32.xlu0 %v2083
    %v2085 = vpop.xlane.xlu0 %2084
    %v2086 = vsel %vm467, %v2082, -inf
    %2087 = vmax.xlane.f32.xlu0 %v2086
    %v2088 = vpop.xlane.xlu0 %2087
    %v2089 = vsub.f32 %v2081, %v2085
    %v2090 = vsub.f32 %v2082, %v2088
    %v2091 = vmul.f32 %v2089, 1.442695
    %v2092 = vpow.pop %v2091
    %v2093 = vmul.f32 %v2090, 1.442695
    %v2094 = vpow.pop %v2093
    %v2095 = vsel %vm467, %v2092, 0.0
    %2096 = vadd.xlane.f32.xlu0 %v2095
    %v2097 = vpop.xlane.xlu0 %2096
    %v2098 = vsel %vm467, %v2094, 0.0
    %2099 = vadd.xlane.f32.xlu0 %v2098
    %v2100 = vpop.xlane.xlu0 %2099
    %v2101 = vrcp.pop %v2097
    %v2102 = vrcp.pop %v2100
    %v2103 = vmul.f32 %v2092, %v2101
    %v2104 = vmul.f32 %v2094, %v2102
    %v2105 = vpack.c.bf16 %v2104, %v2103
    %2107 = vrot.lane.b32.xlu0 %v1692, 120
    %v2108 = vpop.permute.xlu0 %2107
    %v2111 = vsel %vm467, %v2105, 0
    %2113 = vmatprep.subr.bf16.mxu0 0
    %2114 = vmatpush1.bf16.msra.mxu0 %v2108
    %2115 = vmatprep.subr.bf16.mxu0 0
    %2116 = vmatpush1.bf16.msra.mxu0 0
    %2117 = vmatprep.subr.bf16.mxu0 0
    %2118 = vmatpush1.bf16.msra.mxu0 0
    %2119 = vmatprep.subr.bf16.mxu0 0
    %2120 = vmatpush1.bf16.msra.mxu0 0
    %2121 = vmatprep.subr.bf16.mxu0 0
    %2122 = vmatpush1.bf16.msra.mxu0 0
    %2123 = vmatprep.subr.bf16.mxu0 0
    %2124 = vmatpush1.bf16.msra.mxu0 0
    %2125 = vmatprep.subr.bf16.mxu0 0
    %2126 = vmatpush1.bf16.msra.mxu0 0
    %2127 = vmatprep.subr.bf16.mxu0 0
    %2128 = vmatpush1.bf16.msra.mxu0 0
    %2129 = vmatprep.subr.bf16.mxu0 0
    %2130 = vmatpush1.bf16.msra.mxu0 0
    %2131 = vmatprep.subr.bf16.mxu0 0
    %2132 = vmatpush1.bf16.msra.mxu0 0
    %2133 = vmatprep.subr.bf16.mxu0 0
    %2134 = vmatpush1.bf16.msra.mxu0 0
    %2135 = vmatprep.subr.bf16.mxu0 0
    %2136 = vmatpush1.bf16.msra.mxu0 0
    %2137 = vmatprep.subr.bf16.mxu0 0
    %2138 = vmatpush1.bf16.msra.mxu0 0
    %2139 = vmatprep.subr.bf16.mxu0 0
    %2140 = vmatpush1.bf16.msra.mxu0 0
    %2141 = vmatprep.subr.bf16.mxu0 0
    %2142 = vmatpush1.bf16.msra.mxu0 0
    %2143 = vmatprep.subr.bf16.mxu0 0
    %2144 = vmatpush1.bf16.msra.mxu0 0
    %2145 = vmatprep.mubr.bf16.mxu0 0
    %2146 = vmatmul.mubr.bf16.gmra.mrb[0].mxu0 %v2111
    %v2147 = vpop.f32.mrb[0].mxu0
    %v2148 = vadd.f32 0.0, %v2147
    %v2149 = vpop.f32.mrb[0].mxu0
    %v2150 = vpop.f32.mrb[0].mxu0
    %v2151 = vadd.f32 0.0, %v2150
    %v2152 = vpop.f32.mrb[0].mxu0
    %2153 = vdwg.mxu0
    %v2154 = vpack.c.bf16 %v2151, %v2148
    %s2155 = scalar_lea.vmem %s8, 24
    %v2156 = vld [vmem:[%s2155] sm:$0xf]
    %v2158 = vsel %vm417, %v2154, 0
    %v2161 = vsel %vm540, %v2156, 0
    %2163 = vmatprep.subr.bf16.mxu0 0
    %2164 = vmatpush1.bf16.msra.mxu0 %v2161
    %2165 = vmatprep.subr.bf16.mxu0 0
    %2166 = vmatpush1.bf16.msra.mxu0 0
    %2167 = vmatprep.subr.bf16.mxu0 0
    %2168 = vmatpush1.bf16.msra.mxu0 0
    %2169 = vmatprep.subr.bf16.mxu0 0
    %2170 = vmatpush1.bf16.msra.mxu0 0
    %2171 = vmatprep.subr.bf16.mxu0 0
    %2172 = vmatpush1.bf16.msra.mxu0 0
    %2173 = vmatprep.subr.bf16.mxu0 0
    %2174 = vmatpush1.bf16.msra.mxu0 0
    %2175 = vmatprep.subr.bf16.mxu0 0
    %2176 = vmatpush1.bf16.msra.mxu0 0
    %2177 = vmatprep.subr.bf16.mxu0 0
    %2178 = vmatpush1.bf16.msra.mxu0 0
    %2179 = vmatprep.subr.bf16.mxu0 0
    %2180 = vmatpush1.bf16.msra.mxu0 0
    %2181 = vmatprep.subr.bf16.mxu0 0
    %2182 = vmatpush1.bf16.msra.mxu0 0
    %2183 = vmatprep.subr.bf16.mxu0 0
    %2184 = vmatpush1.bf16.msra.mxu0 0
    %2185 = vmatprep.subr.bf16.mxu0 0
    %2186 = vmatpush1.bf16.msra.mxu0 0
    %2187 = vmatprep.subr.bf16.mxu0 0
    %2188 = vmatpush1.bf16.msra.mxu0 0
    %2189 = vmatprep.subr.bf16.mxu0 0
    %2190 = vmatpush1.bf16.msra.mxu0 0
    %2191 = vmatprep.subr.bf16.mxu0 0
    %2192 = vmatpush1.bf16.msra.mxu0 0
    %2193 = vmatprep.subr.bf16.mxu0 0
    %2194 = vmatpush1.bf16.msra.mxu0 0
    %2195 = vmatprep.mubr.bf16.mxu0 0
    %2196 = vmatmul.mubr.bf16.gmra.mrb[0].mxu0 %v2158
    %v2197 = vpop.f32.mrb[0].mxu0
    %v2198 = vadd.f32 0.0, %v2197
    %v2199 = vpop.f32.mrb[0].mxu0
    %v2200 = vpop.f32.mrb[0].mxu0
    %v2201 = vadd.f32 0.0, %v2200
    %v2202 = vpop.f32.mrb[0].mxu0
    %2203 = vdwg.mxu0
    %v2204 = vadd.f32 %v2027, %v2198
    %v2205 = vadd.f32 %v2028, %v2201
    %2206 = vrot.lane.b32.xlu0 %v1690, 104
    %v2207 = vpop.permute.xlu0 %2206
    %v2209 = vsel %vm417, %v2207, 0
    %2211 = vmatprep.subr.bf16.mxu0 0
    %2212 = vmatpush1.bf16.xpose.msra.mxu0 %v2038
    %2213 = vmatprep.subr.bf16.mxu0 0
    %2214 = vmatpush1.bf16.xpose.msra.mxu0 0
    %2215 = vmatprep.subr.bf16.mxu0 0
    %2216 = vmatpush1.bf16.xpose.msra.mxu0 0
    %2217 = vmatprep.subr.bf16.mxu0 0
    %2218 = vmatpush1.bf16.xpose.msra.mxu0 0
    %2219 = vmatprep.subr.bf16.mxu0 0
    %2220 = vmatpush1.bf16.xpose.msra.mxu0 0
    %2221 = vmatprep.subr.bf16.mxu0 0
    %2222 = vmatpush1.bf16.xpose.msra.mxu0 0
    %2223 = vmatprep.subr.bf16.mxu0 0
    %2224 = vmatpush1.bf16.xpose.msra.mxu0 0
    %2225 = vmatprep.subr.bf16.mxu0 0
    %2226 = vmatpush1.bf16.xpose.msra.mxu0 0
    %2227 = vmatprep.subr.bf16.mxu0 0
    %2228 = vmatpush1.bf16.xpose.msra.mxu0 0
    %2229 = vmatprep.subr.bf16.mxu0 0
    %2230 = vmatpush1.bf16.xpose.msra.mxu0 0
    %2231 = vmatprep.subr.bf16.mxu0 0
    %2232 = vmatpush1.bf16.xpose.msra.mxu0 0
    %2233 = vmatprep.subr.bf16.mxu0 0
    %2234 = vmatpush1.bf16.xpose.msra.mxu0 0
    %2235 = vmatprep.subr.bf16.mxu0 0
    %2236 = vmatpush1.bf16.xpose.msra.mxu0 0
    %2237 = vmatprep.subr.bf16.mxu0 0
    %2238 = vmatpush1.bf16.xpose.msra.mxu0 0
    %2239 = vmatprep.subr.bf16.mxu0 0
    %2240 = vmatpush1.bf16.xpose.msra.mxu0 0
    %2241 = vmatprep.subr.bf16.mxu0 0
    %2242 = vmatpush1.bf16.xpose.msra.mxu0 0
    %2243 = vmatprep.mubr.bf16.mxu0 0
    %2244 = vmatmul.mubr.bf16.gmra.mrb[0].mxu0 %v2209
    %v2245 = vpop.f32.mrb[0].mxu0
    %v2246 = vadd.f32 0.0, %v2245
    %v2247 = vpop.f32.mrb[0].mxu0
    %v2248 = vpop.f32.mrb[0].mxu0
    %v2249 = vadd.f32 0.0, %v2248
    %v2250 = vpop.f32.mrb[0].mxu0
    %2251 = vdwg.mxu0
    %v2252 = vsel %vm52, %v2246, -1e+30
    %v2253 = vsel %vm53, %v2249, -1e+30
    %v2254 = vsel %vm467, %v2252, -inf
    %2255 = vmax.xlane.f32.xlu0 %v2254
    %v2256 = vpop.xlane.xlu0 %2255
    %v2257 = vsel %vm467, %v2253, -inf
    %2258 = vmax.xlane.f32.xlu0 %v2257
    %v2259 = vpop.xlane.xlu0 %2258
    %v2260 = vsub.f32 %v2252, %v2256
    %v2261 = vsub.f32 %v2253, %v2259
    %v2262 = vmul.f32 %v2260, 1.442695
    %v2263 = vpow.pop %v2262
    %v2264 = vmul.f32 %v2261, 1.442695
    %v2265 = vpow.pop %v2264
    %v2266 = vsel %vm467, %v2263, 0.0
    %2267 = vadd.xlane.f32.xlu0 %v2266
    %v2268 = vpop.xlane.xlu0 %2267
    %v2269 = vsel %vm467, %v2265, 0.0
    %2270 = vadd.xlane.f32.xlu0 %v2269
    %v2271 = vpop.xlane.xlu0 %2270
    %v2272 = vrcp.pop %v2268
    %v2273 = vrcp.pop %v2271
    %v2274 = vmul.f32 %v2263, %v2272
    %v2275 = vmul.f32 %v2265, %v2273
    %v2276 = vpack.c.bf16 %v2275, %v2274
    %v2278 = vsel %vm467, %v2276, 0
    %2280 = vmatprep.subr.bf16.mxu0 0
    %2281 = vmatpush1.bf16.msra.mxu0 %v2108
    %2282 = vmatprep.subr.bf16.mxu0 0
    %2283 = vmatpush1.bf16.msra.mxu0 0
    %2284 = vmatprep.subr.bf16.mxu0 0
    %2285 = vmatpush1.bf16.msra.mxu0 0
    %2286 = vmatprep.subr.bf16.mxu0 0
    %2287 = vmatpush1.bf16.msra.mxu0 0
    %2288 = vmatprep.subr.bf16.mxu0 0
    %2289 = vmatpush1.bf16.msra.mxu0 0
    %2290 = vmatprep.subr.bf16.mxu0 0
    %2291 = vmatpush1.bf16.msra.mxu0 0
    %2292 = vmatprep.subr.bf16.mxu0 0
    %2293 = vmatpush1.bf16.msra.mxu0 0
    %2294 = vmatprep.subr.bf16.mxu0 0
    %2295 = vmatpush1.bf16.msra.mxu0 0
    %2296 = vmatprep.subr.bf16.mxu0 0
    %2297 = vmatpush1.bf16.msra.mxu0 0
    %2298 = vmatprep.subr.bf16.mxu0 0
    %2299 = vmatpush1.bf16.msra.mxu0 0
    %2300 = vmatprep.subr.bf16.mxu0 0
    %2301 = vmatpush1.bf16.msra.mxu0 0
    %2302 = vmatprep.subr.bf16.mxu0 0
    %2303 = vmatpush1.bf16.msra.mxu0 0
    %2304 = vmatprep.subr.bf16.mxu0 0
    %2305 = vmatpush1.bf16.msra.mxu0 0
    %2306 = vmatprep.subr.bf16.mxu0 0
    %2307 = vmatpush1.bf16.msra.mxu0 0
    %2308 = vmatprep.subr.bf16.mxu0 0
    %2309 = vmatpush1.bf16.msra.mxu0 0
    %2310 = vmatprep.subr.bf16.mxu0 0
    %2311 = vmatpush1.bf16.msra.mxu0 0
    %2312 = vmatprep.mubr.bf16.mxu0 0
    %2313 = vmatmul.mubr.bf16.gmra.mrb[0].mxu0 %v2278
    %v2314 = vpop.f32.mrb[0].mxu0
    %v2315 = vadd.f32 0.0, %v2314
    %v2316 = vpop.f32.mrb[0].mxu0
    %v2317 = vpop.f32.mrb[0].mxu0
    %v2318 = vadd.f32 0.0, %v2317
    %v2319 = vpop.f32.mrb[0].mxu0
    %2320 = vdwg.mxu0
    %v2321 = vpack.c.bf16 %v2318, %v2315
    %s2322 = scalar_lea.vmem %s8, 28
    %v2323 = vld [vmem:[%s2322] sm:$0xf]
    %v2325 = vsel %vm417, %v2321, 0
    %v2328 = vsel %vm540, %v2323, 0
    %2330 = vmatprep.subr.bf16.mxu0 0
    %2331 = vmatpush1.bf16.msra.mxu0 %v2328
    %2332 = vmatprep.subr.bf16.mxu0 0
    %2333 = vmatpush1.bf16.msra.mxu0 0
    %2334 = vmatprep.subr.bf16.mxu0 0
    %2335 = vmatpush1.bf16.msra.mxu0 0
    %2336 = vmatprep.subr.bf16.mxu0 0
    %2337 = vmatpush1.bf16.msra.mxu0 0
    %2338 = vmatprep.subr.bf16.mxu0 0
    %2339 = vmatpush1.bf16.msra.mxu0 0
    %2340 = vmatprep.subr.bf16.mxu0 0
    %2341 = vmatpush1.bf16.msra.mxu0 0
    %2342 = vmatprep.subr.bf16.mxu0 0
    %2343 = vmatpush1.bf16.msra.mxu0 0
    %2344 = vmatprep.subr.bf16.mxu0 0
    %2345 = vmatpush1.bf16.msra.mxu0 0
    %2346 = vmatprep.subr.bf16.mxu0 0
    %2347 = vmatpush1.bf16.msra.mxu0 0
    %2348 = vmatprep.subr.bf16.mxu0 0
    %2349 = vmatpush1.bf16.msra.mxu0 0
    %2350 = vmatprep.subr.bf16.mxu0 0
    %2351 = vmatpush1.bf16.msra.mxu0 0
    %2352 = vmatprep.subr.bf16.mxu0 0
    %2353 = vmatpush1.bf16.msra.mxu0 0
    %2354 = vmatprep.subr.bf16.mxu0 0
    %2355 = vmatpush1.bf16.msra.mxu0 0
    %2356 = vmatprep.subr.bf16.mxu0 0
    %2357 = vmatpush1.bf16.msra.mxu0 0
    %2358 = vmatprep.subr.bf16.mxu0 0
    %2359 = vmatpush1.bf16.msra.mxu0 0
    %2360 = vmatprep.subr.bf16.mxu0 0
    %2361 = vmatpush1.bf16.msra.mxu0 0
    %2362 = vmatprep.mubr.bf16.mxu0 0
    %2363 = vmatmul.mubr.bf16.gmra.mrb[0].mxu0 %v2325
    %v2364 = vpop.f32.mrb[0].mxu0
    %v2365 = vadd.f32 0.0, %v2364
    %v2366 = vpop.f32.mrb[0].mxu0
    %v2367 = vpop.f32.mrb[0].mxu0
    %v2368 = vadd.f32 0.0, %v2367
    %v2369 = vpop.f32.mrb[0].mxu0
    %2370 = vdwg.mxu0
    %v2371 = vadd.f32 %v2204, %v2365
    %v2372 = vadd.f32 %v2205, %v2368
    %v2373 = vmul.f32 %v2371, %v2371
    %v2374 = vmul.f32 %v2372, %v2372
    %v2375 = vsel %vm63, %v2373, 0.0
    %2376 = vadd.xlane.f32.xlu0 %v2375
    %v2377 = vpop.xlane.xlu0 %2376
    %v2378 = vsel %vm63, %v2374, 0.0
    %2379 = vadd.xlane.f32.xlu0 %v2378
    %v2380 = vpop.xlane.xlu0 %2379
    %v2381 = vmul.f32 %v2377, %v70
    %v2382 = vmul.f32 %v2380, %v70
    %v2383 = vadd.f32 %v2381, 1e-05
    %v2384 = vadd.f32 %v2382, 1e-05
    %v2385 = vrsqrt.pop %v2383
    %v2386 = vrsqrt.pop %v2384
    %v2387 = vmul.f32 %v2371, %v2385
    %v2388 = vmul.f32 %v2372, %v2386
    %v2389 = vlaneseq
    %v2390 = vshrl.u32 %v2389, 7
    %v2391 = vsub.s32 0, %v2390
    %v2392 = vrot.slane %v1336, %v2391
    %v2393 = vmul.f32 %v2387, %v2392
    %v2394 = vmul.f32 %v2388, %v2392
    %v2395 = vpack.c.bf16 %v2394, %v2393
    %s2396 = scalar_lea.vmem %s9, 16
    %v2397 = vld [vmem:[%s2396] sm:$0xf]
    %v2398 = vld [vmem:[%s2396 + $0x4] sm:$0xf]
    %v2399 = vld [vmem:[%s2396 + $0x8] sm:$0xf]
    %v2400 = vld [vmem:[%s2396 + $0xc] sm:$0xf]
    %v2405 = vunpack.c.l.b16 %v2397
    %v2406 = vunpack.c.l.b16 %v2398
    %v2407 = vunpack.c.l.b16 %v2399
    %v2408 = vunpack.c.l.b16 %v2400
    %v2409 = vpack.c.b16 %v2406, %v2405
    %v2410 = vpack.c.b16 %v2408, %v2407
    %v2414 = vsel %vm63, %v2395, 0
    %2416 = vmatprep.subr.bf16.mxu0 0
    %2417 = vmatpush1.bf16.msra.mxu0 %v2409
    %2418 = vmatprep.subr.bf16.mxu0 0
    %2419 = vmatpush1.bf16.msra.mxu0 %v2410
    %2420 = vmatprep.subr.bf16.mxu0 0
    %2421 = vmatpush1.bf16.msra.mxu0 0
    %2422 = vmatprep.subr.bf16.mxu0 0
    %2423 = vmatpush1.bf16.msra.mxu0 0
    %2424 = vmatprep.subr.bf16.mxu0 0
    %2425 = vmatpush1.bf16.msra.mxu0 0
    %2426 = vmatprep.subr.bf16.mxu0 0
    %2427 = vmatpush1.bf16.msra.mxu0 0
    %2428 = vmatprep.subr.bf16.mxu0 0
    %2429 = vmatpush1.bf16.msra.mxu0 0
    %2430 = vmatprep.subr.bf16.mxu0 0
    %2431 = vmatpush1.bf16.msra.mxu0 0
    %2432 = vmatprep.subr.bf16.mxu0 0
    %2433 = vmatpush1.bf16.msra.mxu0 0
    %2434 = vmatprep.subr.bf16.mxu0 0
    %2435 = vmatpush1.bf16.msra.mxu0 0
    %2436 = vmatprep.subr.bf16.mxu0 0
    %2437 = vmatpush1.bf16.msra.mxu0 0
    %2438 = vmatprep.subr.bf16.mxu0 0
    %2439 = vmatpush1.bf16.msra.mxu0 0
    %2440 = vmatprep.subr.bf16.mxu0 0
    %2441 = vmatpush1.bf16.msra.mxu0 0
    %2442 = vmatprep.subr.bf16.mxu0 0
    %2443 = vmatpush1.bf16.msra.mxu0 0
    %2444 = vmatprep.subr.bf16.mxu0 0
    %2445 = vmatpush1.bf16.msra.mxu0 0
    %2446 = vmatprep.subr.bf16.mxu0 0
    %2447 = vmatpush1.bf16.msra.mxu0 0
    %2448 = vmatprep.mubr.bf16.mxu0 0
    %2449 = vmatmul.mubr.bf16.gmra.mrb[0].mxu0 %v2414
    %v2450 = vpop.f32.mrb[0].mxu0
    %v2451 = vadd.f32 0.0, %v2450
    %v2452 = vpop.f32.mrb[0].mxu0
    %v2453 = vpop.f32.mrb[0].mxu0
    %v2454 = vadd.f32 0.0, %v2453
    %v2455 = vpop.f32.mrb[0].mxu0
    %2456 = vdwg.mxu0
    %s2457 = scalar_lea.vmem %s10, 16
    %v2458 = vld [vmem:[%s2457] sm:$0xf]
    %v2459 = vld [vmem:[%s2457 + $0x4] sm:$0xf]
    %v2460 = vld [vmem:[%s2457 + $0x8] sm:$0xf]
    %v2461 = vld [vmem:[%s2457 + $0xc] sm:$0xf]
    %v2466 = vunpack.c.l.b16 %v2458
    %v2467 = vunpack.c.l.b16 %v2459
    %v2468 = vunpack.c.l.b16 %v2460
    %v2469 = vunpack.c.l.b16 %v2461
    %v2470 = vpack.c.b16 %v2467, %v2466
    %v2471 = vpack.c.b16 %v2469, %v2468
    %2474 = vmatprep.subr.bf16.mxu0 0
    %2475 = vmatpush1.bf16.msra.mxu0 %v2470
    %2476 = vmatprep.subr.bf16.mxu0 0
    %2477 = vmatpush1.bf16.msra.mxu0 %v2471
    %2478 = vmatprep.subr.bf16.mxu0 0
    %2479 = vmatpush1.bf16.msra.mxu0 0
    %2480 = vmatprep.subr.bf16.mxu0 0
    %2481 = vmatpush1.bf16.msra.mxu0 0
    %2482 = vmatprep.subr.bf16.mxu0 0
    %2483 = vmatpush1.bf16.msra.mxu0 0
    %2484 = vmatprep.subr.bf16.mxu0 0
    %2485 = vmatpush1.bf16.msra.mxu0 0
    %2486 = vmatprep.subr.bf16.mxu0 0
    %2487 = vmatpush1.bf16.msra.mxu0 0
    %2488 = vmatprep.subr.bf16.mxu0 0
    %2489 = vmatpush1.bf16.msra.mxu0 0
    %2490 = vmatprep.subr.bf16.mxu0 0
    %2491 = vmatpush1.bf16.msra.mxu0 0
    %2492 = vmatprep.subr.bf16.mxu0 0
    %2493 = vmatpush1.bf16.msra.mxu0 0
    %2494 = vmatprep.subr.bf16.mxu0 0
    %2495 = vmatpush1.bf16.msra.mxu0 0
    %2496 = vmatprep.subr.bf16.mxu0 0
    %2497 = vmatpush1.bf16.msra.mxu0 0
    %2498 = vmatprep.subr.bf16.mxu0 0
    %2499 = vmatpush1.bf16.msra.mxu0 0
    %2500 = vmatprep.subr.bf16.mxu0 0
    %2501 = vmatpush1.bf16.msra.mxu0 0
    %2502 = vmatprep.subr.bf16.mxu0 0
    %2503 = vmatpush1.bf16.msra.mxu0 0
    %2504 = vmatprep.subr.bf16.mxu0 0
    %2505 = vmatpush1.bf16.msra.mxu0 0
    %2506 = vmatprep.mubr.bf16.mxu0 0
    %2507 = vmatmul.mubr.bf16.gmra.mrb[0].mxu0 %v2414
    %v2508 = vpop.f32.mrb[0].mxu0
    %v2509 = vadd.f32 0.0, %v2508
    %v2510 = vpop.f32.mrb[0].mxu0
    %v2511 = vpop.f32.mrb[0].mxu0
    %v2512 = vadd.f32 0.0, %v2511
    %v2513 = vpop.f32.mrb[0].mxu0
    %2514 = vdwg.mxu0
    %v2515 = vxor.u32 %v2451, 2147483648
    %v2516 = vxor.u32 %v2454, 2147483648
    %v2517 = vmul.f32 %v2515, 1.442695
    %v2518 = vpow.pop %v2517
    %v2519 = vmul.f32 %v2516, 1.442695
    %v2520 = vpow.pop %v2519
    %v2521 = vadd.f32 %v2518, 1.0
    %v2522 = vadd.f32 %v2520, 1.0
    %v2523 = vrcp.pop %v2521
    %v2524 = vmul.f32 1.0, %v2523
    %v2525 = vrcp.pop %v2522
    %v2526 = vmul.f32 1.0, %v2525
    %v2527 = vmul.f32 %v2451, %v2524
    %v2528 = vmul.f32 %v2454, %v2526
    %v2529 = vmul.f32 %v2527, %v2509
    %v2530 = vmul.f32 %v2528, %v2512
    %v2531 = vpack.c.bf16 %v2530, %v2529
    %s2532 = scalar_lea.vmem %s11, 32
    %v2533 = vld [vmem:[%s2532] sm:$0xf]
    %v2534 = vld [vmem:[%s2532 + $0x4] sm:$0xf]
    %v2535 = vld [vmem:[%s2532 + $0x8] sm:$0xf]
    %v2536 = vld [vmem:[%s2532 + $0xc] sm:$0xf]
    %v2537 = vld [vmem:[%s2532 + $0x10] sm:$0xf]
    %v2538 = vld [vmem:[%s2532 + $0x14] sm:$0xf]
    %v2539 = vld [vmem:[%s2532 + $0x18] sm:$0xf]
    %v2540 = vld [vmem:[%s2532 + $0x1c] sm:$0xf]
    %v2549 = vunpack.c.l.b16 %v2533
    %v2550 = vunpack.c.l.b16 %v2534
    %v2551 = vunpack.c.l.b16 %v2535
    %v2552 = vunpack.c.l.b16 %v2536
    %v2553 = vunpack.c.l.b16 %v2537
    %v2554 = vunpack.c.l.b16 %v2538
    %v2555 = vunpack.c.l.b16 %v2539
    %v2556 = vunpack.c.l.b16 %v2540
    %v2557 = vpack.c.b16 %v2550, %v2549
    %v2558 = vpack.c.b16 %v2552, %v2551
    %v2559 = vpack.c.b16 %v2554, %v2553
    %v2560 = vpack.c.b16 %v2556, %v2555
    %v2566 = vsel %vm1288, %v2531, 0
    %2568 = vmatprep.subr.bf16.mxu0 0
    %2569 = vmatpush1.bf16.msra.mxu0 %v2557
    %2570 = vmatprep.subr.bf16.mxu0 0
    %2571 = vmatpush1.bf16.msra.mxu0 %v2558
    %2572 = vmatprep.subr.bf16.mxu0 0
    %2573 = vmatpush1.bf16.msra.mxu0 %v2559
    %2574 = vmatprep.subr.bf16.mxu0 0
    %2575 = vmatpush1.bf16.msra.mxu0 %v2560
    %2576 = vmatprep.subr.bf16.mxu0 0
    %2577 = vmatpush1.bf16.msra.mxu0 0
    %2578 = vmatprep.subr.bf16.mxu0 0
    %2579 = vmatpush1.bf16.msra.mxu0 0
    %2580 = vmatprep.subr.bf16.mxu0 0
    %2581 = vmatpush1.bf16.msra.mxu0 0
    %2582 = vmatprep.subr.bf16.mxu0 0
    %2583 = vmatpush1.bf16.msra.mxu0 0
    %2584 = vmatprep.subr.bf16.mxu0 0
    %2585 = vmatpush1.bf16.msra.mxu0 0
    %2586 = vmatprep.subr.bf16.mxu0 0
    %2587 = vmatpush1.bf16.msra.mxu0 0
    %2588 = vmatprep.subr.bf16.mxu0 0
    %2589 = vmatpush1.bf16.msra.mxu0 0
    %2590 = vmatprep.subr.bf16.mxu0 0
    %2591 = vmatpush1.bf16.msra.mxu0 0
    %2592 = vmatprep.subr.bf16.mxu0 0
    %2593 = vmatpush1.bf16.msra.mxu0 0
    %2594 = vmatprep.subr.bf16.mxu0 0
    %2595 = vmatpush1.bf16.msra.mxu0 0
    %2596 = vmatprep.subr.bf16.mxu0 0
    %2597 = vmatpush1.bf16.msra.mxu0 0
    %2598 = vmatprep.subr.bf16.mxu0 0
    %2599 = vmatpush1.bf16.msra.mxu0 0
    %2600 = vmatprep.mubr.bf16.mxu0 0
    %2601 = vmatmul.mubr.bf16.gmra.mrb[0].mxu0 %v2566
    %v2602 = vpop.f32.mrb[0].mxu0
    %v2603 = vadd.f32 0.0, %v2602
    %v2604 = vpop.f32.mrb[0].mxu0
    %v2605 = vpop.f32.mrb[0].mxu0
    %v2606 = vadd.f32 0.0, %v2605
    %v2607 = vpop.f32.mrb[0].mxu0
    %2608 = vdwg.mxu0
    %v2609 = vadd.f32 %v2371, %v2603
    %v2610 = vadd.f32 %v2372, %v2606
    %v2611 = vld [vmem:[%s2] sm:$0x1]
    %v2612 = vmul.f32 %v2609, %v2609
    %v2613 = vmul.f32 %v2610, %v2610
    %v2614 = vsel %vm63, %v2612, 0.0
    %2615 = vadd.xlane.f32.xlu0 %v2614
    %v2616 = vpop.xlane.xlu0 %2615
    %v2617 = vsel %vm63, %v2613, 0.0
    %2618 = vadd.xlane.f32.xlu0 %v2617
    %v2619 = vpop.xlane.xlu0 %2618
    %v2620 = vmul.f32 %v2616, %v70
    %v2621 = vmul.f32 %v2619, %v70
    %v2622 = vadd.f32 %v2620, 1e-05
    %v2623 = vadd.f32 %v2621, 1e-05
    %v2624 = vrsqrt.pop %v2622
    %v2625 = vrsqrt.pop %v2623
    %v2626 = vmul.f32 %v2609, %v2624
    %v2627 = vmul.f32 %v2610, %v2625
    %v2628 = vlaneseq
    %v2629 = vshrl.u32 %v2628, 7
    %v2630 = vsub.s32 0, %v2629
    %v2631 = vrot.slane %v2611, %v2630
    %v2632 = vmul.f32 %v2626, %v2631
    %v2633 = vmul.f32 %v2627, %v2631
    %v2634 = vsel %vm63, %v2632, 0.0
    %v2635 = vsel %vm63, %v2633, 0.0
    %2636 = vst [vmem:[#allocation2] sm:$0xff] %v2634
    %2637 = vst [vmem:[#allocation2 + $0x8] sm:$0xff] %v2635
    // Predicated region
    $region50: #{glm_transformer.1} parent=1 // pred_check
      _
    $region51: #{glm_transformer.1} parent=1 // pred_check_branch
      %2639 = sbr.rel (0) target = $region53
    $region52: #{glm_transformer.1} parent=1 // pred_region
      %s2641 = ssub.s32 256, 256
      %2642 = vsyncadd [#allocation3], %s2641
      %s2643 = sshll.u32 [#allocation2], 4
      %s2644 = int_to_ptr.vmem [resolvable:$true] %s2643
      %2649 = dma.vmem_to_hbm [thread:$0]  %s2644, 256, %s12, [#allocation3], 128, 128, 8
    $region53: #{glm_transformer.1} parent=1 // pred_fallthru
      _
    // Predicated region
    $region54: #{glm_transformer.1} parent=1 // pred_check
      _
    $region55: #{glm_transformer.1} parent=1 // pred_check_branch
      %2651 = sbr.rel (0) target = $region57
    $region56: #{glm_transformer.1} parent=1 // pred_region
      %2652 = dma.done [#allocation3], 256
    $region57: #{glm_transformer.1} parent=1 // pred_fallthru
      _
    %2653 = vsyncpa [#allocation3], 1

</llo_original>
